<compile_context>
chip_gen: v5e
topology: v5e:2x2
jax: 0.10.0
libtpu: 0.0.40
codegen_flags: <defaults>
</compile_context>

<pallas_src>
import math
import functools

import jax
import jax.numpy as jnp
from jax.experimental import pallas as pl
from jax.experimental.pallas import tpu as pltpu


def _decoder_layer_kernel(
    xq_ref, xf_ref, enc_ref,
    w_sq, b_sq, w_skv, b_skv, w_so, b_so,        # self-attention (Q scaled, K|V fused)
    w_cq, b_cq, w_ckv, b_ckv, w_co, b_co,        # cross-attention (Q scaled, K|V fused)
    w_f1, b_f1, w_f2, b_f2,                      # feed-forward
    g1, be1, g2, be2, g3, be3,                   # layer norms
    o_ref, *, num_heads, d_k):
    D = num_heads * d_k
    cdt = xq_ref.dtype                 # compute dtype = input dtype (f32 or bf16)

    xq = xq_ref[0]                     # (TS, D)  query rows for this grid step
    xf = xf_ref[0]                     # (S,  D)  full target sequence (self K/V)
    enc = enc_ref[0]                   # (Se, D)  encoder output       (cross K/V)

    def proj(a, w, b):
        # matmul in compute dtype, accumulate in f32, bias add in f32.
        y = jnp.dot(a, w[...], preferred_element_type=jnp.float32)
        return (y + b[...].astype(jnp.float32)).astype(cdt)

    def split_heads(t):                # (L, H*d_k) -> (H, L, d_k)
        return jnp.transpose(t.reshape(t.shape[0], num_heads, d_k), (1, 0, 2))

    def attention(q, kv):
        # q:  (Tq, D)   -- 1/sqrt(d_k) already folded into W_q.
        # kv: (Lk, 2*D) -- fused [K | V] projection of the key/value source.
        Qh = split_heads(q)            # (H, Tq, d_k)
        Kh = split_heads(kv[:, :D])    # (H, Lk, d_k)
        Vh = split_heads(kv[:, D:])    # (H, Lk, d_k)
        s = jnp.einsum('hqd,hkd->hqk', Qh, Kh,
                       preferred_element_type=jnp.float32)       # (H, Tq, Lk)
        s = s - jnp.max(s, axis=-1, keepdims=True)
        p = jnp.exp(s)
        p = p * pl.reciprocal(jnp.sum(p, axis=-1, keepdims=True), approx=True)
        o = jnp.einsum('hqk,hkd->hqd', p.astype(cdt), Vh,
                       preferred_element_type=jnp.float32)       # (H, Tq, d_k)
        o = jnp.transpose(o, (1, 0, 2)).reshape(q.shape[0], D)   # (Tq, D)
        return o.astype(cdt)

    def layernorm(v_f32, g, b):        # statistics in f32
        mu = jnp.mean(v_f32, axis=-1, keepdims=True)
        var = jnp.mean(jnp.square(v_f32 - mu), axis=-1, keepdims=True)
        y = (v_f32 - mu) * jax.lax.rsqrt(var + 1e-5)
        y = y * g[...].astype(jnp.float32) + b[...].astype(jnp.float32)
        return y.astype(cdt)

    # 1) self-attention (keys/values over the FULL target sequence) + add & norm
    sa = proj(attention(proj(xq, w_sq, b_sq), proj(xf, w_skv, b_skv)), w_so, b_so)
    x1 = layernorm(xq.astype(jnp.float32) + sa.astype(jnp.float32), g1, be1)

    # 2) cross-attention (keys/values from the encoder output) + add & norm
    ca = proj(attention(proj(x1, w_cq, b_cq), proj(enc, w_ckv, b_ckv)), w_co, b_co)
    x2 = layernorm(x1.astype(jnp.float32) + ca.astype(jnp.float32), g2, be2)

    # 3) feed-forward (Linear -> ReLU -> Linear) + add & norm
    h = jnp.maximum(jnp.dot(x2, w_f1[...], preferred_element_type=jnp.float32)
                    + b_f1[...].astype(jnp.float32), 0.0).astype(cdt)
    ff = (jnp.dot(h, w_f2[...], preferred_element_type=jnp.float32)
          + b_f2[...].astype(jnp.float32))
    x3 = layernorm(x2.astype(jnp.float32) + ff, g3, be3)

    o_ref[0] = x3.astype(o_ref.dtype)


def cached_transformer_decoder_layer(x, enc, params, *, num_heads, seq_tile=256):
    B, S, D = x.shape
    Se = enc.shape[1]
    assert D % num_heads == 0
    d_k = D // num_heads

    # Sequence tiling of the query rows (K/V always see the full sequence, so
    # softmax is exact for partial query tiles).  seq_tile should be a
    # multiple of 128 in production; re-derive per generation (v7x: smaller).
    if S <= seq_tile or S % seq_tile != 0:
        TS = S   # TODO(synk): ragged last-tile handling for S % seq_tile != 0
    else:
        TS = seq_tile
    n_s = S // TS

    (sq_w, sq_b, sk_w, sk_b, sv_w, sv_b, so_w, so_b,
     cq_w, cq_b, ck_w, ck_b, cv_w, cv_b, co_w, co_b,
     f1_w, f1_b, f2_w, f2_b,
     g1, be1, g2, be2, g3, be3) = params

    # Wrapper-side (free) weight fusion + scale folding.
    scale = 1.0 / math.sqrt(d_k)
    fused = (
        sq_w * scale, sq_b * scale,                           # self Q (pre-scaled)
        jnp.concatenate([sk_w, sv_w], axis=1),                # self [K|V]
        jnp.concatenate([sk_b, sv_b], axis=1),
        so_w, so_b,
        cq_w * scale, cq_b * scale,                           # cross Q (pre-scaled)
        jnp.concatenate([ck_w, cv_w], axis=1),                # cross [K|V]
        jnp.concatenate([ck_b, cv_b], axis=1),
        co_w, co_b,
        f1_w, f1_b, f2_w, f2_b,
        g1, be1, g2, be2, g3, be3,
    )

    in_specs = [
        pl.BlockSpec((1, TS, D), lambda b, s: (b, s, 0)),   # x (query tile)
        pl.BlockSpec((1, S, D),  lambda b, s: (b, 0, 0)),   # x (full, self K/V)
        pl.BlockSpec((1, Se, D), lambda b, s: (b, 0, 0)),   # enc_output (full)
    ] + [
        # weights / biases: full array, constant block index (no re-fetch).
        pl.BlockSpec(p.shape, lambda b, s, _n=p.ndim: (0,) * _n) for p in fused
    ]
    out_spec = pl.BlockSpec((1, TS, D), lambda b, s: (b, s, 0))

    kernel = functools.partial(_decoder_layer_kernel, num_heads=num_heads, d_k=d_k)
    return pl.pallas_call(
        kernel,
        out_shape=jax.ShapeDtypeStruct((B, S, D), x.dtype),
        grid_spec=pltpu.PrefetchScalarGridSpec(
            num_scalar_prefetch=0,
            grid=(B, n_s),
            in_specs=in_specs,
            out_specs=out_spec,
        ),
        compiler_params=pltpu.CompilerParams(
            dimension_semantics=("parallel", "parallel"),
            vmem_limit_bytes=48 * 1024 * 1024,
        ),
    )(x, x, enc, *fused)


# ---------------- deterministic parameter init (synthetic) ----------------

def init_params(key, d_model, d_ff):
    keys = jax.random.split(key, 13)

    def lin(k, din, dout):
        kw, kb = jax.random.split(k)
        w = jax.random.normal(kw, (din, dout), jnp.float32) / math.sqrt(din)
        b = 0.02 * jax.random.normal(kb, (1, dout), jnp.float32)
        return w, b

    sq = lin(keys[0], d_model, d_model)
    sk = lin(keys[1], d_model, d_model)
    sv = lin(keys[2], d_model, d_model)
    so = lin(keys[3], d_model, d_model)
    cq = lin(keys[4], d_model, d_model)
    ck = lin(keys[5], d_model, d_model)
    cv = lin(keys[6], d_model, d_model)
    co = lin(keys[7], d_model, d_model)
    f1 = lin(keys[8], d_model, d_ff)
    f2 = lin(keys[9], d_ff, d_model)

    def ln_p(k):
        kg, kb = jax.random.split(k)
        g = 1.0 + 0.1 * jax.random.normal(kg, (1, d_model), jnp.float32)
        b = 0.1 * jax.random.normal(kb, (1, d_model), jnp.float32)
        return g, b

    l1 = ln_p(keys[10]); l2 = ln_p(keys[11]); l3 = ln_p(keys[12])
    return (*sq, *sk, *sv, *so, *cq, *ck, *cv, *co, *f1, *f2, *l1, *l2, *l3)


# ---------------- pure-JAX reference (mirrors the PyTorch forward) ----------------

def ref_forward(x, enc, params, num_heads):
    (sq_w, sq_b, sk_w, sk_b, sv_w, sv_b, so_w, so_b,
     cq_w, cq_b, ck_w, ck_b, cv_w, cv_b, co_w, co_b,
     f1_w, f1_b, f2_w, f2_b,
     g1, be1, g2, be2, g3, be3) = params
    D = x.shape[-1]
    d_k = D // num_heads

    def mha(q_in, kv_in, wq, bq, wk, bk, wv, bv, wo, bo):
        Q = q_in @ wq + bq
        K = kv_in @ wk + bk
        V = kv_in @ wv + bv

        def split(t):
            b, s, _ = t.shape
            return t.reshape(b, s, num_heads, d_k).transpose(0, 2, 1, 3)

        Qh, Kh, Vh = split(Q), split(K), split(V)
        s = jnp.einsum('bhqd,bhkd->bhqk', Qh, Kh) / math.sqrt(d_k)
        p = jax.nn.softmax(s, axis=-1)
        o = jnp.einsum('bhqk,bhkd->bhqd', p, Vh)
        o = o.transpose(0, 2, 1, 3).reshape(q_in.shape[0], q_in.shape[1], D)
        return o @ wo + bo

    def ln(v, g, b):
        mu = jnp.mean(v, -1, keepdims=True)
        var = jnp.mean((v - mu) ** 2, -1, keepdims=True)
        return (v - mu) / jnp.sqrt(var + 1e-5) * g + b

    x1 = ln(x + mha(x, x, sq_w, sq_b, sk_w, sk_b, sv_w, sv_b, so_w, so_b), g1, be1)
    x2 = ln(x1 + mha(x1, enc, cq_w, cq_b, ck_w, ck_b, cv_w, cv_b, co_w, co_b), g2, be2)
    ff = jnp.maximum(x2 @ f1_w + f1_b, 0.0) @ f2_w + f2_b
    return ln(x2 + ff, g3, be3)


if __name__ == "__main__":
    # Small but lane-dense shapes: D and d_ff are multiples of 128.
    B, S, Se, D, H, Dff = 2, 16, 16, 128, 4, 256
    key = jax.random.PRNGKey(0)
    kx, ke, kp = jax.random.split(key, 3)
    x = jax.random.normal(kx, (B, S, D), jnp.float32)
    enc = jax.random.normal(ke, (B, Se, D), jnp.float32)
    params = init_params(kp, D, Dff)

    out = cached_transformer_decoder_layer(x, enc, params, num_heads=H)
    out = jax.block_until_ready(out)

    ref = ref_forward(x, enc, params, H)
    assert out.shape == (B, S, D)
    # Tolerance covers the approx-reciprocal softmax normalization.
    assert jnp.allclose(out, ref, atol=1e-2, rtol=1e-2), "mismatch vs reference"
    print("KERNEL_OK")
</pallas_src>

<mosaic_0001>
module attributes {stable_mosaic.version = 11 : i64} {
  func.func @_decoder_layer_kernel(%arg0: i32, %arg1: i32, %arg2: memref<1x16x128xf32, #tpu.memory_space<vmem>>, %arg3: memref<1x16x128xf32, #tpu.memory_space<vmem>>, %arg4: memref<1x16x128xf32, #tpu.memory_space<vmem>>, %arg5: memref<128x128xf32, #tpu.memory_space<vmem>>, %arg6: memref<1x128xf32, #tpu.memory_space<vmem>>, %arg7: memref<128x256xf32, #tpu.memory_space<vmem>>, %arg8: memref<1x256xf32, #tpu.memory_space<vmem>>, %arg9: memref<128x128xf32, #tpu.memory_space<vmem>>, %arg10: memref<1x128xf32, #tpu.memory_space<vmem>>, %arg11: memref<128x128xf32, #tpu.memory_space<vmem>>, %arg12: memref<1x128xf32, #tpu.memory_space<vmem>>, %arg13: memref<128x256xf32, #tpu.memory_space<vmem>>, %arg14: memref<1x256xf32, #tpu.memory_space<vmem>>, %arg15: memref<128x128xf32, #tpu.memory_space<vmem>>, %arg16: memref<1x128xf32, #tpu.memory_space<vmem>>, %arg17: memref<128x256xf32, #tpu.memory_space<vmem>>, %arg18: memref<1x256xf32, #tpu.memory_space<vmem>>, %arg19: memref<256x128xf32, #tpu.memory_space<vmem>>, %arg20: memref<1x128xf32, #tpu.memory_space<vmem>>, %arg21: memref<1x128xf32, #tpu.memory_space<vmem>>, %arg22: memref<1x128xf32, #tpu.memory_space<vmem>>, %arg23: memref<1x128xf32, #tpu.memory_space<vmem>>, %arg24: memref<1x128xf32, #tpu.memory_space<vmem>>, %arg25: memref<1x128xf32, #tpu.memory_space<vmem>>, %arg26: memref<1x128xf32, #tpu.memory_space<vmem>>, %arg27: memref<1x16x128xf32, #tpu.memory_space<vmem>>) attributes {dimension_semantics = [#tpu.dimension_semantics<parallel>, #tpu.dimension_semantics<parallel>], iteration_bounds = array<i64: 2, 1>, scalar_prefetch = 0 : i64, scratch_operands = 0 : i64, tpu.core_type = #tpu.core_type<tc>, window_params = [{transform_indices = @transform_0, window_bounds = array<i64: 1, 16, 128>}, {transform_indices = @transform_1, window_bounds = array<i64: 1, 16, 128>}, {transform_indices = @transform_2, window_bounds = array<i64: 1, 16, 128>}, {pipeline_mode = #tpu.pipeline_mode<synchronous>, transform_indices = @transform_3, window_bounds = array<i64: 128, 128>}, {pipeline_mode = #tpu.pipeline_mode<synchronous>, transform_indices = @transform_4, window_bounds = array<i64: 1, 128>}, {pipeline_mode = #tpu.pipeline_mode<synchronous>, transform_indices = @transform_5, window_bounds = array<i64: 128, 256>}, {pipeline_mode = #tpu.pipeline_mode<synchronous>, transform_indices = @transform_6, window_bounds = array<i64: 1, 256>}, {pipeline_mode = #tpu.pipeline_mode<synchronous>, transform_indices = @transform_7, window_bounds = array<i64: 128, 128>}, {pipeline_mode = #tpu.pipeline_mode<synchronous>, transform_indices = @transform_8, window_bounds = array<i64: 1, 128>}, {pipeline_mode = #tpu.pipeline_mode<synchronous>, transform_indices = @transform_9, window_bounds = array<i64: 128, 128>}, {pipeline_mode = #tpu.pipeline_mode<synchronous>, transform_indices = @transform_10, window_bounds = array<i64: 1, 128>}, {pipeline_mode = #tpu.pipeline_mode<synchronous>, transform_indices = @transform_11, window_bounds = array<i64: 128, 256>}, {pipeline_mode = #tpu.pipeline_mode<synchronous>, transform_indices = @transform_12, window_bounds = array<i64: 1, 256>}, {pipeline_mode = #tpu.pipeline_mode<synchronous>, transform_indices = @transform_13, window_bounds = array<i64: 128, 128>}, {pipeline_mode = #tpu.pipeline_mode<synchronous>, transform_indices = @transform_14, window_bounds = array<i64: 1, 128>}, {pipeline_mode = #tpu.pipeline_mode<synchronous>, transform_indices = @transform_15, window_bounds = array<i64: 128, 256>}, {pipeline_mode = #tpu.pipeline_mode<synchronous>, transform_indices = @transform_16, window_bounds = array<i64: 1, 256>}, {pipeline_mode = #tpu.pipeline_mode<synchronous>, transform_indices = @transform_17, window_bounds = array<i64: 256, 128>}, {pipeline_mode = #tpu.pipeline_mode<synchronous>, transform_indices = @transform_18, window_bounds = array<i64: 1, 128>}, {pipeline_mode = #tpu.pipeline_mode<synchronous>, transform_indices = @transform_19, window_bounds = array<i64: 1, 128>}, {pipeline_mode = #tpu.pipeline_mode<synchronous>, transform_indices = @transform_20, window_bounds = array<i64: 1, 128>}, {pipeline_mode = #tpu.pipeline_mode<synchronous>, transform_indices = @transform_21, window_bounds = array<i64: 1, 128>}, {pipeline_mode = #tpu.pipeline_mode<synchronous>, transform_indices = @transform_22, window_bounds = array<i64: 1, 128>}, {pipeline_mode = #tpu.pipeline_mode<synchronous>, transform_indices = @transform_23, window_bounds = array<i64: 1, 128>}, {pipeline_mode = #tpu.pipeline_mode<synchronous>, transform_indices = @transform_24, window_bounds = array<i64: 1, 128>}, {transform_indices = @transform_25, window_bounds = array<i64: 1, 16, 128>}]} {
    %c0 = arith.constant 0 : index
    %c0_0 = arith.constant 0 : index
    %c0_1 = arith.constant 0 : index
    %0 = vector.load %arg2[%c0, %c0_0, %c0_1] : memref<1x16x128xf32, #tpu.memory_space<vmem>>, vector<1x16x128xf32>
    %1 = vector.shape_cast %0 : vector<1x16x128xf32> to vector<16x128xf32>
    %c0_2 = arith.constant 0 : index
    %c0_3 = arith.constant 0 : index
    %c0_4 = arith.constant 0 : index
    %2 = vector.load %arg3[%c0_2, %c0_3, %c0_4] : memref<1x16x128xf32, #tpu.memory_space<vmem>>, vector<1x16x128xf32>
    %3 = vector.shape_cast %2 : vector<1x16x128xf32> to vector<16x128xf32>
    %c0_5 = arith.constant 0 : index
    %c0_6 = arith.constant 0 : index
    %c0_7 = arith.constant 0 : index
    %4 = vector.load %arg4[%c0_5, %c0_6, %c0_7] : memref<1x16x128xf32, #tpu.memory_space<vmem>>, vector<1x16x128xf32>
    %5 = vector.shape_cast %4 : vector<1x16x128xf32> to vector<16x128xf32>
    %c0_8 = arith.constant 0 : index
    %c0_9 = arith.constant 0 : index
    %6 = vector.load %arg5[%c0_8, %c0_9] : memref<128x128xf32, #tpu.memory_space<vmem>>, vector<128x128xf32>
    %cst = arith.constant dense<0.000000e+00> : vector<16x128xf32>
    %7 = tpu.matmul %1, %6, %cst {dimension_numbers = #tpu.dot_dimension_numbers<[1], [0], [0], [1], [0, 0, 1, 1], [], []>} : vector<16x128xf32>, vector<128x128xf32>, vector<16x128xf32> -> vector<16x128xf32>
    %c0_10 = arith.constant 0 : index
    %c0_11 = arith.constant 0 : index
    %8 = vector.load %arg6[%c0_10, %c0_11] : memref<1x128xf32, #tpu.memory_space<vmem>>, vector<1x128xf32>
    %9 = vector.broadcast %8 : vector<1x128xf32> to vector<16x128xf32>
    %10 = arith.addf %7, %9 : vector<16x128xf32>
    %c0_12 = arith.constant 0 : index
    %c0_13 = arith.constant 0 : index
    %11 = vector.load %arg7[%c0_12, %c0_13] : memref<128x256xf32, #tpu.memory_space<vmem>>, vector<128x256xf32>
    %cst_14 = arith.constant dense<0.000000e+00> : vector<16x256xf32>
    %12 = tpu.matmul %3, %11, %cst_14 {dimension_numbers = #tpu.dot_dimension_numbers<[1], [0], [0], [1], [0, 0, 1, 1], [], []>} : vector<16x128xf32>, vector<128x256xf32>, vector<16x256xf32> -> vector<16x256xf32>
    %c0_15 = arith.constant 0 : index
    %c0_16 = arith.constant 0 : index
    %13 = vector.load %arg8[%c0_15, %c0_16] : memref<1x256xf32, #tpu.memory_space<vmem>>, vector<1x256xf32>
    %14 = vector.broadcast %13 : vector<1x256xf32> to vector<16x256xf32>
    %15 = arith.addf %12, %14 : vector<16x256xf32>
    %16 = vector.shape_cast %10 : vector<16x128xf32> to vector<16x4x32xf32>
    %17 = tpu.transpose %16, [1, 0, 2] : vector<16x4x32xf32> -> vector<4x16x32xf32>
    %18 = vector.extract_strided_slice %15 {offsets = [0, 0], sizes = [16, 128], strides = [1, 1]} : vector<16x256xf32> to vector<16x128xf32>
    %19 = vector.shape_cast %18 : vector<16x128xf32> to vector<16x4x32xf32>
    %20 = tpu.transpose %19, [1, 0, 2] : vector<16x4x32xf32> -> vector<4x16x32xf32>
    %21 = vector.extract_strided_slice %15 {offsets = [0, 128], sizes = [16, 128], strides = [1, 1]} : vector<16x256xf32> to vector<16x128xf32>
    %22 = vector.shape_cast %21 : vector<16x128xf32> to vector<16x4x32xf32>
    %23 = tpu.transpose %22, [1, 0, 2] : vector<16x4x32xf32> -> vector<4x16x32xf32>
    "tpu.trace_start"() <{level = 10 : i32, message = "hqd,hkd->hqk"}> : () -> ()
    %cst_17 = arith.constant dense<0.000000e+00> : vector<4x16x16xf32>
    %24 = tpu.matmul %17, %20, %cst_17 {dimension_numbers = #tpu.dot_dimension_numbers<[2], [2], [1], [1], [0, 0, 0, 1, 1, 1], [0], [0]>} : vector<4x16x32xf32>, vector<4x16x32xf32>, vector<4x16x16xf32> -> vector<4x16x16xf32>
    "tpu.trace_stop"() : () -> ()
    %cst_18 = arith.constant dense<0xFF800000> : vector<4x16xf32>
    %25 = vector.multi_reduction <maximumf>, %24, %cst_18 [2] : vector<4x16x16xf32> to vector<4x16xf32>
    %26 = vector.shape_cast %25 : vector<4x16xf32> to vector<4x16x1xf32>
    %27 = vector.broadcast %26 : vector<4x16x1xf32> to vector<4x16x16xf32>
    %28 = arith.subf %24, %27 : vector<4x16x16xf32>
    %29 = math.exp %28 : vector<4x16x16xf32>
    %cst_19 = arith.constant dense<0.000000e+00> : vector<4x16xf32>
    %30 = vector.multi_reduction <add>, %29, %cst_19 [2] : vector<4x16x16xf32> to vector<4x16xf32>
    %31 = vector.shape_cast %30 : vector<4x16xf32> to vector<4x16x1xf32>
    %32 = tpu.reciprocal %31 {approx = true} : vector<4x16x1xf32> -> vector<4x16x1xf32>
    %33 = vector.broadcast %32 : vector<4x16x1xf32> to vector<4x16x16xf32>
    %34 = arith.mulf %29, %33 : vector<4x16x16xf32>
    "tpu.trace_start"() <{level = 10 : i32, message = "hqk,hkd->hqd"}> : () -> ()
    %cst_20 = arith.constant dense<0.000000e+00> : vector<4x16x32xf32>
    %35 = tpu.matmul %34, %23, %cst_20 {dimension_numbers = #tpu.dot_dimension_numbers<[2], [1], [1], [2], [0, 0, 0, 1, 1, 2], [0], [0]>} : vector<4x16x16xf32>, vector<4x16x32xf32>, vector<4x16x32xf32> -> vector<4x16x32xf32>
    "tpu.trace_stop"() : () -> ()
    %36 = tpu.transpose %35, [1, 0, 2] : vector<4x16x32xf32> -> vector<16x4x32xf32>
    %37 = vector.shape_cast %36 : vector<16x4x32xf32> to vector<16x128xf32>
    %c0_21 = arith.constant 0 : index
    %c0_22 = arith.constant 0 : index
    %38 = vector.load %arg9[%c0_21, %c0_22] : memref<128x128xf32, #tpu.memory_space<vmem>>, vector<128x128xf32>
    %cst_23 = arith.constant dense<0.000000e+00> : vector<16x128xf32>
    %39 = tpu.matmul %37, %38, %cst_23 {dimension_numbers = #tpu.dot_dimension_numbers<[1], [0], [0], [1], [0, 0, 1, 1], [], []>} : vector<16x128xf32>, vector<128x128xf32>, vector<16x128xf32> -> vector<16x128xf32>
    %c0_24 = arith.constant 0 : index
    %c0_25 = arith.constant 0 : index
    %40 = vector.load %arg10[%c0_24, %c0_25] : memref<1x128xf32, #tpu.memory_space<vmem>>, vector<1x128xf32>
    %41 = vector.broadcast %40 : vector<1x128xf32> to vector<16x128xf32>
    %42 = arith.addf %39, %41 : vector<16x128xf32>
    %43 = arith.addf %1, %42 : vector<16x128xf32>
    %cst_26 = arith.constant dense<0.000000e+00> : vector<16xf32>
    %44 = vector.multi_reduction <add>, %43, %cst_26 [1] : vector<16x128xf32> to vector<16xf32>
    %45 = vector.shape_cast %44 : vector<16xf32> to vector<16x1xf32>
    %cst_27 = arith.constant 1.280000e+02 : f32
    %46 = vector.broadcast %cst_27 : f32 to vector<16x1xf32>
    %47 = arith.divf %45, %46 : vector<16x1xf32>
    %48 = vector.broadcast %47 : vector<16x1xf32> to vector<16x128xf32>
    %49 = arith.subf %43, %48 : vector<16x128xf32>
    %50 = arith.mulf %49, %49 : vector<16x128xf32>
    %cst_28 = arith.constant dense<0.000000e+00> : vector<16xf32>
    %51 = vector.multi_reduction <add>, %50, %cst_28 [1] : vector<16x128xf32> to vector<16xf32>
    %52 = vector.shape_cast %51 : vector<16xf32> to vector<16x1xf32>
    %cst_29 = arith.constant 1.280000e+02 : f32
    %53 = vector.broadcast %cst_29 : f32 to vector<16x1xf32>
    %54 = arith.divf %52, %53 : vector<16x1xf32>
    %55 = vector.broadcast %47 : vector<16x1xf32> to vector<16x128xf32>
    %56 = arith.subf %43, %55 : vector<16x128xf32>
    %cst_30 = arith.constant 9.99999974E-6 : f32
    %57 = vector.broadcast %cst_30 : f32 to vector<16x1xf32>
    %58 = arith.addf %54, %57 : vector<16x1xf32>
    %59 = math.rsqrt %58 : vector<16x1xf32>
    %60 = vector.broadcast %59 : vector<16x1xf32> to vector<16x128xf32>
    %61 = arith.mulf %56, %60 : vector<16x128xf32>
    %c0_31 = arith.constant 0 : index
    %c0_32 = arith.constant 0 : index
    %62 = vector.load %arg21[%c0_31, %c0_32] : memref<1x128xf32, #tpu.memory_space<vmem>>, vector<1x128xf32>
    %63 = vector.broadcast %62 : vector<1x128xf32> to vector<16x128xf32>
    %64 = arith.mulf %61, %63 : vector<16x128xf32>
    %c0_33 = arith.constant 0 : index
    %c0_34 = arith.constant 0 : index
    %65 = vector.load %arg22[%c0_33, %c0_34] : memref<1x128xf32, #tpu.memory_space<vmem>>, vector<1x128xf32>
    %66 = vector.broadcast %65 : vector<1x128xf32> to vector<16x128xf32>
    %67 = arith.addf %64, %66 : vector<16x128xf32>
    %c0_35 = arith.constant 0 : index
    %c0_36 = arith.constant 0 : index
    %68 = vector.load %arg11[%c0_35, %c0_36] : memref<128x128xf32, #tpu.memory_space<vmem>>, vector<128x128xf32>
    %cst_37 = arith.constant dense<0.000000e+00> : vector<16x128xf32>
    %69 = tpu.matmul %67, %68, %cst_37 {dimension_numbers = #tpu.dot_dimension_numbers<[1], [0], [0], [1], [0, 0, 1, 1], [], []>} : vector<16x128xf32>, vector<128x128xf32>, vector<16x128xf32> -> vector<16x128xf32>
    %c0_38 = arith.constant 0 : index
    %c0_39 = arith.constant 0 : index
    %70 = vector.load %arg12[%c0_38, %c0_39] : memref<1x128xf32, #tpu.memory_space<vmem>>, vector<1x128xf32>
    %71 = vector.broadcast %70 : vector<1x128xf32> to vector<16x128xf32>
    %72 = arith.addf %69, %71 : vector<16x128xf32>
    %c0_40 = arith.constant 0 : index
    %c0_41 = arith.constant 0 : index
    %73 = vector.load %arg13[%c0_40, %c0_41] : memref<128x256xf32, #tpu.memory_space<vmem>>, vector<128x256xf32>
    %cst_42 = arith.constant dense<0.000000e+00> : vector<16x256xf32>
    %74 = tpu.matmul %5, %73, %cst_42 {dimension_numbers = #tpu.dot_dimension_numbers<[1], [0], [0], [1], [0, 0, 1, 1], [], []>} : vector<16x128xf32>, vector<128x256xf32>, vector<16x256xf32> -> vector<16x256xf32>
    %c0_43 = arith.constant 0 : index
    %c0_44 = arith.constant 0 : index
    %75 = vector.load %arg14[%c0_43, %c0_44] : memref<1x256xf32, #tpu.memory_space<vmem>>, vector<1x256xf32>
    %76 = vector.broadcast %75 : vector<1x256xf32> to vector<16x256xf32>
    %77 = arith.addf %74, %76 : vector<16x256xf32>
    %78 = vector.shape_cast %72 : vector<16x128xf32> to vector<16x4x32xf32>
    %79 = tpu.transpose %78, [1, 0, 2] : vector<16x4x32xf32> -> vector<4x16x32xf32>
    %80 = vector.extract_strided_slice %77 {offsets = [0, 0], sizes = [16, 128], strides = [1, 1]} : vector<16x256xf32> to vector<16x128xf32>
    %81 = vector.shape_cast %80 : vector<16x128xf32> to vector<16x4x32xf32>
    %82 = tpu.transpose %81, [1, 0, 2] : vector<16x4x32xf32> -> vector<4x16x32xf32>
    %83 = vector.extract_strided_slice %77 {offsets = [0, 128], sizes = [16, 128], strides = [1, 1]} : vector<16x256xf32> to vector<16x128xf32>
    %84 = vector.shape_cast %83 : vector<16x128xf32> to vector<16x4x32xf32>
    %85 = tpu.transpose %84, [1, 0, 2] : vector<16x4x32xf32> -> vector<4x16x32xf32>
    "tpu.trace_start"() <{level = 10 : i32, message = "hqd,hkd->hqk"}> : () -> ()
    %cst_45 = arith.constant dense<0.000000e+00> : vector<4x16x16xf32>
    %86 = tpu.matmul %79, %82, %cst_45 {dimension_numbers = #tpu.dot_dimension_numbers<[2], [2], [1], [1], [0, 0, 0, 1, 1, 1], [0], [0]>} : vector<4x16x32xf32>, vector<4x16x32xf32>, vector<4x16x16xf32> -> vector<4x16x16xf32>
    "tpu.trace_stop"() : () -> ()
    %cst_46 = arith.constant dense<0xFF800000> : vector<4x16xf32>
    %87 = vector.multi_reduction <maximumf>, %86, %cst_46 [2] : vector<4x16x16xf32> to vector<4x16xf32>
    %88 = vector.shape_cast %87 : vector<4x16xf32> to vector<4x16x1xf32>
    %89 = vector.broadcast %88 : vector<4x16x1xf32> to vector<4x16x16xf32>
    %90 = arith.subf %86, %89 : vector<4x16x16xf32>
    %91 = math.exp %90 : vector<4x16x16xf32>
    %cst_47 = arith.constant dense<0.000000e+00> : vector<4x16xf32>
    %92 = vector.multi_reduction <add>, %91, %cst_47 [2] : vector<4x16x16xf32> to vector<4x16xf32>
    %93 = vector.shape_cast %92 : vector<4x16xf32> to vector<4x16x1xf32>
    %94 = tpu.reciprocal %93 {approx = true} : vector<4x16x1xf32> -> vector<4x16x1xf32>
    %95 = vector.broadcast %94 : vector<4x16x1xf32> to vector<4x16x16xf32>
    %96 = arith.mulf %91, %95 : vector<4x16x16xf32>
    "tpu.trace_start"() <{level = 10 : i32, message = "hqk,hkd->hqd"}> : () -> ()
    %cst_48 = arith.constant dense<0.000000e+00> : vector<4x16x32xf32>
    %97 = tpu.matmul %96, %85, %cst_48 {dimension_numbers = #tpu.dot_dimension_numbers<[2], [1], [1], [2], [0, 0, 0, 1, 1, 2], [0], [0]>} : vector<4x16x16xf32>, vector<4x16x32xf32>, vector<4x16x32xf32> -> vector<4x16x32xf32>
    "tpu.trace_stop"() : () -> ()
    %98 = tpu.transpose %97, [1, 0, 2] : vector<4x16x32xf32> -> vector<16x4x32xf32>
    %99 = vector.shape_cast %98 : vector<16x4x32xf32> to vector<16x128xf32>
    %c0_49 = arith.constant 0 : index
    %c0_50 = arith.constant 0 : index
    %100 = vector.load %arg15[%c0_49, %c0_50] : memref<128x128xf32, #tpu.memory_space<vmem>>, vector<128x128xf32>
    %cst_51 = arith.constant dense<0.000000e+00> : vector<16x128xf32>
    %101 = tpu.matmul %99, %100, %cst_51 {dimension_numbers = #tpu.dot_dimension_numbers<[1], [0], [0], [1], [0, 0, 1, 1], [], []>} : vector<16x128xf32>, vector<128x128xf32>, vector<16x128xf32> -> vector<16x128xf32>
    %c0_52 = arith.constant 0 : index
    %c0_53 = arith.constant 0 : index
    %102 = vector.load %arg16[%c0_52, %c0_53] : memref<1x128xf32, #tpu.memory_space<vmem>>, vector<1x128xf32>
    %103 = vector.broadcast %102 : vector<1x128xf32> to vector<16x128xf32>
    %104 = arith.addf %101, %103 : vector<16x128xf32>
    %105 = arith.addf %67, %104 : vector<16x128xf32>
    %cst_54 = arith.constant dense<0.000000e+00> : vector<16xf32>
    %106 = vector.multi_reduction <add>, %105, %cst_54 [1] : vector<16x128xf32> to vector<16xf32>
    %107 = vector.shape_cast %106 : vector<16xf32> to vector<16x1xf32>
    %cst_55 = arith.constant 1.280000e+02 : f32
    %108 = vector.broadcast %cst_55 : f32 to vector<16x1xf32>
    %109 = arith.divf %107, %108 : vector<16x1xf32>
    %110 = vector.broadcast %109 : vector<16x1xf32> to vector<16x128xf32>
    %111 = arith.subf %105, %110 : vector<16x128xf32>
    %112 = arith.mulf %111, %111 : vector<16x128xf32>
    %cst_56 = arith.constant dense<0.000000e+00> : vector<16xf32>
    %113 = vector.multi_reduction <add>, %112, %cst_56 [1] : vector<16x128xf32> to vector<16xf32>
    %114 = vector.shape_cast %113 : vector<16xf32> to vector<16x1xf32>
    %cst_57 = arith.constant 1.280000e+02 : f32
    %115 = vector.broadcast %cst_57 : f32 to vector<16x1xf32>
    %116 = arith.divf %114, %115 : vector<16x1xf32>
    %117 = vector.broadcast %109 : vector<16x1xf32> to vector<16x128xf32>
    %118 = arith.subf %105, %117 : vector<16x128xf32>
    %cst_58 = arith.constant 9.99999974E-6 : f32
    %119 = vector.broadcast %cst_58 : f32 to vector<16x1xf32>
    %120 = arith.addf %116, %119 : vector<16x1xf32>
    %121 = math.rsqrt %120 : vector<16x1xf32>
    %122 = vector.broadcast %121 : vector<16x1xf32> to vector<16x128xf32>
    %123 = arith.mulf %118, %122 : vector<16x128xf32>
    %c0_59 = arith.constant 0 : index
    %c0_60 = arith.constant 0 : index
    %124 = vector.load %arg23[%c0_59, %c0_60] : memref<1x128xf32, #tpu.memory_space<vmem>>, vector<1x128xf32>
    %125 = vector.broadcast %124 : vector<1x128xf32> to vector<16x128xf32>
    %126 = arith.mulf %123, %125 : vector<16x128xf32>
    %c0_61 = arith.constant 0 : index
    %c0_62 = arith.constant 0 : index
    %127 = vector.load %arg24[%c0_61, %c0_62] : memref<1x128xf32, #tpu.memory_space<vmem>>, vector<1x128xf32>
    %128 = vector.broadcast %127 : vector<1x128xf32> to vector<16x128xf32>
    %129 = arith.addf %126, %128 : vector<16x128xf32>
    %c0_63 = arith.constant 0 : index
    %c0_64 = arith.constant 0 : index
    %130 = vector.load %arg17[%c0_63, %c0_64] : memref<128x256xf32, #tpu.memory_space<vmem>>, vector<128x256xf32>
    %cst_65 = arith.constant dense<0.000000e+00> : vector<16x256xf32>
    %131 = tpu.matmul %129, %130, %cst_65 {dimension_numbers = #tpu.dot_dimension_numbers<[1], [0], [0], [1], [0, 0, 1, 1], [], []>} : vector<16x128xf32>, vector<128x256xf32>, vector<16x256xf32> -> vector<16x256xf32>
    %c0_66 = arith.constant 0 : index
    %c0_67 = arith.constant 0 : index
    %132 = vector.load %arg18[%c0_66, %c0_67] : memref<1x256xf32, #tpu.memory_space<vmem>>, vector<1x256xf32>
    %133 = vector.broadcast %132 : vector<1x256xf32> to vector<16x256xf32>
    %134 = arith.addf %131, %133 : vector<16x256xf32>
    %cst_68 = arith.constant 0.000000e+00 : f32
    %135 = vector.broadcast %cst_68 : f32 to vector<16x256xf32>
    %136 = arith.maximumf %134, %135 : vector<16x256xf32>
    %c0_69 = arith.constant 0 : index
    %c0_70 = arith.constant 0 : index
    %137 = vector.load %arg19[%c0_69, %c0_70] : memref<256x128xf32, #tpu.memory_space<vmem>>, vector<256x128xf32>
    %cst_71 = arith.constant dense<0.000000e+00> : vector<16x128xf32>
    %138 = tpu.matmul %136, %137, %cst_71 {dimension_numbers = #tpu.dot_dimension_numbers<[1], [0], [0], [1], [0, 0, 1, 1], [], []>} : vector<16x256xf32>, vector<256x128xf32>, vector<16x128xf32> -> vector<16x128xf32>
    %c0_72 = arith.constant 0 : index
    %c0_73 = arith.constant 0 : index
    %139 = vector.load %arg20[%c0_72, %c0_73] : memref<1x128xf32, #tpu.memory_space<vmem>>, vector<1x128xf32>
    %140 = vector.broadcast %139 : vector<1x128xf32> to vector<16x128xf32>
    %141 = arith.addf %138, %140 : vector<16x128xf32>
    %142 = arith.addf %129, %141 : vector<16x128xf32>
    %cst_74 = arith.constant dense<0.000000e+00> : vector<16xf32>
    %143 = vector.multi_reduction <add>, %142, %cst_74 [1] : vector<16x128xf32> to vector<16xf32>
    %144 = vector.shape_cast %143 : vector<16xf32> to vector<16x1xf32>
    %cst_75 = arith.constant 1.280000e+02 : f32
    %145 = vector.broadcast %cst_75 : f32 to vector<16x1xf32>
    %146 = arith.divf %144, %145 : vector<16x1xf32>
    %147 = vector.broadcast %146 : vector<16x1xf32> to vector<16x128xf32>
    %148 = arith.subf %142, %147 : vector<16x128xf32>
    %149 = arith.mulf %148, %148 : vector<16x128xf32>
    %cst_76 = arith.constant dense<0.000000e+00> : vector<16xf32>
    %150 = vector.multi_reduction <add>, %149, %cst_76 [1] : vector<16x128xf32> to vector<16xf32>
    %151 = vector.shape_cast %150 : vector<16xf32> to vector<16x1xf32>
    %cst_77 = arith.constant 1.280000e+02 : f32
    %152 = vector.broadcast %cst_77 : f32 to vector<16x1xf32>
    %153 = arith.divf %151, %152 : vector<16x1xf32>
    %154 = vector.broadcast %146 : vector<16x1xf32> to vector<16x128xf32>
    %155 = arith.subf %142, %154 : vector<16x128xf32>
    %cst_78 = arith.constant 9.99999974E-6 : f32
    %156 = vector.broadcast %cst_78 : f32 to vector<16x1xf32>
    %157 = arith.addf %153, %156 : vector<16x1xf32>
    %158 = math.rsqrt %157 : vector<16x1xf32>
    %159 = vector.broadcast %158 : vector<16x1xf32> to vector<16x128xf32>
    %160 = arith.mulf %155, %159 : vector<16x128xf32>
    %c0_79 = arith.constant 0 : index
    %c0_80 = arith.constant 0 : index
    %161 = vector.load %arg25[%c0_79, %c0_80] : memref<1x128xf32, #tpu.memory_space<vmem>>, vector<1x128xf32>
    %162 = vector.broadcast %161 : vector<1x128xf32> to vector<16x128xf32>
    %163 = arith.mulf %160, %162 : vector<16x128xf32>
    %c0_81 = arith.constant 0 : index
    %c0_82 = arith.constant 0 : index
    %164 = vector.load %arg26[%c0_81, %c0_82] : memref<1x128xf32, #tpu.memory_space<vmem>>, vector<1x128xf32>
    %165 = vector.broadcast %164 : vector<1x128xf32> to vector<16x128xf32>
    %166 = arith.addf %163, %165 : vector<16x128xf32>
    %c0_83 = arith.constant 0 : index
    %c0_84 = arith.constant 0 : index
    %c0_85 = arith.constant 0 : index
    %167 = vector.load %arg27[%c0_83, %c0_84, %c0_85] : memref<1x16x128xf32, #tpu.memory_space<vmem>>, vector<1x16x128xf32>
    %168 = vector.shape_cast %167 : vector<1x16x128xf32> to vector<16x128xf32>
    %169 = vector.shape_cast %166 : vector<16x128xf32> to vector<1x16x128xf32>
    tpu.vector_store %arg27[%c0_83, %c0_84, %c0_85], %169 {strides = array<i32>} : memref<1x16x128xf32, #tpu.memory_space<vmem>>, vector<1x16x128xf32>,
    return
  }
  func.func @transform_0(%arg0: i32, %arg1: i32) -> (i32, i32, i32) {
    %c0_i32 = arith.constant 0 : i32
    %c0_i32_0 = arith.constant 0 : i32
    return %arg0, %arg1, %c0_i32 : i32, i32, i32
  }
  func.func @transform_1(%arg0: i32, %arg1: i32) -> (i32, i32, i32) {
    %c0_i32 = arith.constant 0 : i32
    %c0_i32_0 = arith.constant 0 : i32
    %c0_i32_1 = arith.constant 0 : i32
    return %arg0, %c0_i32, %c0_i32_0 : i32, i32, i32
  }
  func.func @transform_2(%arg0: i32, %arg1: i32) -> (i32, i32, i32) {
    %c0_i32 = arith.constant 0 : i32
    %c0_i32_0 = arith.constant 0 : i32
    %c0_i32_1 = arith.constant 0 : i32
    return %arg0, %c0_i32, %c0_i32_0 : i32, i32, i32
  }
  func.func @transform_3(%arg0: i32, %arg1: i32) -> (i32, i32) {
    %c0_i32 = arith.constant 0 : i32
    %c0_i32_0 = arith.constant 0 : i32
    %c0_i32_1 = arith.constant 0 : i32
    return %c0_i32, %c0_i32_0 : i32, i32
  }
  func.func @transform_4(%arg0: i32, %arg1: i32) -> (i32, i32) {
    %c0_i32 = arith.constant 0 : i32
    %c0_i32_0 = arith.constant 0 : i32
    %c0_i32_1 = arith.constant 0 : i32
    return %c0_i32, %c0_i32_0 : i32, i32
  }
  func.func @transform_5(%arg0: i32, %arg1: i32) -> (i32, i32) {
    %c0_i32 = arith.constant 0 : i32
    %c0_i32_0 = arith.constant 0 : i32
    %c0_i32_1 = arith.constant 0 : i32
    return %c0_i32, %c0_i32_0 : i32, i32
  }
  func.func @transform_6(%arg0: i32, %arg1: i32) -> (i32, i32) {
    %c0_i32 = arith.constant 0 : i32
    %c0_i32_0 = arith.constant 0 : i32
    %c0_i32_1 = arith.constant 0 : i32
    return %c0_i32, %c0_i32_0 : i32, i32
  }
  func.func @transform_7(%arg0: i32, %arg1: i32) -> (i32, i32) {
    %c0_i32 = arith.constant 0 : i32
    %c0_i32_0 = arith.constant 0 : i32
    %c0_i32_1 = arith.constant 0 : i32
    return %c0_i32, %c0_i32_0 : i32, i32
  }
  func.func @transform_8(%arg0: i32, %arg1: i32) -> (i32, i32) {
    %c0_i32 = arith.constant 0 : i32
    %c0_i32_0 = arith.constant 0 : i32
    %c0_i32_1 = arith.constant 0 : i32
    return %c0_i32, %c0_i32_0 : i32, i32
  }
  func.func @transform_9(%arg0: i32, %arg1: i32) -> (i32, i32) {
    %c0_i32 = arith.constant 0 : i32
    %c0_i32_0 = arith.constant 0 : i32
    %c0_i32_1 = arith.constant 0 : i32
    return %c0_i32, %c0_i32_0 : i32, i32
  }
  func.func @transform_10(%arg0: i32, %arg1: i32) -> (i32, i32) {
    %c0_i32 = arith.constant 0 : i32
    %c0_i32_0 = arith.constant 0 : i32
    %c0_i32_1 = arith.constant 0 : i32
    return %c0_i32, %c0_i32_0 : i32, i32
  }
  func.func @transform_11(%arg0: i32, %arg1: i32) -> (i32, i32) {
    %c0_i32 = arith.constant 0 : i32
    %c0_i32_0 = arith.constant 0 : i32
    %c0_i32_1 = arith.constant 0 : i32
    return %c0_i32, %c0_i32_0 : i32, i32
  }
  func.func @transform_12(%arg0: i32, %arg1: i32) -> (i32, i32) {
    %c0_i32 = arith.constant 0 : i32
    %c0_i32_0 = arith.constant 0 : i32
    %c0_i32_1 = arith.constant 0 : i32
    return %c0_i32, %c0_i32_0 : i32, i32
  }
  func.func @transform_13(%arg0: i32, %arg1: i32) -> (i32, i32) {
    %c0_i32 = arith.constant 0 : i32
    %c0_i32_0 = arith.constant 0 : i32
    %c0_i32_1 = arith.constant 0 : i32
    return %c0_i32, %c0_i32_0 : i32, i32
  }
  func.func @transform_14(%arg0: i32, %arg1: i32) -> (i32, i32) {
    %c0_i32 = arith.constant 0 : i32
    %c0_i32_0 = arith.constant 0 : i32
    %c0_i32_1 = arith.constant 0 : i32
    return %c0_i32, %c0_i32_0 : i32, i32
  }
  func.func @transform_15(%arg0: i32, %arg1: i32) -> (i32, i32) {
    %c0_i32 = arith.constant 0 : i32
    %c0_i32_0 = arith.constant 0 : i32
    %c0_i32_1 = arith.constant 0 : i32
    return %c0_i32, %c0_i32_0 : i32, i32
  }
  func.func @transform_16(%arg0: i32, %arg1: i32) -> (i32, i32) {
    %c0_i32 = arith.constant 0 : i32
    %c0_i32_0 = arith.constant 0 : i32
    %c0_i32_1 = arith.constant 0 : i32
    return %c0_i32, %c0_i32_0 : i32, i32
  }
  func.func @transform_17(%arg0: i32, %arg1: i32) -> (i32, i32) {
    %c0_i32 = arith.constant 0 : i32
    %c0_i32_0 = arith.constant 0 : i32
    %c0_i32_1 = arith.constant 0 : i32
    return %c0_i32, %c0_i32_0 : i32, i32
  }
  func.func @transform_18(%arg0: i32, %arg1: i32) -> (i32, i32) {
    %c0_i32 = arith.constant 0 : i32
    %c0_i32_0 = arith.constant 0 : i32
    %c0_i32_1 = arith.constant 0 : i32
    return %c0_i32, %c0_i32_0 : i32, i32
  }
  func.func @transform_19(%arg0: i32, %arg1: i32) -> (i32, i32) {
    %c0_i32 = arith.constant 0 : i32
    %c0_i32_0 = arith.constant 0 : i32
    %c0_i32_1 = arith.constant 0 : i32
    return %c0_i32, %c0_i32_0 : i32, i32
  }
  func.func @transform_20(%arg0: i32, %arg1: i32) -> (i32, i32) {
    %c0_i32 = arith.constant 0 : i32
    %c0_i32_0 = arith.constant 0 : i32
    %c0_i32_1 = arith.constant 0 : i32
    return %c0_i32, %c0_i32_0 : i32, i32
  }
  func.func @transform_21(%arg0: i32, %arg1: i32) -> (i32, i32) {
    %c0_i32 = arith.constant 0 : i32
    %c0_i32_0 = arith.constant 0 : i32
    %c0_i32_1 = arith.constant 0 : i32
    return %c0_i32, %c0_i32_0 : i32, i32
  }
  func.func @transform_22(%arg0: i32, %arg1: i32) -> (i32, i32) {
    %c0_i32 = arith.constant 0 : i32
    %c0_i32_0 = arith.constant 0 : i32
    %c0_i32_1 = arith.constant 0 : i32
    return %c0_i32, %c0_i32_0 : i32, i32
  }
  func.func @transform_23(%arg0: i32, %arg1: i32) -> (i32, i32) {
    %c0_i32 = arith.constant 0 : i32
    %c0_i32_0 = arith.constant 0 : i32
    %c0_i32_1 = arith.constant 0 : i32
    return %c0_i32, %c0_i32_0 : i32, i32
  }
  func.func @transform_24(%arg0: i32, %arg1: i32) -> (i32, i32) {
    %c0_i32 = arith.constant 0 : i32
    %c0_i32_0 = arith.constant 0 : i32
    %c0_i32_1 = arith.constant 0 : i32
    return %c0_i32, %c0_i32_0 : i32, i32
  }
  func.func @transform_25(%arg0: i32, %arg1: i32) -> (i32, i32, i32) {
    %c0_i32 = arith.constant 0 : i32
    %c0_i32_0 = arith.constant 0 : i32
    return %arg0, %arg1, %c0_i32 : i32, i32, i32
  }
}

</mosaic_0001>

<llo_original>
// kernel: tpu_custom_call.1
$region0: #{tpu_custom_call.1}
  #allocation0 [shape = 'u32[]', space=smem, size = 0x4, offset = 0x4, fixed_abs, tag = 'smem constant byte address 0x4 - core index']
  #allocation1 [shape = 'u32[72,128]{1,0:T(1,128)}', space=vmem, size = 0x9000, scoped, tag = 'internal scratch']
  %s0 = inlined_call_operand.hbm [shape: f32[2,16,128], index: 0, kind: input, shape index: {}]
  %s1 = inlined_call_operand.hbm [shape: f32[2,16,128], index: 1, kind: input, shape index: {}]
  %s2 = inlined_call_operand.hbm [shape: f32[2,16,128], index: 2, kind: input, shape index: {}]
  %s3 = inlined_call_operand.hbm [shape: f32[128,128], index: 3, kind: input, shape index: {}]
  %s4 = inlined_call_operand.hbm [shape: f32[1,128], index: 4, kind: input, shape index: {}]
  %s5 = inlined_call_operand.hbm [shape: f32[128,256], index: 5, kind: input, shape index: {}]
  %s6 = inlined_call_operand.vmem [shape: f32[1,256], index: 6, kind: input, shape index: {}]
  %s7 = inlined_call_operand.hbm [shape: f32[128,128], index: 7, kind: input, shape index: {}]
  %s8 = inlined_call_operand.vmem [shape: f32[1,128], index: 8, kind: input, shape index: {}]
  %s9 = inlined_call_operand.hbm [shape: f32[128,128], index: 9, kind: input, shape index: {}]
  %s10 = inlined_call_operand.vmem [shape: f32[1,128], index: 10, kind: input, shape index: {}]
  %s11 = inlined_call_operand.hbm [shape: f32[128,256], index: 11, kind: input, shape index: {}]
  %s12 = inlined_call_operand.vmem [shape: f32[1,256], index: 12, kind: input, shape index: {}]
  %s13 = inlined_call_operand.hbm [shape: f32[128,128], index: 13, kind: input, shape index: {}]
  %s14 = inlined_call_operand.vmem [shape: f32[1,128], index: 14, kind: input, shape index: {}]
  %s15 = inlined_call_operand.hbm [shape: f32[128,256], index: 15, kind: input, shape index: {}]
  %s16 = inlined_call_operand.vmem [shape: f32[1,256], index: 16, kind: input, shape index: {}]
  %s17 = inlined_call_operand.hbm [shape: f32[256,128], index: 17, kind: input, shape index: {}]
  %s18 = inlined_call_operand.vmem [shape: f32[1,128], index: 18, kind: input, shape index: {}]
  %s19 = inlined_call_operand.vmem [shape: f32[1,128], index: 19, kind: input, shape index: {}]
  %s20 = inlined_call_operand.vmem [shape: f32[1,128], index: 20, kind: input, shape index: {}]
  %s21 = inlined_call_operand.vmem [shape: f32[1,128], index: 21, kind: input, shape index: {}]
  %s22 = inlined_call_operand.vmem [shape: f32[1,128], index: 22, kind: input, shape index: {}]
  %s23 = inlined_call_operand.vmem [shape: f32[1,128], index: 23, kind: input, shape index: {}]
  %s24 = inlined_call_operand.vmem [shape: f32[1,128], index: 24, kind: input, shape index: {}]
  %s25 = inlined_call_operand.hbm [shape: f32[2,16,128], index: 25, kind: output, shape index: {}]
  %s26 = sld [smem:[#allocation0]]
  $region181: #{tpu_custom_call.1} parent=0
    _
  %s28 = ssub.s32 1, %s26
  %s29 = scalar_select 0, %s28, %s26
  $region1: #{tpu_custom_call.1} parent=0
    #allocation2 [shape = 'u8[16384]{0}', space=vmem, size = 0x4000, scoped, tag = 'input window, operand 0']
    #allocation3 [shape = 's32[2]{0}', space=sflag, size = 0x8, scoped, tag = 'scoped memory for tpu_custom_call.1']
    #allocation4 [shape = 's32[2]{0}', space=sflag, size = 0x8, scoped, tag = 'scoped memory for tpu_custom_call.1']
    #allocation5 [shape = 'u8[16384]{0}', space=vmem, size = 0x4000, scoped, tag = 'input window, operand 1']
    #allocation6 [shape = 's32[2]{0}', space=sflag, size = 0x8, scoped, tag = 'scoped memory for tpu_custom_call.1']
    #allocation7 [shape = 'u8[16384]{0}', space=vmem, size = 0x4000, scoped, tag = 'input window, operand 2']
    #allocation8 [shape = 'u8[65536]{0}', space=vmem, size = 0x10000, scoped, tag = 'input window, operand 3, single buffered']
    #allocation9 [shape = 's32[1]{0}', space=sflag, size = 0x4, scoped, tag = 'scoped memory for tpu_custom_call.1']
    #allocation10 [shape = 'u8[512]{0}', space=vmem, size = 0x400, scoped, tag = 'input window, operand 4, single buffered']
    #allocation11 [shape = 'u8[131072]{0}', space=vmem, size = 0x20000, scoped, tag = 'input window, operand 5, single buffered']
    #allocation12 [shape = 's32[1]{0}', space=sflag, size = 0x4, scoped, tag = 'scoped memory for tpu_custom_call.1']
    #allocation13 [shape = 'u8[65536]{0}', space=vmem, size = 0x10000, scoped, tag = 'input window, operand 7, single buffered']
    #allocation14 [shape = 'u8[65536]{0}', space=vmem, size = 0x10000, scoped, tag = 'input window, operand 9, single buffered']
    #allocation15 [shape = 's32[1]{0}', space=sflag, size = 0x4, scoped, tag = 'scoped memory for tpu_custom_call.1']
    #allocation16 [shape = 'u8[131072]{0}', space=vmem, size = 0x20000, scoped, tag = 'input window, operand 11, single buffered']
    #allocation17 [shape = 'u8[65536]{0}', space=vmem, size = 0x10000, scoped, tag = 'input window, operand 13, single buffered']
    #allocation18 [shape = 's32[1]{0}', space=sflag, size = 0x4, scoped, tag = 'scoped memory for tpu_custom_call.1']
    #allocation19 [shape = 'u8[131072]{0}', space=vmem, size = 0x20000, scoped, tag = 'input window, operand 15, single buffered']
    #allocation20 [shape = 'u8[131072]{0}', space=vmem, size = 0x20000, scoped, tag = 'input window, operand 17, single buffered']
    #allocation21 [shape = 's32[1]{0}', space=sflag, size = 0x4, scoped, tag = 'scoped memory for tpu_custom_call.1']
    #allocation22 [shape = 'u8[16384]{0}', space=vmem, size = 0x4000, scoped, tag = 'output window, operand 0']
    %30 = vsyncpa [#allocation3], 0
    %s31 = scalar_lea.sflag [#allocation3], 1
    %32 = vsyncpa %s31, 0
    %33 = vsyncpa [#allocation6], 0
    %s34 = scalar_lea.sflag [#allocation6], 1
    %35 = vsyncpa %s34, 0
    %36 = vsyncpa [#allocation9], 0
    %37 = vsyncpa [#allocation12], 0
    %38 = vsyncpa [#allocation15], 0
    %39 = vsyncpa [#allocation18], 0
    %40 = vsyncpa [#allocation21], 0
    %41 = vsyncpa [#allocation4], 0
    %s42 = scalar_lea.sflag [#allocation4], 1
    %43 = vsyncpa %s42, 0
    loop: start=0, step=1, limit=4
    $region2: #{tpu_custom_call.1} parent=1 // loop_pre_header
      _
    $region3: #{tpu_custom_call.1} parent=1 // loop_header
      %s45 = sphi 0, %s49
      %p46 = scmp.ge.s32.totalorder %s45, 4
      %s52 = sphi 0, %s64
      %s53 = sphi 0, %s60
      %s54 = sphi 0, %s52
      %s55 = sphi 0, %s53
      %s56 = sphi 0, %s54
      %s57 = sphi 0, %s55
      %s69 = sphi 0, %s71
      %s72 = sphi 0, %s69
      %s73 = sphi 0, %s72
      %s89 = sphi 0, %s73
      %s95 = sphi 0, %s97
      %s98 = sphi 0, %s95
      %s99 = sphi 0, %s98
      %s115 = sphi 0, %s99
      %s121 = sphi 0, %s123
      %s124 = sphi 0, %s121
      %s125 = sphi 0, %s124
      %s141 = sphi 0, %s125
      %s145 = sphi 0, %s145
      %s147 = sphi 0, %s145
      %s148 = sphi 0, %s147
      %s162 = sphi 0, %s148
      %s166 = sphi 0, %s166
      %s168 = sphi 0, %s166
      %s169 = sphi 0, %s168
      %s183 = sphi 0, %s169
      %s187 = sphi 0, %s187
      %s189 = sphi 0, %s187
      %s190 = sphi 0, %s189
      %s204 = sphi 0, %s190
      %s208 = sphi 0, %s208
      %s210 = sphi 0, %s208
      %s211 = sphi 0, %s210
      %s225 = sphi 0, %s211
      %s229 = sphi 0, %s229
      %s231 = sphi 0, %s229
      %s232 = sphi 0, %s231
      %s246 = sphi 0, %s232
      %s250 = sphi 0, %s250
      %s252 = sphi 0, %s250
      %s253 = sphi 0, %s252
      %s267 = sphi 0, %s253
      %s271 = sphi 0, %s271
      %s273 = sphi 0, %s271
      %s274 = sphi 0, %s273
      %s288 = sphi 0, %s274
      %s292 = sphi 0, %s292
      %s294 = sphi 0, %s292
      %s295 = sphi 0, %s294
      %s309 = sphi 0, %s295
      %s313 = sphi 0, %s313
      %s315 = sphi 0, %s313
      %s316 = sphi 0, %s315
      %s330 = sphi 0, %s316
      %s334 = sphi 0, %s334
      %s336 = sphi 0, %s334
      %s337 = sphi 0, %s336
      %s351 = sphi 0, %s337
      %s355 = sphi 0, %s355
      %s357 = sphi 0, %s355
      %s358 = sphi 0, %s357
      %s372 = sphi 0, %s358
      %s376 = sphi 0, %s376
      %s378 = sphi 0, %s376
      %s379 = sphi 0, %s378
      %s393 = sphi 0, %s379
      %s397 = sphi 0, %s397
      %s399 = sphi 0, %s397
      %s400 = sphi 0, %s399
      %s414 = sphi 0, %s400
      %s418 = sphi 0, %s418
      %s420 = sphi 0, %s418
      %s421 = sphi 0, %s420
      %s435 = sphi 0, %s421
      %s439 = sphi 0, %s439
      %s441 = sphi 0, %s439
      %s442 = sphi 0, %s441
      %s456 = sphi 0, %s442
      %s460 = sphi 0, %s460
      %s462 = sphi 0, %s460
      %s463 = sphi 0, %s462
      %s477 = sphi 0, %s463
      %s481 = sphi 0, %s481
      %s483 = sphi 0, %s481
      %s484 = sphi 0, %s483
      %s498 = sphi 0, %s484
      %s502 = sphi 0, %s502
      %s504 = sphi 0, %s502
      %s505 = sphi 0, %s504
      %s519 = sphi 0, %s505
      %s523 = sphi 0, %s523
      %s525 = sphi 0, %s523
      %s526 = sphi 0, %s525
      %s540 = sphi 0, %s526
      %s544 = sphi 0, %s544
      %s546 = sphi 0, %s544
      %s547 = sphi 0, %s546
      %s561 = sphi 0, %s547
      %s565 = sphi 0, %s565
      %s567 = sphi 0, %s565
      %s568 = sphi 0, %s567
      %s582 = sphi 0, %s568
      %s586 = sphi 0, %s586
      %s588 = sphi 0, %s586
      %s589 = sphi 0, %s588
      %s603 = sphi 0, %s589
      %s611 = sphi 0, %s613
      %s614 = sphi 0, %s611
      %s615 = sphi 0, %s614
      %s631 = sphi 0, %s615
    $region4: #{tpu_custom_call.1} parent=1 // loop_header_branch
      %48 = sbr.rel (%p46) target = $region8
    $region5: #{tpu_custom_call.1} parent=1 // loop_body
      %s50 = ssub.s32 %s45, 1
      %s51 = ssub.s32 %s45, 2
      %s58 = sadd.s32 1, %s53
      %p59 = scmp.ge.s32.totalorder %s58, 1
      %s60 = scalar_select %p59, 0, %s58
      %s61 = sadd.s32 1, %s52
      %s62 = scalar_select %p59, %s61, %s52
      %p63 = scmp.ge.s32.totalorder %s62, 2
      %s64 = scalar_select %p63, 0, %s62
      %s65 = ssub.s32 %s52, %s64
      %s66 = ssub.s32 %s53, %s60
      %s67 = sor.u32 %s65, %s66
      %p68 = scmp.eq.s32.totalorder %s67, 0
      %s70 = sadd.s32 %s69, 1
      %s71 = scalar_select %p68, %s69, %s70
      %p74 = pneg %p68
      %p75 = scmp.eq.s32.totalorder %s45, 1
      %p76 = por %p74, %p75
      %p77 = scmp.ne.s32.totalorder %s69, %s72
      %p78 = scmp.eq.s32.totalorder %s45, 0
      %p79 = por %p77, %p78
      %p80 = scmp.ne.s32.totalorder %s69, %s72
      %p81 = scmp.eq.s32.totalorder %s50, 1
      %p82 = por %p80, %p81
      %p83 = scmp.ne.s32.totalorder %s72, %s73
      %p84 = scmp.eq.s32.totalorder %s50, 0
      %p85 = por %p83, %p84
      %p86 = scmp.ne.s32.totalorder %s72, %s73
      %p87 = scmp.eq.s32.totalorder %s51, 1
      %p88 = por %p86, %p87
      %p90 = scmp.ne.s32.totalorder %s73, %s89
      %p91 = scmp.eq.s32.totalorder %s51, 0
      %p92 = por %p90, %p91
      %s93 = ssub.s32 %s52, %s64
      %p94 = scmp.eq.s32.totalorder %s93, 0
      %s96 = sadd.s32 %s95, 1
      %s97 = scalar_select %p94, %s95, %s96
      %p100 = pneg %p94
      %p101 = scmp.eq.s32.totalorder %s45, 1
      %p102 = por %p100, %p101
      %p103 = scmp.ne.s32.totalorder %s95, %s98
      %p104 = scmp.eq.s32.totalorder %s45, 0
      %p105 = por %p103, %p104
      %p106 = scmp.ne.s32.totalorder %s95, %s98
      %p107 = scmp.eq.s32.totalorder %s50, 1
      %p108 = por %p106, %p107
      %p109 = scmp.ne.s32.totalorder %s98, %s99
      %p110 = scmp.eq.s32.totalorder %s50, 0
      %p111 = por %p109, %p110
      %p112 = scmp.ne.s32.totalorder %s98, %s99
      %p113 = scmp.eq.s32.totalorder %s51, 1
      %p114 = por %p112, %p113
      %p116 = scmp.ne.s32.totalorder %s99, %s115
      %p117 = scmp.eq.s32.totalorder %s51, 0
      %p118 = por %p116, %p117
      %s119 = ssub.s32 %s52, %s64
      %p120 = scmp.eq.s32.totalorder %s119, 0
      %s122 = sadd.s32 %s121, 1
      %s123 = scalar_select %p120, %s121, %s122
      %p126 = pneg %p120
      %p127 = scmp.eq.s32.totalorder %s45, 1
      %p128 = por %p126, %p127
      %p129 = scmp.ne.s32.totalorder %s121, %s124
      %p130 = scmp.eq.s32.totalorder %s45, 0
      %p131 = por %p129, %p130
      %p132 = scmp.ne.s32.totalorder %s121, %s124
      %p133 = scmp.eq.s32.totalorder %s50, 1
      %p134 = por %p132, %p133
      %p135 = scmp.ne.s32.totalorder %s124, %s125
      %p136 = scmp.eq.s32.totalorder %s50, 0
      %p137 = por %p135, %p136
      %p138 = scmp.ne.s32.totalorder %s124, %s125
      %p139 = scmp.eq.s32.totalorder %s51, 1
      %p140 = por %p138, %p139
      %p142 = scmp.ne.s32.totalorder %s125, %s141
      %p143 = scmp.eq.s32.totalorder %s51, 0
      %p144 = por %p142, %p143
      %s146 = sadd.s32 %s145, 1
      %p149 = scmp.eq.s32.totalorder %s45, 1
      %p150 = scmp.ne.s32.totalorder %s145, %s147
      %p151 = scmp.eq.s32.totalorder %s45, 0
      %p152 = por %p150, %p151
      %p153 = scmp.ne.s32.totalorder %s145, %s147
      %p154 = scmp.eq.s32.totalorder %s50, 1
      %p155 = por %p153, %p154
      %p156 = scmp.ne.s32.totalorder %s147, %s148
      %p157 = scmp.eq.s32.totalorder %s50, 0
      %p158 = por %p156, %p157
      %p159 = scmp.ne.s32.totalorder %s147, %s148
      %p160 = scmp.eq.s32.totalorder %s51, 1
      %p161 = por %p159, %p160
      %p163 = scmp.ne.s32.totalorder %s148, %s162
      %p164 = scmp.eq.s32.totalorder %s51, 0
      %p165 = por %p163, %p164
      %s167 = sadd.s32 %s166, 1
      %p170 = scmp.eq.s32.totalorder %s45, 1
      %p171 = scmp.ne.s32.totalorder %s166, %s168
      %p172 = scmp.eq.s32.totalorder %s45, 0
      %p173 = por %p171, %p172
      %p174 = scmp.ne.s32.totalorder %s166, %s168
      %p175 = scmp.eq.s32.totalorder %s50, 1
      %p176 = por %p174, %p175
      %p177 = scmp.ne.s32.totalorder %s168, %s169
      %p178 = scmp.eq.s32.totalorder %s50, 0
      %p179 = por %p177, %p178
      %p180 = scmp.ne.s32.totalorder %s168, %s169
      %p181 = scmp.eq.s32.totalorder %s51, 1
      %p182 = por %p180, %p181
      %p184 = scmp.ne.s32.totalorder %s169, %s183
      %p185 = scmp.eq.s32.totalorder %s51, 0
      %p186 = por %p184, %p185
      %s188 = sadd.s32 %s187, 1
      %p191 = scmp.eq.s32.totalorder %s45, 1
      %p192 = scmp.ne.s32.totalorder %s187, %s189
      %p193 = scmp.eq.s32.totalorder %s45, 0
      %p194 = por %p192, %p193
      %p195 = scmp.ne.s32.totalorder %s187, %s189
      %p196 = scmp.eq.s32.totalorder %s50, 1
      %p197 = por %p195, %p196
      %p198 = scmp.ne.s32.totalorder %s189, %s190
      %p199 = scmp.eq.s32.totalorder %s50, 0
      %p200 = por %p198, %p199
      %p201 = scmp.ne.s32.totalorder %s189, %s190
      %p202 = scmp.eq.s32.totalorder %s51, 1
      %p203 = por %p201, %p202
      %p205 = scmp.ne.s32.totalorder %s190, %s204
      %p206 = scmp.eq.s32.totalorder %s51, 0
      %p207 = por %p205, %p206
      %s209 = sadd.s32 %s208, 1
      %p212 = scmp.eq.s32.totalorder %s45, 1
      %p213 = scmp.ne.s32.totalorder %s208, %s210
      %p214 = scmp.eq.s32.totalorder %s45, 0
      %p215 = por %p213, %p214
      %p216 = scmp.ne.s32.totalorder %s208, %s210
      %p217 = scmp.eq.s32.totalorder %s50, 1
      %p218 = por %p216, %p217
      %p219 = scmp.ne.s32.totalorder %s210, %s211
      %p220 = scmp.eq.s32.totalorder %s50, 0
      %p221 = por %p219, %p220
      %p222 = scmp.ne.s32.totalorder %s210, %s211
      %p223 = scmp.eq.s32.totalorder %s51, 1
      %p224 = por %p222, %p223
      %p226 = scmp.ne.s32.totalorder %s211, %s225
      %p227 = scmp.eq.s32.totalorder %s51, 0
      %p228 = por %p226, %p227
      %s230 = sadd.s32 %s229, 1
      %p233 = scmp.eq.s32.totalorder %s45, 1
      %p234 = scmp.ne.s32.totalorder %s229, %s231
      %p235 = scmp.eq.s32.totalorder %s45, 0
      %p236 = por %p234, %p235
      %p237 = scmp.ne.s32.totalorder %s229, %s231
      %p238 = scmp.eq.s32.totalorder %s50, 1
      %p239 = por %p237, %p238
      %p240 = scmp.ne.s32.totalorder %s231, %s232
      %p241 = scmp.eq.s32.totalorder %s50, 0
      %p242 = por %p240, %p241
      %p243 = scmp.ne.s32.totalorder %s231, %s232
      %p244 = scmp.eq.s32.totalorder %s51, 1
      %p245 = por %p243, %p244
      %p247 = scmp.ne.s32.totalorder %s232, %s246
      %p248 = scmp.eq.s32.totalorder %s51, 0
      %p249 = por %p247, %p248
      %s251 = sadd.s32 %s250, 1
      %p254 = scmp.eq.s32.totalorder %s45, 1
      %p255 = scmp.ne.s32.totalorder %s250, %s252
      %p256 = scmp.eq.s32.totalorder %s45, 0
      %p257 = por %p255, %p256
      %p258 = scmp.ne.s32.totalorder %s250, %s252
      %p259 = scmp.eq.s32.totalorder %s50, 1
      %p260 = por %p258, %p259
      %p261 = scmp.ne.s32.totalorder %s252, %s253
      %p262 = scmp.eq.s32.totalorder %s50, 0
      %p263 = por %p261, %p262
      %p264 = scmp.ne.s32.totalorder %s252, %s253
      %p265 = scmp.eq.s32.totalorder %s51, 1
      %p266 = por %p264, %p265
      %p268 = scmp.ne.s32.totalorder %s253, %s267
      %p269 = scmp.eq.s32.totalorder %s51, 0
      %p270 = por %p268, %p269
      %s272 = sadd.s32 %s271, 1
      %p275 = scmp.eq.s32.totalorder %s45, 1
      %p276 = scmp.ne.s32.totalorder %s271, %s273
      %p277 = scmp.eq.s32.totalorder %s45, 0
      %p278 = por %p276, %p277
      %p279 = scmp.ne.s32.totalorder %s271, %s273
      %p280 = scmp.eq.s32.totalorder %s50, 1
      %p281 = por %p279, %p280
      %p282 = scmp.ne.s32.totalorder %s273, %s274
      %p283 = scmp.eq.s32.totalorder %s50, 0
      %p284 = por %p282, %p283
      %p285 = scmp.ne.s32.totalorder %s273, %s274
      %p286 = scmp.eq.s32.totalorder %s51, 1
      %p287 = por %p285, %p286
      %p289 = scmp.ne.s32.totalorder %s274, %s288
      %p290 = scmp.eq.s32.totalorder %s51, 0
      %p291 = por %p289, %p290
      %s293 = sadd.s32 %s292, 1
      %p296 = scmp.eq.s32.totalorder %s45, 1
      %p297 = scmp.ne.s32.totalorder %s292, %s294
      %p298 = scmp.eq.s32.totalorder %s45, 0
      %p299 = por %p297, %p298
      %p300 = scmp.ne.s32.totalorder %s292, %s294
      %p301 = scmp.eq.s32.totalorder %s50, 1
      %p302 = por %p300, %p301
      %p303 = scmp.ne.s32.totalorder %s294, %s295
      %p304 = scmp.eq.s32.totalorder %s50, 0
      %p305 = por %p303, %p304
      %p306 = scmp.ne.s32.totalorder %s294, %s295
      %p307 = scmp.eq.s32.totalorder %s51, 1
      %p308 = por %p306, %p307
      %p310 = scmp.ne.s32.totalorder %s295, %s309
      %p311 = scmp.eq.s32.totalorder %s51, 0
      %p312 = por %p310, %p311
      %s314 = sadd.s32 %s313, 1
      %p317 = scmp.eq.s32.totalorder %s45, 1
      %p318 = scmp.ne.s32.totalorder %s313, %s315
      %p319 = scmp.eq.s32.totalorder %s45, 0
      %p320 = por %p318, %p319
      %p321 = scmp.ne.s32.totalorder %s313, %s315
      %p322 = scmp.eq.s32.totalorder %s50, 1
      %p323 = por %p321, %p322
      %p324 = scmp.ne.s32.totalorder %s315, %s316
      %p325 = scmp.eq.s32.totalorder %s50, 0
      %p326 = por %p324, %p325
      %p327 = scmp.ne.s32.totalorder %s315, %s316
      %p328 = scmp.eq.s32.totalorder %s51, 1
      %p329 = por %p327, %p328
      %p331 = scmp.ne.s32.totalorder %s316, %s330
      %p332 = scmp.eq.s32.totalorder %s51, 0
      %p333 = por %p331, %p332
      %s335 = sadd.s32 %s334, 1
      %p338 = scmp.eq.s32.totalorder %s45, 1
      %p339 = scmp.ne.s32.totalorder %s334, %s336
      %p340 = scmp.eq.s32.totalorder %s45, 0
      %p341 = por %p339, %p340
      %p342 = scmp.ne.s32.totalorder %s334, %s336
      %p343 = scmp.eq.s32.totalorder %s50, 1
      %p344 = por %p342, %p343
      %p345 = scmp.ne.s32.totalorder %s336, %s337
      %p346 = scmp.eq.s32.totalorder %s50, 0
      %p347 = por %p345, %p346
      %p348 = scmp.ne.s32.totalorder %s336, %s337
      %p349 = scmp.eq.s32.totalorder %s51, 1
      %p350 = por %p348, %p349
      %p352 = scmp.ne.s32.totalorder %s337, %s351
      %p353 = scmp.eq.s32.totalorder %s51, 0
      %p354 = por %p352, %p353
      %s356 = sadd.s32 %s355, 1
      %p359 = scmp.eq.s32.totalorder %s45, 1
      %p360 = scmp.ne.s32.totalorder %s355, %s357
      %p361 = scmp.eq.s32.totalorder %s45, 0
      %p362 = por %p360, %p361
      %p363 = scmp.ne.s32.totalorder %s355, %s357
      %p364 = scmp.eq.s32.totalorder %s50, 1
      %p365 = por %p363, %p364
      %p366 = scmp.ne.s32.totalorder %s357, %s358
      %p367 = scmp.eq.s32.totalorder %s50, 0
      %p368 = por %p366, %p367
      %p369 = scmp.ne.s32.totalorder %s357, %s358
      %p370 = scmp.eq.s32.totalorder %s51, 1
      %p371 = por %p369, %p370
      %p373 = scmp.ne.s32.totalorder %s358, %s372
      %p374 = scmp.eq.s32.totalorder %s51, 0
      %p375 = por %p373, %p374
      %s377 = sadd.s32 %s376, 1
      %p380 = scmp.eq.s32.totalorder %s45, 1
      %p381 = scmp.ne.s32.totalorder %s376, %s378
      %p382 = scmp.eq.s32.totalorder %s45, 0
      %p383 = por %p381, %p382
      %p384 = scmp.ne.s32.totalorder %s376, %s378
      %p385 = scmp.eq.s32.totalorder %s50, 1
      %p386 = por %p384, %p385
      %p387 = scmp.ne.s32.totalorder %s378, %s379
      %p388 = scmp.eq.s32.totalorder %s50, 0
      %p389 = por %p387, %p388
      %p390 = scmp.ne.s32.totalorder %s378, %s379
      %p391 = scmp.eq.s32.totalorder %s51, 1
      %p392 = por %p390, %p391
      %p394 = scmp.ne.s32.totalorder %s379, %s393
      %p395 = scmp.eq.s32.totalorder %s51, 0
      %p396 = por %p394, %p395
      %s398 = sadd.s32 %s397, 1
      %p401 = scmp.eq.s32.totalorder %s45, 1
      %p402 = scmp.ne.s32.totalorder %s397, %s399
      %p403 = scmp.eq.s32.totalorder %s45, 0
      %p404 = por %p402, %p403
      %p405 = scmp.ne.s32.totalorder %s397, %s399
      %p406 = scmp.eq.s32.totalorder %s50, 1
      %p407 = por %p405, %p406
      %p408 = scmp.ne.s32.totalorder %s399, %s400
      %p409 = scmp.eq.s32.totalorder %s50, 0
      %p410 = por %p408, %p409
      %p411 = scmp.ne.s32.totalorder %s399, %s400
      %p412 = scmp.eq.s32.totalorder %s51, 1
      %p413 = por %p411, %p412
      %p415 = scmp.ne.s32.totalorder %s400, %s414
      %p416 = scmp.eq.s32.totalorder %s51, 0
      %p417 = por %p415, %p416
      %s419 = sadd.s32 %s418, 1
      %p422 = scmp.eq.s32.totalorder %s45, 1
      %p423 = scmp.ne.s32.totalorder %s418, %s420
      %p424 = scmp.eq.s32.totalorder %s45, 0
      %p425 = por %p423, %p424
      %p426 = scmp.ne.s32.totalorder %s418, %s420
      %p427 = scmp.eq.s32.totalorder %s50, 1
      %p428 = por %p426, %p427
      %p429 = scmp.ne.s32.totalorder %s420, %s421
      %p430 = scmp.eq.s32.totalorder %s50, 0
      %p431 = por %p429, %p430
      %p432 = scmp.ne.s32.totalorder %s420, %s421
      %p433 = scmp.eq.s32.totalorder %s51, 1
      %p434 = por %p432, %p433
      %p436 = scmp.ne.s32.totalorder %s421, %s435
      %p437 = scmp.eq.s32.totalorder %s51, 0
      %p438 = por %p436, %p437
      %s440 = sadd.s32 %s439, 1
      %p443 = scmp.eq.s32.totalorder %s45, 1
      %p444 = scmp.ne.s32.totalorder %s439, %s441
      %p445 = scmp.eq.s32.totalorder %s45, 0
      %p446 = por %p444, %p445
      %p447 = scmp.ne.s32.totalorder %s439, %s441
      %p448 = scmp.eq.s32.totalorder %s50, 1
      %p449 = por %p447, %p448
      %p450 = scmp.ne.s32.totalorder %s441, %s442
      %p451 = scmp.eq.s32.totalorder %s50, 0
      %p452 = por %p450, %p451
      %p453 = scmp.ne.s32.totalorder %s441, %s442
      %p454 = scmp.eq.s32.totalorder %s51, 1
      %p455 = por %p453, %p454
      %p457 = scmp.ne.s32.totalorder %s442, %s456
      %p458 = scmp.eq.s32.totalorder %s51, 0
      %p459 = por %p457, %p458
      %s461 = sadd.s32 %s460, 1
      %p464 = scmp.eq.s32.totalorder %s45, 1
      %p465 = scmp.ne.s32.totalorder %s460, %s462
      %p466 = scmp.eq.s32.totalorder %s45, 0
      %p467 = por %p465, %p466
      %p468 = scmp.ne.s32.totalorder %s460, %s462
      %p469 = scmp.eq.s32.totalorder %s50, 1
      %p470 = por %p468, %p469
      %p471 = scmp.ne.s32.totalorder %s462, %s463
      %p472 = scmp.eq.s32.totalorder %s50, 0
      %p473 = por %p471, %p472
      %p474 = scmp.ne.s32.totalorder %s462, %s463
      %p475 = scmp.eq.s32.totalorder %s51, 1
      %p476 = por %p474, %p475
      %p478 = scmp.ne.s32.totalorder %s463, %s477
      %p479 = scmp.eq.s32.totalorder %s51, 0
      %p480 = por %p478, %p479
      %s482 = sadd.s32 %s481, 1
      %p485 = scmp.eq.s32.totalorder %s45, 1
      %p486 = scmp.ne.s32.totalorder %s481, %s483
      %p487 = scmp.eq.s32.totalorder %s45, 0
      %p488 = por %p486, %p487
      %p489 = scmp.ne.s32.totalorder %s481, %s483
      %p490 = scmp.eq.s32.totalorder %s50, 1
      %p491 = por %p489, %p490
      %p492 = scmp.ne.s32.totalorder %s483, %s484
      %p493 = scmp.eq.s32.totalorder %s50, 0
      %p494 = por %p492, %p493
      %p495 = scmp.ne.s32.totalorder %s483, %s484
      %p496 = scmp.eq.s32.totalorder %s51, 1
      %p497 = por %p495, %p496
      %p499 = scmp.ne.s32.totalorder %s484, %s498
      %p500 = scmp.eq.s32.totalorder %s51, 0
      %p501 = por %p499, %p500
      %s503 = sadd.s32 %s502, 1
      %p506 = scmp.eq.s32.totalorder %s45, 1
      %p507 = scmp.ne.s32.totalorder %s502, %s504
      %p508 = scmp.eq.s32.totalorder %s45, 0
      %p509 = por %p507, %p508
      %p510 = scmp.ne.s32.totalorder %s502, %s504
      %p511 = scmp.eq.s32.totalorder %s50, 1
      %p512 = por %p510, %p511
      %p513 = scmp.ne.s32.totalorder %s504, %s505
      %p514 = scmp.eq.s32.totalorder %s50, 0
      %p515 = por %p513, %p514
      %p516 = scmp.ne.s32.totalorder %s504, %s505
      %p517 = scmp.eq.s32.totalorder %s51, 1
      %p518 = por %p516, %p517
      %p520 = scmp.ne.s32.totalorder %s505, %s519
      %p521 = scmp.eq.s32.totalorder %s51, 0
      %p522 = por %p520, %p521
      %s524 = sadd.s32 %s523, 1
      %p527 = scmp.eq.s32.totalorder %s45, 1
      %p528 = scmp.ne.s32.totalorder %s523, %s525
      %p529 = scmp.eq.s32.totalorder %s45, 0
      %p530 = por %p528, %p529
      %p531 = scmp.ne.s32.totalorder %s523, %s525
      %p532 = scmp.eq.s32.totalorder %s50, 1
      %p533 = por %p531, %p532
      %p534 = scmp.ne.s32.totalorder %s525, %s526
      %p535 = scmp.eq.s32.totalorder %s50, 0
      %p536 = por %p534, %p535
      %p537 = scmp.ne.s32.totalorder %s525, %s526
      %p538 = scmp.eq.s32.totalorder %s51, 1
      %p539 = por %p537, %p538
      %p541 = scmp.ne.s32.totalorder %s526, %s540
      %p542 = scmp.eq.s32.totalorder %s51, 0
      %p543 = por %p541, %p542
      %s545 = sadd.s32 %s544, 1
      %p548 = scmp.eq.s32.totalorder %s45, 1
      %p549 = scmp.ne.s32.totalorder %s544, %s546
      %p550 = scmp.eq.s32.totalorder %s45, 0
      %p551 = por %p549, %p550
      %p552 = scmp.ne.s32.totalorder %s544, %s546
      %p553 = scmp.eq.s32.totalorder %s50, 1
      %p554 = por %p552, %p553
      %p555 = scmp.ne.s32.totalorder %s546, %s547
      %p556 = scmp.eq.s32.totalorder %s50, 0
      %p557 = por %p555, %p556
      %p558 = scmp.ne.s32.totalorder %s546, %s547
      %p559 = scmp.eq.s32.totalorder %s51, 1
      %p560 = por %p558, %p559
      %p562 = scmp.ne.s32.totalorder %s547, %s561
      %p563 = scmp.eq.s32.totalorder %s51, 0
      %p564 = por %p562, %p563
      %s566 = sadd.s32 %s565, 1
      %p569 = scmp.eq.s32.totalorder %s45, 1
      %p570 = scmp.ne.s32.totalorder %s565, %s567
      %p571 = scmp.eq.s32.totalorder %s45, 0
      %p572 = por %p570, %p571
      %p573 = scmp.ne.s32.totalorder %s565, %s567
      %p574 = scmp.eq.s32.totalorder %s50, 1
      %p575 = por %p573, %p574
      %p576 = scmp.ne.s32.totalorder %s567, %s568
      %p577 = scmp.eq.s32.totalorder %s50, 0
      %p578 = por %p576, %p577
      %p579 = scmp.ne.s32.totalorder %s567, %s568
      %p580 = scmp.eq.s32.totalorder %s51, 1
      %p581 = por %p579, %p580
      %p583 = scmp.ne.s32.totalorder %s568, %s582
      %p584 = scmp.eq.s32.totalorder %s51, 0
      %p585 = por %p583, %p584
      %s587 = sadd.s32 %s586, 1
      %p590 = scmp.eq.s32.totalorder %s45, 1
      %p591 = scmp.ne.s32.totalorder %s586, %s588
      %p592 = scmp.eq.s32.totalorder %s45, 0
      %p593 = por %p591, %p592
      %p594 = scmp.ne.s32.totalorder %s586, %s588
      %p595 = scmp.eq.s32.totalorder %s50, 1
      %p596 = por %p594, %p595
      %p597 = scmp.ne.s32.totalorder %s588, %s589
      %p598 = scmp.eq.s32.totalorder %s50, 0
      %p599 = por %p597, %p598
      %p600 = scmp.ne.s32.totalorder %s588, %s589
      %p601 = scmp.eq.s32.totalorder %s51, 1
      %p602 = por %p600, %p601
      %p604 = scmp.ne.s32.totalorder %s589, %s603
      %p605 = scmp.eq.s32.totalorder %s51, 0
      %p606 = por %p604, %p605
      %s607 = ssub.s32 %s52, %s64
      %s608 = ssub.s32 %s53, %s60
      %s609 = sor.u32 %s607, %s608
      %p610 = scmp.eq.s32.totalorder %s609, 0
      %s612 = sadd.s32 %s611, 1
      %s613 = scalar_select %p610, %s611, %s612
      %p616 = pneg %p610
      %p617 = scmp.eq.s32.totalorder %s45, 1
      %p618 = por %p616, %p617
      %p619 = scmp.ne.s32.totalorder %s611, %s614
      %p620 = scmp.eq.s32.totalorder %s45, 0
      %p621 = por %p619, %p620
      %p622 = scmp.ne.s32.totalorder %s611, %s614
      %p623 = scmp.eq.s32.totalorder %s50, 1
      %p624 = por %p622, %p623
      %p625 = scmp.ne.s32.totalorder %s614, %s615
      %p626 = scmp.eq.s32.totalorder %s50, 0
      %p627 = por %p625, %p626
      %p628 = scmp.ne.s32.totalorder %s614, %s615
      %p629 = scmp.eq.s32.totalorder %s51, 1
      %p630 = por %p628, %p629
      %p632 = scmp.ne.s32.totalorder %s615, %s631
      %p633 = scmp.eq.s32.totalorder %s51, 0
      %p634 = por %p632, %p633
      %p635 = scmp.le.s32.totalorder 1, %s45
      %p636 = scmp.lt.s32.totalorder %s45, 3
      %p637 = pnand %p635, %p636
      %p638 = pneg %p637
      // Predicated region
      $region9: #{tpu_custom_call.1} parent=5 // pred_check
        _
      $region10: #{tpu_custom_call.1} parent=5 // pred_check_branch
        %640 = sbr.rel (%p637) target = $region12
      $region11: #{tpu_custom_call.1} parent=5 // pred_region
        %s641 = ssub.s32 %s45, 1
        // Predicated region
        $region13: #{tpu_custom_call.1} parent=11 // pred_check
          %p642 = pneg %p158
        $region14: #{tpu_custom_call.1} parent=11 // pred_check_branch
          %644 = sbr.rel (%p642) target = $region16
        $region15: #{tpu_custom_call.1} parent=11 // pred_region
          %646 = vsyncadd [#allocation9], 0
          %s647 = sshll.u32 %s3, 4
          %s648 = int_to_ptr.hbm [resolvable:$true] %s647
          %s649 = sshll.u32 [#allocation8], 4
          %s650 = int_to_ptr.vmem [resolvable:$true] %s649
          %655 = dma.hbm_to_vmem [thread:$0]  %s648, 2048, %s650, [#allocation9], 128, 128, 8
        $region16: #{tpu_custom_call.1} parent=11 // pred_fallthru
          _
        // Predicated region
        $region17: #{tpu_custom_call.1} parent=11 // pred_check
          %p656 = pneg %p179
        $region18: #{tpu_custom_call.1} parent=11 // pred_check_branch
          %658 = sbr.rel (%p656) target = $region20
        $region19: #{tpu_custom_call.1} parent=11 // pred_region
          %660 = vsyncadd [#allocation9], 0
          %s662 = sshll.u32 %s4, 4
          %s663 = int_to_ptr.hbm [resolvable:$true] %s662
          %s664 = sshll.u32 [#allocation10], 4
          %s665 = int_to_ptr.vmem [resolvable:$true] %s664
          %667 = dma.hbm_to_vmem [thread:$0]  %s663, 16, %s665, [#allocation9]
        $region20: #{tpu_custom_call.1} parent=11 // pred_fallthru
          _
        // Predicated region
        $region21: #{tpu_custom_call.1} parent=11 // pred_check
          %p668 = pneg %p200
        $region22: #{tpu_custom_call.1} parent=11 // pred_check_branch
          %670 = sbr.rel (%p668) target = $region24
        $region23: #{tpu_custom_call.1} parent=11 // pred_region
          %672 = vsyncadd [#allocation12], 0
          %s673 = sshll.u32 %s5, 4
          %s674 = int_to_ptr.hbm [resolvable:$true] %s673
          %s675 = sshll.u32 [#allocation11], 4
          %s676 = int_to_ptr.vmem [resolvable:$true] %s675
          %681 = dma.hbm_to_vmem [thread:$0]  %s674, 4096, %s676, [#allocation12], 256, 256, 16
        $region24: #{tpu_custom_call.1} parent=11 // pred_fallthru
          _
        // Predicated region
        $region25: #{tpu_custom_call.1} parent=11 // pred_check
          %p682 = pneg %p221
        $region26: #{tpu_custom_call.1} parent=11 // pred_check_branch
          %684 = sbr.rel (%p682) target = $region28
        $region27: #{tpu_custom_call.1} parent=11 // pred_region
          _
        $region28: #{tpu_custom_call.1} parent=11 // pred_fallthru
          _
        // Predicated region
        $region29: #{tpu_custom_call.1} parent=11 // pred_check
          %p685 = pneg %p242
        $region30: #{tpu_custom_call.1} parent=11 // pred_check_branch
          %687 = sbr.rel (%p685) target = $region32
        $region31: #{tpu_custom_call.1} parent=11 // pred_region
          %689 = vsyncadd [#allocation12], 0
          %s690 = sshll.u32 %s7, 4
          %s691 = int_to_ptr.hbm [resolvable:$true] %s690
          %s692 = sshll.u32 [#allocation13], 4
          %s693 = int_to_ptr.vmem [resolvable:$true] %s692
          %698 = dma.hbm_to_vmem [thread:$0]  %s691, 2048, %s693, [#allocation12], 128, 128, 8
        $region32: #{tpu_custom_call.1} parent=11 // pred_fallthru
          _
        // Predicated region
        $region33: #{tpu_custom_call.1} parent=11 // pred_check
          %p699 = pneg %p263
        $region34: #{tpu_custom_call.1} parent=11 // pred_check_branch
          %701 = sbr.rel (%p699) target = $region36
        $region35: #{tpu_custom_call.1} parent=11 // pred_region
          _
        $region36: #{tpu_custom_call.1} parent=11 // pred_fallthru
          _
        // Predicated region
        $region37: #{tpu_custom_call.1} parent=11 // pred_check
          %p702 = pneg %p284
        $region38: #{tpu_custom_call.1} parent=11 // pred_check_branch
          %704 = sbr.rel (%p702) target = $region40
        $region39: #{tpu_custom_call.1} parent=11 // pred_region
          %706 = vsyncadd [#allocation15], 0
          %s707 = sshll.u32 %s9, 4
          %s708 = int_to_ptr.hbm [resolvable:$true] %s707
          %s709 = sshll.u32 [#allocation14], 4
          %s710 = int_to_ptr.vmem [resolvable:$true] %s709
          %715 = dma.hbm_to_vmem [thread:$0]  %s708, 2048, %s710, [#allocation15], 128, 128, 8
        $region40: #{tpu_custom_call.1} parent=11 // pred_fallthru
          _
        // Predicated region
        $region41: #{tpu_custom_call.1} parent=11 // pred_check
          %p716 = pneg %p305
        $region42: #{tpu_custom_call.1} parent=11 // pred_check_branch
          %718 = sbr.rel (%p716) target = $region44
        $region43: #{tpu_custom_call.1} parent=11 // pred_region
          _
        $region44: #{tpu_custom_call.1} parent=11 // pred_fallthru
          _
        // Predicated region
        $region45: #{tpu_custom_call.1} parent=11 // pred_check
          %p719 = pneg %p326
        $region46: #{tpu_custom_call.1} parent=11 // pred_check_branch
          %721 = sbr.rel (%p719) target = $region48
        $region47: #{tpu_custom_call.1} parent=11 // pred_region
          %723 = vsyncadd [#allocation15], 0
          %s724 = sshll.u32 %s11, 4
          %s725 = int_to_ptr.hbm [resolvable:$true] %s724
          %s726 = sshll.u32 [#allocation16], 4
          %s727 = int_to_ptr.vmem [resolvable:$true] %s726
          %732 = dma.hbm_to_vmem [thread:$0]  %s725, 4096, %s727, [#allocation15], 256, 256, 16
        $region48: #{tpu_custom_call.1} parent=11 // pred_fallthru
          _
        // Predicated region
        $region49: #{tpu_custom_call.1} parent=11 // pred_check
          %p733 = pneg %p347
        $region50: #{tpu_custom_call.1} parent=11 // pred_check_branch
          %735 = sbr.rel (%p733) target = $region52
        $region51: #{tpu_custom_call.1} parent=11 // pred_region
          _
        $region52: #{tpu_custom_call.1} parent=11 // pred_fallthru
          _
        // Predicated region
        $region53: #{tpu_custom_call.1} parent=11 // pred_check
          %p736 = pneg %p368
        $region54: #{tpu_custom_call.1} parent=11 // pred_check_branch
          %738 = sbr.rel (%p736) target = $region56
        $region55: #{tpu_custom_call.1} parent=11 // pred_region
          %740 = vsyncadd [#allocation18], 0
          %s741 = sshll.u32 %s13, 4
          %s742 = int_to_ptr.hbm [resolvable:$true] %s741
          %s743 = sshll.u32 [#allocation17], 4
          %s744 = int_to_ptr.vmem [resolvable:$true] %s743
          %749 = dma.hbm_to_vmem [thread:$0]  %s742, 2048, %s744, [#allocation18], 128, 128, 8
        $region56: #{tpu_custom_call.1} parent=11 // pred_fallthru
          _
        // Predicated region
        $region57: #{tpu_custom_call.1} parent=11 // pred_check
          %p750 = pneg %p389
        $region58: #{tpu_custom_call.1} parent=11 // pred_check_branch
          %752 = sbr.rel (%p750) target = $region60
        $region59: #{tpu_custom_call.1} parent=11 // pred_region
          _
        $region60: #{tpu_custom_call.1} parent=11 // pred_fallthru
          _
        // Predicated region
        $region61: #{tpu_custom_call.1} parent=11 // pred_check
          %p753 = pneg %p410
        $region62: #{tpu_custom_call.1} parent=11 // pred_check_branch
          %755 = sbr.rel (%p753) target = $region64
        $region63: #{tpu_custom_call.1} parent=11 // pred_region
          %757 = vsyncadd [#allocation18], 0
          %s758 = sshll.u32 %s15, 4
          %s759 = int_to_ptr.hbm [resolvable:$true] %s758
          %s760 = sshll.u32 [#allocation19], 4
          %s761 = int_to_ptr.vmem [resolvable:$true] %s760
          %766 = dma.hbm_to_vmem [thread:$0]  %s759, 4096, %s761, [#allocation18], 256, 256, 16
        $region64: #{tpu_custom_call.1} parent=11 // pred_fallthru
          _
        // Predicated region
        $region65: #{tpu_custom_call.1} parent=11 // pred_check
          %p767 = pneg %p431
        $region66: #{tpu_custom_call.1} parent=11 // pred_check_branch
          %769 = sbr.rel (%p767) target = $region68
        $region67: #{tpu_custom_call.1} parent=11 // pred_region
          _
        $region68: #{tpu_custom_call.1} parent=11 // pred_fallthru
          _
        // Predicated region
        $region69: #{tpu_custom_call.1} parent=11 // pred_check
          %p770 = pneg %p452
        $region70: #{tpu_custom_call.1} parent=11 // pred_check_branch
          %772 = sbr.rel (%p770) target = $region72
        $region71: #{tpu_custom_call.1} parent=11 // pred_region
          %774 = vsyncadd [#allocation21], 0
          %s775 = sshll.u32 %s17, 4
          %s776 = int_to_ptr.hbm [resolvable:$true] %s775
          %s777 = sshll.u32 [#allocation20], 4
          %s778 = int_to_ptr.vmem [resolvable:$true] %s777
          %783 = dma.hbm_to_vmem [thread:$0]  %s776, 4096, %s778, [#allocation21], 128, 128, 8
        $region72: #{tpu_custom_call.1} parent=11 // pred_fallthru
          _
        // Predicated region
        $region73: #{tpu_custom_call.1} parent=11 // pred_check
          %p784 = pneg %p473
        $region74: #{tpu_custom_call.1} parent=11 // pred_check_branch
          %786 = sbr.rel (%p784) target = $region76
        $region75: #{tpu_custom_call.1} parent=11 // pred_region
          _
        $region76: #{tpu_custom_call.1} parent=11 // pred_fallthru
          _
        // Predicated region
        $region77: #{tpu_custom_call.1} parent=11 // pred_check
          %p787 = pneg %p494
        $region78: #{tpu_custom_call.1} parent=11 // pred_check_branch
          %789 = sbr.rel (%p787) target = $region80
        $region79: #{tpu_custom_call.1} parent=11 // pred_region
          _
        $region80: #{tpu_custom_call.1} parent=11 // pred_fallthru
          _
        // Predicated region
        $region81: #{tpu_custom_call.1} parent=11 // pred_check
          %p790 = pneg %p515
        $region82: #{tpu_custom_call.1} parent=11 // pred_check_branch
          %792 = sbr.rel (%p790) target = $region84
        $region83: #{tpu_custom_call.1} parent=11 // pred_region
          _
        $region84: #{tpu_custom_call.1} parent=11 // pred_fallthru
          _
        // Predicated region
        $region85: #{tpu_custom_call.1} parent=11 // pred_check
          %p793 = pneg %p536
        $region86: #{tpu_custom_call.1} parent=11 // pred_check_branch
          %795 = sbr.rel (%p793) target = $region88
        $region87: #{tpu_custom_call.1} parent=11 // pred_region
          _
        $region88: #{tpu_custom_call.1} parent=11 // pred_fallthru
          _
        // Predicated region
        $region89: #{tpu_custom_call.1} parent=11 // pred_check
          %p796 = pneg %p557
        $region90: #{tpu_custom_call.1} parent=11 // pred_check_branch
          %798 = sbr.rel (%p796) target = $region92
        $region91: #{tpu_custom_call.1} parent=11 // pred_region
          _
        $region92: #{tpu_custom_call.1} parent=11 // pred_fallthru
          _
        // Predicated region
        $region93: #{tpu_custom_call.1} parent=11 // pred_check
          %p799 = pneg %p578
        $region94: #{tpu_custom_call.1} parent=11 // pred_check_branch
          %801 = sbr.rel (%p799) target = $region96
        $region95: #{tpu_custom_call.1} parent=11 // pred_region
          _
        $region96: #{tpu_custom_call.1} parent=11 // pred_fallthru
          _
        // Predicated region
        $region97: #{tpu_custom_call.1} parent=11 // pred_check
          %p802 = pneg %p599
        $region98: #{tpu_custom_call.1} parent=11 // pred_check_branch
          %804 = sbr.rel (%p802) target = $region100
        $region99: #{tpu_custom_call.1} parent=11 // pred_region
          _
        $region100: #{tpu_custom_call.1} parent=11 // pred_fallthru
          _
      $region12: #{tpu_custom_call.1} parent=5 // pred_fallthru
        _
      %p805 = scmp.lt.s32.totalorder %s45, 2
      // Predicated region
      $region101: #{tpu_custom_call.1} parent=5 // pred_check
        %p806 = pneg %p805
      $region102: #{tpu_custom_call.1} parent=5 // pred_check_branch
        %808 = sbr.rel (%p806) target = $region104
      $region103: #{tpu_custom_call.1} parent=5 // pred_region
        // Predicated region
        $region105: #{tpu_custom_call.1} parent=103 // pred_check
          %p809 = pneg %p79
        $region106: #{tpu_custom_call.1} parent=103 // pred_check_branch
          %811 = sbr.rel (%p809) target = $region108
        $region107: #{tpu_custom_call.1} parent=103 // pred_region
          %s812 = sand.u32 %s69, 1
          %s813 = scalar_lea.sflag [#allocation3], %s812
          %s814 = sand.u32 %s69, 1
          %s815 = smul.addr %s814, 16
          %s816 = scalar_lea.vmem [#allocation2], %s815
          %s817 = smul.u32 2, %s53
          %819 = vsyncadd %s813, 0
          %s820 = smul.addr %s52, 2
          %s821 = sadd.s32 %s817, %s820
          %s822 = smul.addr %s821, 8
          %s823 = scalar_lea.hbm %s0, %s822
          %s824 = sshll.u32 %s823, 4
          %s825 = int_to_ptr.hbm [resolvable:$true] %s824
          %s826 = sshll.u32 %s816, 4
          %s827 = int_to_ptr.vmem [resolvable:$true] %s826
          %832 = dma.hbm_to_vmem [thread:$0]  %s825, 256, %s827, %s813, 128, 128, 8
        $region108: #{tpu_custom_call.1} parent=103 // pred_fallthru
          _
        // Predicated region
        $region109: #{tpu_custom_call.1} parent=103 // pred_check
          %p833 = pneg %p105
        $region110: #{tpu_custom_call.1} parent=103 // pred_check_branch
          %835 = sbr.rel (%p833) target = $region112
        $region111: #{tpu_custom_call.1} parent=103 // pred_region
          %s836 = sand.u32 %s45, 1
          %s837 = scalar_lea.sflag [#allocation6], %s836
          %s838 = sand.u32 %s95, 1
          %s839 = smul.addr %s838, 16
          %s840 = scalar_lea.vmem [#allocation5], %s839
          %842 = vsyncadd %s837, 0
          %s843 = smul.addr %s52, 2
          %s844 = smul.addr %s843, 8
          %s845 = scalar_lea.hbm %s1, %s844
          %s846 = sshll.u32 %s845, 4
          %s847 = int_to_ptr.hbm [resolvable:$true] %s846
          %s848 = sshll.u32 %s840, 4
          %s849 = int_to_ptr.vmem [resolvable:$true] %s848
          %854 = dma.hbm_to_vmem [thread:$0]  %s847, 256, %s849, %s837, 128, 128, 8
        $region112: #{tpu_custom_call.1} parent=103 // pred_fallthru
          _
        // Predicated region
        $region113: #{tpu_custom_call.1} parent=103 // pred_check
          %p855 = pneg %p131
        $region114: #{tpu_custom_call.1} parent=103 // pred_check_branch
          %857 = sbr.rel (%p855) target = $region116
        $region115: #{tpu_custom_call.1} parent=103 // pred_region
          %s858 = sand.u32 %s45, 1
          %s859 = scalar_lea.sflag [#allocation6], %s858
          %s860 = sand.u32 %s121, 1
          %s861 = smul.addr %s860, 16
          %s862 = scalar_lea.vmem [#allocation7], %s861
          %864 = vsyncadd %s859, 0
          %s865 = smul.addr %s52, 2
          %s866 = smul.addr %s865, 8
          %s867 = scalar_lea.hbm %s2, %s866
          %s868 = sshll.u32 %s867, 4
          %s869 = int_to_ptr.hbm [resolvable:$true] %s868
          %s870 = sshll.u32 %s862, 4
          %s871 = int_to_ptr.vmem [resolvable:$true] %s870
          %876 = dma.hbm_to_vmem [thread:$0]  %s869, 256, %s871, %s859, 128, 128, 8
        $region116: #{tpu_custom_call.1} parent=103 // pred_fallthru
          _
      $region104: #{tpu_custom_call.1} parent=5 // pred_fallthru
        _
      %p877 = scmp.le.s32.totalorder 1, %s45
      %p878 = scmp.lt.s32.totalorder %s45, 3
      %p879 = pnand %p877, %p878
      %p880 = pneg %p879
      // Predicated region
      $region117: #{tpu_custom_call.1} parent=5 // pred_check
        _
      $region118: #{tpu_custom_call.1} parent=5 // pred_check_branch
        %882 = sbr.rel (%p879) target = $region120
      $region119: #{tpu_custom_call.1} parent=5 // pred_region
        %s883 = ssub.s32 %s45, 1
        %s884 = sand.u32 %s72, 1
        %s885 = scalar_lea.sflag [#allocation3], %s884
        %s886 = sand.u32 %s72, 1
        %s887 = smul.addr %s886, 16
        %s888 = scalar_lea.vmem [#allocation2], %s887
        // Predicated region
        $region121: #{tpu_custom_call.1} parent=119 // pred_check
          %p889 = pneg %p85
        $region122: #{tpu_custom_call.1} parent=119 // pred_check_branch
          %891 = sbr.rel (%p889) target = $region124
        $region123: #{tpu_custom_call.1} parent=119 // pred_region
          %893 = dma.done %s885, 256
        $region124: #{tpu_custom_call.1} parent=119 // pred_fallthru
          _
        %s894 = sand.u32 %s50, 1
        %s895 = scalar_lea.sflag [#allocation6], %s894
        %s896 = sand.u32 %s98, 1
        %s897 = smul.addr %s896, 16
        %s898 = scalar_lea.vmem [#allocation5], %s897
        // Predicated region
        $region125: #{tpu_custom_call.1} parent=119 // pred_check
          %p899 = pneg %p111
        $region126: #{tpu_custom_call.1} parent=119 // pred_check_branch
          %901 = sbr.rel (%p899) target = $region128
        $region127: #{tpu_custom_call.1} parent=119 // pred_region
          %903 = dma.done %s895, 256
        $region128: #{tpu_custom_call.1} parent=119 // pred_fallthru
          _
        %s904 = sand.u32 %s50, 1
        %s905 = scalar_lea.sflag [#allocation6], %s904
        %s906 = sand.u32 %s124, 1
        %s907 = smul.addr %s906, 16
        %s908 = scalar_lea.vmem [#allocation7], %s907
        // Predicated region
        $region129: #{tpu_custom_call.1} parent=119 // pred_check
          %p909 = pneg %p137
        $region130: #{tpu_custom_call.1} parent=119 // pred_check_branch
          %911 = sbr.rel (%p909) target = $region132
        $region131: #{tpu_custom_call.1} parent=119 // pred_region
          %913 = dma.done %s905, 256
        $region132: #{tpu_custom_call.1} parent=119 // pred_fallthru
          _
        // Predicated region
        $region133: #{tpu_custom_call.1} parent=119 // pred_check
          %p914 = pneg %p158
        $region134: #{tpu_custom_call.1} parent=119 // pred_check_branch
          %916 = sbr.rel (%p914) target = $region136
        $region135: #{tpu_custom_call.1} parent=119 // pred_region
          %918 = dma.done [#allocation9], 2048
        $region136: #{tpu_custom_call.1} parent=119 // pred_fallthru
          _
        // Predicated region
        $region137: #{tpu_custom_call.1} parent=119 // pred_check
          %p919 = pneg %p179
        $region138: #{tpu_custom_call.1} parent=119 // pred_check_branch
          %921 = sbr.rel (%p919) target = $region140
        $region139: #{tpu_custom_call.1} parent=119 // pred_region
          %923 = dma.done [#allocation9], 16
        $region140: #{tpu_custom_call.1} parent=119 // pred_fallthru
          _
        // Predicated region
        $region141: #{tpu_custom_call.1} parent=119 // pred_check
          %p924 = pneg %p200
        $region142: #{tpu_custom_call.1} parent=119 // pred_check_branch
          %926 = sbr.rel (%p924) target = $region144
        $region143: #{tpu_custom_call.1} parent=119 // pred_region
          %928 = dma.done [#allocation12], 4096
        $region144: #{tpu_custom_call.1} parent=119 // pred_fallthru
          _
        // Predicated region
        $region145: #{tpu_custom_call.1} parent=119 // pred_check
          %p929 = pneg %p242
        $region146: #{tpu_custom_call.1} parent=119 // pred_check_branch
          %931 = sbr.rel (%p929) target = $region148
        $region147: #{tpu_custom_call.1} parent=119 // pred_region
          %933 = dma.done [#allocation12], 2048
        $region148: #{tpu_custom_call.1} parent=119 // pred_fallthru
          _
        // Predicated region
        $region149: #{tpu_custom_call.1} parent=119 // pred_check
          %p934 = pneg %p284
        $region150: #{tpu_custom_call.1} parent=119 // pred_check_branch
          %936 = sbr.rel (%p934) target = $region152
        $region151: #{tpu_custom_call.1} parent=119 // pred_region
          %938 = dma.done [#allocation15], 2048
        $region152: #{tpu_custom_call.1} parent=119 // pred_fallthru
          _
        // Predicated region
        $region153: #{tpu_custom_call.1} parent=119 // pred_check
          %p939 = pneg %p326
        $region154: #{tpu_custom_call.1} parent=119 // pred_check_branch
          %941 = sbr.rel (%p939) target = $region156
        $region155: #{tpu_custom_call.1} parent=119 // pred_region
          %943 = dma.done [#allocation15], 4096
        $region156: #{tpu_custom_call.1} parent=119 // pred_fallthru
          _
        // Predicated region
        $region157: #{tpu_custom_call.1} parent=119 // pred_check
          %p944 = pneg %p368
        $region158: #{tpu_custom_call.1} parent=119 // pred_check_branch
          %946 = sbr.rel (%p944) target = $region160
        $region159: #{tpu_custom_call.1} parent=119 // pred_region
          %948 = dma.done [#allocation18], 2048
        $region160: #{tpu_custom_call.1} parent=119 // pred_fallthru
          _
        // Predicated region
        $region161: #{tpu_custom_call.1} parent=119 // pred_check
          %p949 = pneg %p410
        $region162: #{tpu_custom_call.1} parent=119 // pred_check_branch
          %951 = sbr.rel (%p949) target = $region164
        $region163: #{tpu_custom_call.1} parent=119 // pred_region
          %953 = dma.done [#allocation18], 4096
        $region164: #{tpu_custom_call.1} parent=119 // pred_fallthru
          _
        // Predicated region
        $region165: #{tpu_custom_call.1} parent=119 // pred_check
          %p954 = pneg %p452
        $region166: #{tpu_custom_call.1} parent=119 // pred_check_branch
          %956 = sbr.rel (%p954) target = $region168
        $region167: #{tpu_custom_call.1} parent=119 // pred_region
          %958 = dma.done [#allocation21], 4096
        $region168: #{tpu_custom_call.1} parent=119 // pred_fallthru
          _
        %s959 = sand.u32 %s72, 1
        %s960 = scalar_lea.sflag [#allocation3], %s959
        %s961 = sand.u32 %s72, 1
        %s962 = smul.addr %s961, 16
        %s963 = scalar_lea.vmem [#allocation2], %s962
        %p964 = pneg %p85
        %p965 = pneg %p82
        %s966 = sand.u32 %s50, 1
        %s967 = scalar_lea.sflag [#allocation6], %s966
        %s968 = sand.u32 %s98, 1
        %s969 = smul.addr %s968, 16
        %s970 = scalar_lea.vmem [#allocation5], %s969
        %p971 = pneg %p111
        %p972 = pneg %p108
        %s973 = sand.u32 %s50, 1
        %s974 = scalar_lea.sflag [#allocation6], %s973
        %s975 = sand.u32 %s124, 1
        %s976 = smul.addr %s975, 16
        %s977 = scalar_lea.vmem [#allocation7], %s976
        %p978 = pneg %p137
        %p979 = pneg %p134
        %p980 = pneg %p158
        %p981 = pneg %p155
        %p982 = pneg %p179
        %p983 = pneg %p176
        %p984 = pneg %p200
        %p985 = pneg %p197
        %p986 = pneg %p221
        %p987 = pneg %p218
        %p988 = pneg %p242
        %p989 = pneg %p239
        %p990 = pneg %p263
        %p991 = pneg %p260
        %p992 = pneg %p284
        %p993 = pneg %p281
        %p994 = pneg %p305
        %p995 = pneg %p302
        %p996 = pneg %p326
        %p997 = pneg %p323
        %p998 = pneg %p347
        %p999 = pneg %p344
        %p1000 = pneg %p368
        %p1001 = pneg %p365
        %p1002 = pneg %p389
        %p1003 = pneg %p386
        %p1004 = pneg %p410
        %p1005 = pneg %p407
        %p1006 = pneg %p431
        %p1007 = pneg %p428
        %p1008 = pneg %p452
        %p1009 = pneg %p449
        %p1010 = pneg %p473
        %p1011 = pneg %p470
        %p1012 = pneg %p494
        %p1013 = pneg %p491
        %p1014 = pneg %p515
        %p1015 = pneg %p512
        %p1016 = pneg %p536
        %p1017 = pneg %p533
        %p1018 = pneg %p557
        %p1019 = pneg %p554
        %p1020 = pneg %p578
        %p1021 = pneg %p575
        %p1022 = pneg %p599
        %p1023 = pneg %p596
        %p1024 = pneg %p627
        %p1025 = pneg %p624
        %s1026 = sand.u32 %s614, 1
        %s1027 = scalar_lea.sflag [#allocation4], %s1026
        %s1028 = sand.u32 %s614, 1
        %s1029 = smul.addr %s1028, 16
        %s1030 = scalar_lea.vmem [#allocation22], %s1029
        %s1031 = smul.u32 2, %s55
        %s1032 = smul.u32 2, %s55
        %v1033 = vld [vmem:[%s888] sm:$0xff]
        %v1034 = vld [vmem:[%s888 + $0x8] sm:$0xff]
        %v1035 = vld [vmem:[%s898] sm:$0xff]
        %v1036 = vld [vmem:[%s898 + $0x8] sm:$0xff]
        %v1037 = vld [vmem:[%s908] sm:$0xff]
        %v1038 = vld [vmem:[%s908 + $0x8] sm:$0xff]
        %v1039 = vld [vmem:[#allocation8] sm:$0xff]
        %v1040 = vld [vmem:[#allocation8 + $0x8] sm:$0xff]
        %v1041 = vld [vmem:[#allocation8 + $0x10] sm:$0xff]
        %v1042 = vld [vmem:[#allocation8 + $0x18] sm:$0xff]
        %v1043 = vld [vmem:[#allocation8 + $0x20] sm:$0xff]
        %v1044 = vld [vmem:[#allocation8 + $0x28] sm:$0xff]
        %v1045 = vld [vmem:[#allocation8 + $0x30] sm:$0xff]
        %v1046 = vld [vmem:[#allocation8 + $0x38] sm:$0xff]
        %v1047 = vld [vmem:[#allocation8 + $0x40] sm:$0xff]
        %v1048 = vld [vmem:[#allocation8 + $0x48] sm:$0xff]
        %v1049 = vld [vmem:[#allocation8 + $0x50] sm:$0xff]
        %v1050 = vld [vmem:[#allocation8 + $0x58] sm:$0xff]
        %v1051 = vld [vmem:[#allocation8 + $0x60] sm:$0xff]
        %v1052 = vld [vmem:[#allocation8 + $0x68] sm:$0xff]
        %v1053 = vld [vmem:[#allocation8 + $0x70] sm:$0xff]
        %v1054 = vld [vmem:[#allocation8 + $0x78] sm:$0xff]
        %v1055 = vld [vmem:[#allocation10] sm:$0x1]
        %v1057 = vperm.slane %v1055, 0
        %1059 = vmatpush.msra.mxu0 %v1054
        %1060 = vmatpush.msra.mxu0 %v1053
        %1061 = vmatpush.msra.mxu0 %v1052
        %1062 = vmatpush.msra.mxu0 %v1051
        %1063 = vmatpush.msra.mxu0 %v1050
        %1064 = vmatpush.msra.mxu0 %v1049
        %1065 = vmatpush.msra.mxu0 %v1048
        %1066 = vmatpush.msra.mxu0 %v1047
        %1067 = vmatpush.msra.mxu0 %v1046
        %1068 = vmatpush.msra.mxu0 %v1045
        %1069 = vmatpush.msra.mxu0 %v1044
        %1070 = vmatpush.msra.mxu0 %v1043
        %1071 = vmatpush.msra.mxu0 %v1042
        %1072 = vmatpush.msra.mxu0 %v1041
        %1073 = vmatpush.msra.mxu0 %v1040
        %1074 = vmatpush.msra.mxu0 %v1039
        %1075 = vmatmul.f32.gmra.mxu0 %v1033
        %v1076 = vpop.f32.mrf.mxu0
        %v1077 = vadd.f32 %v1057, %v1076
        %1078 = vmatmul.f32.gmra.mxu0 %v1034
        %v1079 = vpop.f32.mrf.mxu0
        %v1080 = vadd.f32 %v1057, %v1079
        %1081 = vdwg.mxu0
        %v1082 = vld [vmem:[#allocation11] sm:$0xff]
        %v1083 = vld [vmem:[#allocation11 + $0x8] sm:$0xff]
        %v1084 = vld [vmem:[#allocation11 + $0x10] sm:$0xff]
        %v1085 = vld [vmem:[#allocation11 + $0x18] sm:$0xff]
        %v1086 = vld [vmem:[#allocation11 + $0x20] sm:$0xff]
        %v1087 = vld [vmem:[#allocation11 + $0x28] sm:$0xff]
        %v1088 = vld [vmem:[#allocation11 + $0x30] sm:$0xff]
        %v1089 = vld [vmem:[#allocation11 + $0x38] sm:$0xff]
        %v1090 = vld [vmem:[#allocation11 + $0x40] sm:$0xff]
        %v1091 = vld [vmem:[#allocation11 + $0x48] sm:$0xff]
        %v1092 = vld [vmem:[#allocation11 + $0x50] sm:$0xff]
        %v1093 = vld [vmem:[#allocation11 + $0x58] sm:$0xff]
        %v1094 = vld [vmem:[#allocation11 + $0x60] sm:$0xff]
        %v1095 = vld [vmem:[#allocation11 + $0x68] sm:$0xff]
        %v1096 = vld [vmem:[#allocation11 + $0x70] sm:$0xff]
        %v1097 = vld [vmem:[#allocation11 + $0x78] sm:$0xff]
        %v1098 = vld [vmem:[#allocation11 + $0x80] sm:$0xff]
        %v1099 = vld [vmem:[#allocation11 + $0x88] sm:$0xff]
        %v1100 = vld [vmem:[#allocation11 + $0x90] sm:$0xff]
        %v1101 = vld [vmem:[#allocation11 + $0x98] sm:$0xff]
        %v1102 = vld [vmem:[#allocation11 + $0xa0] sm:$0xff]
        %v1103 = vld [vmem:[#allocation11 + $0xa8] sm:$0xff]
        %v1104 = vld [vmem:[#allocation11 + $0xb0] sm:$0xff]
        %v1105 = vld [vmem:[#allocation11 + $0xb8] sm:$0xff]
        %v1106 = vld [vmem:[#allocation11 + $0xc0] sm:$0xff]
        %v1107 = vld [vmem:[#allocation11 + $0xc8] sm:$0xff]
        %v1108 = vld [vmem:[#allocation11 + $0xd0] sm:$0xff]
        %v1109 = vld [vmem:[#allocation11 + $0xd8] sm:$0xff]
        %v1110 = vld [vmem:[#allocation11 + $0xe0] sm:$0xff]
        %v1111 = vld [vmem:[#allocation11 + $0xe8] sm:$0xff]
        %v1112 = vld [vmem:[#allocation11 + $0xf0] sm:$0xff]
        %v1113 = vld [vmem:[#allocation11 + $0xf8] sm:$0xff]
        %v1114 = vld [vmem:[%s6] sm:$0x3]
        %v1116 = vperm.slane %v1114, 0
        %v1117 = vperm.slane %v1114, 1
        %1120 = vmatpush.msra.mxu0 %v1112
        %1121 = vmatpush.msra.mxu0 %v1110
        %1122 = vmatpush.msra.mxu0 %v1108
        %1123 = vmatpush.msra.mxu0 %v1106
        %1124 = vmatpush.msra.mxu0 %v1104
        %1125 = vmatpush.msra.mxu0 %v1102
        %1126 = vmatpush.msra.mxu0 %v1100
        %1127 = vmatpush.msra.mxu0 %v1098
        %1128 = vmatpush.msra.mxu0 %v1096
        %1129 = vmatpush.msra.mxu0 %v1094
        %1130 = vmatpush.msra.mxu0 %v1092
        %1131 = vmatpush.msra.mxu0 %v1090
        %1132 = vmatpush.msra.mxu0 %v1088
        %1133 = vmatpush.msra.mxu0 %v1086
        %1134 = vmatpush.msra.mxu0 %v1084
        %1135 = vmatpush.msra.mxu0 %v1082
        %1136 = vmatmul.f32.gmra.mxu0 %v1035
        %v1137 = vpop.f32.mrf.mxu0
        %v1138 = vadd.f32 %v1116, %v1137
        %1139 = vmatmul.f32.gmra.mxu0 %v1036
        %v1140 = vpop.f32.mrf.mxu0
        %v1141 = vadd.f32 %v1116, %v1140
        %1142 = vdwg.mxu0
        %1143 = vmatpush.msra.mxu0 %v1113
        %1144 = vmatpush.msra.mxu0 %v1111
        %1145 = vmatpush.msra.mxu0 %v1109
        %1146 = vmatpush.msra.mxu0 %v1107
        %1147 = vmatpush.msra.mxu0 %v1105
        %1148 = vmatpush.msra.mxu0 %v1103
        %1149 = vmatpush.msra.mxu0 %v1101
        %1150 = vmatpush.msra.mxu0 %v1099
        %1151 = vmatpush.msra.mxu0 %v1097
        %1152 = vmatpush.msra.mxu0 %v1095
        %1153 = vmatpush.msra.mxu0 %v1093
        %1154 = vmatpush.msra.mxu0 %v1091
        %1155 = vmatpush.msra.mxu0 %v1089
        %1156 = vmatpush.msra.mxu0 %v1087
        %1157 = vmatpush.msra.mxu0 %v1085
        %1158 = vmatpush.msra.mxu0 %v1083
        %1159 = vmatmul.f32.gmra.mxu0 %v1035
        %v1160 = vpop.f32.mrf.mxu0
        %v1161 = vadd.f32 %v1117, %v1160
        %1162 = vmatmul.f32.gmra.mxu0 %v1036
        %v1163 = vpop.f32.mrf.mxu0
        %v1164 = vadd.f32 %v1117, %v1163
        %1165 = vdwg.mxu0
        %1168 = vrot.lane.b32.xlu0 %v1077, 96
        %v1169 = vpop.permute.xlu0 %1168
        %1170 = vrot.lane.b32.xlu0 %v1080, 96
        %v1171 = vpop.permute.xlu0 %1170
        %1174 = vrot.lane.b32.xlu0 %v1077, 64
        %v1175 = vpop.permute.xlu0 %1174
        %1176 = vrot.lane.b32.xlu0 %v1080, 64
        %v1177 = vpop.permute.xlu0 %1176
        %1180 = vrot.lane.b32.xlu0 %v1077, 32
        %v1181 = vpop.permute.xlu0 %1180
        %1182 = vrot.lane.b32.xlu0 %v1080, 32
        %v1183 = vpop.permute.xlu0 %1182
        %v1186 = vrot.slane %v1175, 4
        %vm1187 = vcmask 1047556
        %v1188 = vsel %vm1187, %v1186, %v1077
        %v1189 = vrot.slane %v1077, 4
        %v1190 = vsel %vm1187, %v1175, %v1189
        %v1192 = vunpack.c.l.s4 1983009808
        %v1193 = vunpack.c.0.s8 %v1192
        %v1194 = vperm.slane %v1188, %v1193
        %v1196 = vunpack.c.l.s4 1983009808
        %v1197 = vunpack.c.0.s8 %v1196
        %v1198 = vperm.slane %v1190, %v1197
        %v1199 = vrot.slane %v1181, 4
        %v1200 = vsel %vm1187, %v1199, %v1169
        %v1201 = vrot.slane %v1169, 4
        %v1202 = vsel %vm1187, %v1181, %v1201
        %v1204 = vunpack.c.l.s4 1983009808
        %v1205 = vunpack.c.0.s8 %v1204
        %v1206 = vperm.slane %v1200, %v1205
        %v1208 = vunpack.c.l.s4 1983009808
        %v1209 = vunpack.c.0.s8 %v1208
        %v1210 = vperm.slane %v1202, %v1209
        %v1211 = vrot.slane %v1206, 4
        %v1212 = vsel %vm1187, %v1211, %v1194
        %v1213 = vrot.slane %v1194, 4
        %v1214 = vsel %vm1187, %v1206, %v1213
        %v1216 = vunpack.c.l.s4 1934713408
        %v1217 = vunpack.c.0.s8 %v1216
        %v1218 = vperm.slane %v1212, %v1217
        %v1220 = vunpack.c.l.s4 1934713408
        %v1221 = vunpack.c.0.s8 %v1220
        %v1222 = vperm.slane %v1214, %v1221
        %v1223 = vrot.slane %v1210, 4
        %v1224 = vsel %vm1187, %v1223, %v1198
        %v1225 = vrot.slane %v1198, 4
        %v1226 = vsel %vm1187, %v1210, %v1225
        %v1228 = vunpack.c.l.s4 1934713408
        %v1229 = vunpack.c.0.s8 %v1228
        %v1230 = vperm.slane %v1224, %v1229
        %v1232 = vunpack.c.l.s4 1934713408
        %v1233 = vunpack.c.0.s8 %v1232
        %v1234 = vperm.slane %v1226, %v1233
        %v1235 = vrot.slane %v1218, 4
        %v1236 = vsel %vm1187, 0.0, %v1235
        %v1237 = vrot.slane %v1222, 4
        %v1238 = vsel %vm1187, 0.0, %v1237
        %v1239 = vrot.slane %v1230, 4
        %v1240 = vsel %vm1187, 0.0, %v1239
        %v1241 = vrot.slane %v1234, 4
        %v1242 = vsel %vm1187, 0.0, %v1241
        %v1243 = vrot.slane %v1177, 4
        %v1244 = vsel %vm1187, %v1243, %v1080
        %v1245 = vrot.slane %v1080, 4
        %v1246 = vsel %vm1187, %v1177, %v1245
        %v1248 = vunpack.c.l.s4 1983009808
        %v1249 = vunpack.c.0.s8 %v1248
        %v1250 = vperm.slane %v1244, %v1249
        %v1252 = vunpack.c.l.s4 1983009808
        %v1253 = vunpack.c.0.s8 %v1252
        %v1254 = vperm.slane %v1246, %v1253
        %v1255 = vrot.slane %v1183, 4
        %v1256 = vsel %vm1187, %v1255, %v1171
        %v1257 = vrot.slane %v1171, 4
        %v1258 = vsel %vm1187, %v1183, %v1257
        %v1260 = vunpack.c.l.s4 1983009808
        %v1261 = vunpack.c.0.s8 %v1260
        %v1262 = vperm.slane %v1256, %v1261
        %v1264 = vunpack.c.l.s4 1983009808
        %v1265 = vunpack.c.0.s8 %v1264
        %v1266 = vperm.slane %v1258, %v1265
        %v1267 = vrot.slane %v1262, 4
        %v1268 = vsel %vm1187, %v1267, %v1250
        %v1269 = vrot.slane %v1250, 4
        %v1270 = vsel %vm1187, %v1262, %v1269
        %v1272 = vunpack.c.l.s4 1934713408
        %v1273 = vunpack.c.0.s8 %v1272
        %v1274 = vperm.slane %v1268, %v1273
        %v1276 = vunpack.c.l.s4 1934713408
        %v1277 = vunpack.c.0.s8 %v1276
        %v1278 = vperm.slane %v1270, %v1277
        %v1279 = vrot.slane %v1266, 4
        %v1280 = vsel %vm1187, %v1279, %v1254
        %v1281 = vrot.slane %v1254, 4
        %v1282 = vsel %vm1187, %v1266, %v1281
        %v1284 = vunpack.c.l.s4 1934713408
        %v1285 = vunpack.c.0.s8 %v1284
        %v1286 = vperm.slane %v1280, %v1285
        %v1288 = vunpack.c.l.s4 1934713408
        %v1289 = vunpack.c.0.s8 %v1288
        %v1290 = vperm.slane %v1282, %v1289
        %v1291 = vrot.slane %v1274, 4
        %v1292 = vsel %vm1187, 0.0, %v1291
        %v1293 = vrot.slane %v1278, 4
        %v1294 = vsel %vm1187, 0.0, %v1293
        %v1295 = vrot.slane %v1286, 4
        %v1296 = vsel %vm1187, 0.0, %v1295
        %v1297 = vrot.slane %v1290, 4
        %v1298 = vsel %vm1187, 0.0, %v1297
        %v1299 = vsel %vm1187, %v1237, %v1218
        %v1301 = vunpack.c.l.s4 1983009808
        %v1302 = vunpack.c.0.s8 %v1301
        %v1303 = vperm.slane %v1299, %v1302
        %v1304 = vrot.slane %v1238, 4
        %v1305 = vsel %vm1187, %v1304, %v1236
        %v1307 = vunpack.c.l.s4 1983009808
        %v1308 = vunpack.c.0.s8 %v1307
        %v1309 = vperm.slane %v1305, %v1308
        %v1310 = vsel %vm1187, %v1241, %v1230
        %v1312 = vunpack.c.l.s4 1983009808
        %v1313 = vunpack.c.0.s8 %v1312
        %v1314 = vperm.slane %v1310, %v1313
        %v1315 = vrot.slane %v1242, 4
        %v1316 = vsel %vm1187, %v1315, %v1240
        %v1318 = vunpack.c.l.s4 1983009808
        %v1319 = vunpack.c.0.s8 %v1318
        %v1320 = vperm.slane %v1316, %v1319
        %v1321 = vrot.slane %v1309, 4
        %v1322 = vsel %vm1187, %v1321, %v1303
        %v1323 = vrot.slane %v1303, 4
        %v1324 = vsel %vm1187, %v1309, %v1323
        %v1326 = vunpack.c.l.s4 1934713408
        %v1327 = vunpack.c.0.s8 %v1326
        %v1328 = vperm.slane %v1322, %v1327
        %v1330 = vunpack.c.l.s4 1934713408
        %v1331 = vunpack.c.0.s8 %v1330
        %v1332 = vperm.slane %v1324, %v1331
        %v1333 = vrot.slane %v1320, 4
        %v1334 = vsel %vm1187, %v1333, %v1314
        %v1335 = vrot.slane %v1314, 4
        %v1336 = vsel %vm1187, %v1320, %v1335
        %v1338 = vunpack.c.l.s4 1934713408
        %v1339 = vunpack.c.0.s8 %v1338
        %v1340 = vperm.slane %v1334, %v1339
        %v1342 = vunpack.c.l.s4 1934713408
        %v1343 = vunpack.c.0.s8 %v1342
        %v1344 = vperm.slane %v1336, %v1343
        %v1345 = vrot.slane %v1340, 4
        %v1346 = vsel %vm1187, %v1345, %v1328
        %v1347 = vrot.slane %v1328, 4
        %v1348 = vsel %vm1187, %v1340, %v1347
        %v1349 = vrot.slane %v1344, 4
        %v1350 = vsel %vm1187, %v1349, %v1332
        %v1351 = vrot.slane %v1332, 4
        %v1352 = vsel %vm1187, %v1344, %v1351
        %v1353 = vsel %vm1187, %v1293, %v1274
        %v1355 = vunpack.c.l.s4 1983009808
        %v1356 = vunpack.c.0.s8 %v1355
        %v1357 = vperm.slane %v1353, %v1356
        %v1358 = vrot.slane %v1294, 4
        %v1359 = vsel %vm1187, %v1358, %v1292
        %v1361 = vunpack.c.l.s4 1983009808
        %v1362 = vunpack.c.0.s8 %v1361
        %v1363 = vperm.slane %v1359, %v1362
        %v1364 = vsel %vm1187, %v1297, %v1286
        %v1366 = vunpack.c.l.s4 1983009808
        %v1367 = vunpack.c.0.s8 %v1366
        %v1368 = vperm.slane %v1364, %v1367
        %v1369 = vrot.slane %v1298, 4
        %v1370 = vsel %vm1187, %v1369, %v1296
        %v1372 = vunpack.c.l.s4 1983009808
        %v1373 = vunpack.c.0.s8 %v1372
        %v1374 = vperm.slane %v1370, %v1373
        %v1375 = vrot.slane %v1363, 4
        %v1376 = vsel %vm1187, %v1375, %v1357
        %v1377 = vrot.slane %v1357, 4
        %v1378 = vsel %vm1187, %v1363, %v1377
        %v1380 = vunpack.c.l.s4 1934713408
        %v1381 = vunpack.c.0.s8 %v1380
        %v1382 = vperm.slane %v1376, %v1381
        %v1384 = vunpack.c.l.s4 1934713408
        %v1385 = vunpack.c.0.s8 %v1384
        %v1386 = vperm.slane %v1378, %v1385
        %v1387 = vrot.slane %v1374, 4
        %v1388 = vsel %vm1187, %v1387, %v1368
        %v1389 = vrot.slane %v1368, 4
        %v1390 = vsel %vm1187, %v1374, %v1389
        %v1392 = vunpack.c.l.s4 1934713408
        %v1393 = vunpack.c.0.s8 %v1392
        %v1394 = vperm.slane %v1388, %v1393
        %v1396 = vunpack.c.l.s4 1934713408
        %v1397 = vunpack.c.0.s8 %v1396
        %v1398 = vperm.slane %v1390, %v1397
        %v1399 = vrot.slane %v1394, 4
        %v1400 = vsel %vm1187, %v1399, %v1382
        %v1401 = vrot.slane %v1382, 4
        %v1402 = vsel %vm1187, %v1394, %v1401
        %v1403 = vrot.slane %v1398, 4
        %v1404 = vsel %vm1187, %v1403, %v1386
        %v1405 = vrot.slane %v1386, 4
        %v1406 = vsel %vm1187, %v1398, %v1405
        %1409 = vrot.lane.b32.xlu0 %v1138, 96
        %v1410 = vpop.permute.xlu0 %1409
        %1411 = vrot.lane.b32.xlu0 %v1141, 96
        %v1412 = vpop.permute.xlu0 %1411
        %1415 = vrot.lane.b32.xlu0 %v1138, 64
        %v1416 = vpop.permute.xlu0 %1415
        %1417 = vrot.lane.b32.xlu0 %v1141, 64
        %v1418 = vpop.permute.xlu0 %1417
        %1421 = vrot.lane.b32.xlu0 %v1138, 32
        %v1422 = vpop.permute.xlu0 %1421
        %1423 = vrot.lane.b32.xlu0 %v1141, 32
        %v1424 = vpop.permute.xlu0 %1423
        %v1427 = vrot.slane %v1416, 4
        %v1428 = vsel %vm1187, %v1427, %v1138
        %v1429 = vrot.slane %v1138, 4
        %v1430 = vsel %vm1187, %v1416, %v1429
        %v1432 = vunpack.c.l.s4 1983009808
        %v1433 = vunpack.c.0.s8 %v1432
        %v1434 = vperm.slane %v1428, %v1433
        %v1436 = vunpack.c.l.s4 1983009808
        %v1437 = vunpack.c.0.s8 %v1436
        %v1438 = vperm.slane %v1430, %v1437
        %v1439 = vrot.slane %v1422, 4
        %v1440 = vsel %vm1187, %v1439, %v1410
        %v1441 = vrot.slane %v1410, 4
        %v1442 = vsel %vm1187, %v1422, %v1441
        %v1444 = vunpack.c.l.s4 1983009808
        %v1445 = vunpack.c.0.s8 %v1444
        %v1446 = vperm.slane %v1440, %v1445
        %v1448 = vunpack.c.l.s4 1983009808
        %v1449 = vunpack.c.0.s8 %v1448
        %v1450 = vperm.slane %v1442, %v1449
        %v1451 = vrot.slane %v1446, 4
        %v1452 = vsel %vm1187, %v1451, %v1434
        %v1453 = vrot.slane %v1434, 4
        %v1454 = vsel %vm1187, %v1446, %v1453
        %v1456 = vunpack.c.l.s4 1934713408
        %v1457 = vunpack.c.0.s8 %v1456
        %v1458 = vperm.slane %v1452, %v1457
        %v1460 = vunpack.c.l.s4 1934713408
        %v1461 = vunpack.c.0.s8 %v1460
        %v1462 = vperm.slane %v1454, %v1461
        %v1463 = vrot.slane %v1450, 4
        %v1464 = vsel %vm1187, %v1463, %v1438
        %v1465 = vrot.slane %v1438, 4
        %v1466 = vsel %vm1187, %v1450, %v1465
        %v1468 = vunpack.c.l.s4 1934713408
        %v1469 = vunpack.c.0.s8 %v1468
        %v1470 = vperm.slane %v1464, %v1469
        %v1472 = vunpack.c.l.s4 1934713408
        %v1473 = vunpack.c.0.s8 %v1472
        %v1474 = vperm.slane %v1466, %v1473
        %v1475 = vrot.slane %v1458, 4
        %v1476 = vsel %vm1187, 0.0, %v1475
        %v1477 = vrot.slane %v1462, 4
        %v1478 = vsel %vm1187, 0.0, %v1477
        %v1479 = vrot.slane %v1470, 4
        %v1480 = vsel %vm1187, 0.0, %v1479
        %v1481 = vrot.slane %v1474, 4
        %v1482 = vsel %vm1187, 0.0, %v1481
        %v1483 = vrot.slane %v1418, 4
        %v1484 = vsel %vm1187, %v1483, %v1141
        %v1485 = vrot.slane %v1141, 4
        %v1486 = vsel %vm1187, %v1418, %v1485
        %v1488 = vunpack.c.l.s4 1983009808
        %v1489 = vunpack.c.0.s8 %v1488
        %v1490 = vperm.slane %v1484, %v1489
        %v1492 = vunpack.c.l.s4 1983009808
        %v1493 = vunpack.c.0.s8 %v1492
        %v1494 = vperm.slane %v1486, %v1493
        %v1495 = vrot.slane %v1424, 4
        %v1496 = vsel %vm1187, %v1495, %v1412
        %v1497 = vrot.slane %v1412, 4
        %v1498 = vsel %vm1187, %v1424, %v1497
        %v1500 = vunpack.c.l.s4 1983009808
        %v1501 = vunpack.c.0.s8 %v1500
        %v1502 = vperm.slane %v1496, %v1501
        %v1504 = vunpack.c.l.s4 1983009808
        %v1505 = vunpack.c.0.s8 %v1504
        %v1506 = vperm.slane %v1498, %v1505
        %v1507 = vrot.slane %v1502, 4
        %v1508 = vsel %vm1187, %v1507, %v1490
        %v1509 = vrot.slane %v1490, 4
        %v1510 = vsel %vm1187, %v1502, %v1509
        %v1512 = vunpack.c.l.s4 1934713408
        %v1513 = vunpack.c.0.s8 %v1512
        %v1514 = vperm.slane %v1508, %v1513
        %v1516 = vunpack.c.l.s4 1934713408
        %v1517 = vunpack.c.0.s8 %v1516
        %v1518 = vperm.slane %v1510, %v1517
        %v1519 = vrot.slane %v1506, 4
        %v1520 = vsel %vm1187, %v1519, %v1494
        %v1521 = vrot.slane %v1494, 4
        %v1522 = vsel %vm1187, %v1506, %v1521
        %v1524 = vunpack.c.l.s4 1934713408
        %v1525 = vunpack.c.0.s8 %v1524
        %v1526 = vperm.slane %v1520, %v1525
        %v1528 = vunpack.c.l.s4 1934713408
        %v1529 = vunpack.c.0.s8 %v1528
        %v1530 = vperm.slane %v1522, %v1529
        %v1531 = vrot.slane %v1514, 4
        %v1532 = vsel %vm1187, 0.0, %v1531
        %v1533 = vrot.slane %v1518, 4
        %v1534 = vsel %vm1187, 0.0, %v1533
        %v1535 = vrot.slane %v1526, 4
        %v1536 = vsel %vm1187, 0.0, %v1535
        %v1537 = vrot.slane %v1530, 4
        %v1538 = vsel %vm1187, 0.0, %v1537
        %v1539 = vsel %vm1187, %v1477, %v1458
        %v1541 = vunpack.c.l.s4 1983009808
        %v1542 = vunpack.c.0.s8 %v1541
        %v1543 = vperm.slane %v1539, %v1542
        %v1544 = vrot.slane %v1478, 4
        %v1545 = vsel %vm1187, %v1544, %v1476
        %v1547 = vunpack.c.l.s4 1983009808
        %v1548 = vunpack.c.0.s8 %v1547
        %v1549 = vperm.slane %v1545, %v1548
        %v1550 = vsel %vm1187, %v1481, %v1470
        %v1552 = vunpack.c.l.s4 1983009808
        %v1553 = vunpack.c.0.s8 %v1552
        %v1554 = vperm.slane %v1550, %v1553
        %v1555 = vrot.slane %v1482, 4
        %v1556 = vsel %vm1187, %v1555, %v1480
        %v1558 = vunpack.c.l.s4 1983009808
        %v1559 = vunpack.c.0.s8 %v1558
        %v1560 = vperm.slane %v1556, %v1559
        %v1561 = vrot.slane %v1549, 4
        %v1562 = vsel %vm1187, %v1561, %v1543
        %v1563 = vrot.slane %v1543, 4
        %v1564 = vsel %vm1187, %v1549, %v1563
        %v1566 = vunpack.c.l.s4 1934713408
        %v1567 = vunpack.c.0.s8 %v1566
        %v1568 = vperm.slane %v1562, %v1567
        %v1570 = vunpack.c.l.s4 1934713408
        %v1571 = vunpack.c.0.s8 %v1570
        %v1572 = vperm.slane %v1564, %v1571
        %v1573 = vrot.slane %v1560, 4
        %v1574 = vsel %vm1187, %v1573, %v1554
        %v1575 = vrot.slane %v1554, 4
        %v1576 = vsel %vm1187, %v1560, %v1575
        %v1578 = vunpack.c.l.s4 1934713408
        %v1579 = vunpack.c.0.s8 %v1578
        %v1580 = vperm.slane %v1574, %v1579
        %v1582 = vunpack.c.l.s4 1934713408
        %v1583 = vunpack.c.0.s8 %v1582
        %v1584 = vperm.slane %v1576, %v1583
        %v1585 = vrot.slane %v1580, 4
        %v1586 = vsel %vm1187, %v1585, %v1568
        %v1587 = vrot.slane %v1568, 4
        %v1588 = vsel %vm1187, %v1580, %v1587
        %v1589 = vrot.slane %v1584, 4
        %v1590 = vsel %vm1187, %v1589, %v1572
        %v1591 = vrot.slane %v1572, 4
        %v1592 = vsel %vm1187, %v1584, %v1591
        %v1593 = vsel %vm1187, %v1533, %v1514
        %v1595 = vunpack.c.l.s4 1983009808
        %v1596 = vunpack.c.0.s8 %v1595
        %v1597 = vperm.slane %v1593, %v1596
        %v1598 = vrot.slane %v1534, 4
        %v1599 = vsel %vm1187, %v1598, %v1532
        %v1601 = vunpack.c.l.s4 1983009808
        %v1602 = vunpack.c.0.s8 %v1601
        %v1603 = vperm.slane %v1599, %v1602
        %v1604 = vsel %vm1187, %v1537, %v1526
        %v1606 = vunpack.c.l.s4 1983009808
        %v1607 = vunpack.c.0.s8 %v1606
        %v1608 = vperm.slane %v1604, %v1607
        %v1609 = vrot.slane %v1538, 4
        %v1610 = vsel %vm1187, %v1609, %v1536
        %v1612 = vunpack.c.l.s4 1983009808
        %v1613 = vunpack.c.0.s8 %v1612
        %v1614 = vperm.slane %v1610, %v1613
        %v1615 = vrot.slane %v1603, 4
        %v1616 = vsel %vm1187, %v1615, %v1597
        %v1617 = vrot.slane %v1597, 4
        %v1618 = vsel %vm1187, %v1603, %v1617
        %v1620 = vunpack.c.l.s4 1934713408
        %v1621 = vunpack.c.0.s8 %v1620
        %v1622 = vperm.slane %v1616, %v1621
        %v1624 = vunpack.c.l.s4 1934713408
        %v1625 = vunpack.c.0.s8 %v1624
        %v1626 = vperm.slane %v1618, %v1625
        %v1627 = vrot.slane %v1614, 4
        %v1628 = vsel %vm1187, %v1627, %v1608
        %v1629 = vrot.slane %v1608, 4
        %v1630 = vsel %vm1187, %v1614, %v1629
        %v1632 = vunpack.c.l.s4 1934713408
        %v1633 = vunpack.c.0.s8 %v1632
        %v1634 = vperm.slane %v1628, %v1633
        %v1636 = vunpack.c.l.s4 1934713408
        %v1637 = vunpack.c.0.s8 %v1636
        %v1638 = vperm.slane %v1630, %v1637
        %v1639 = vrot.slane %v1634, 4
        %v1640 = vsel %vm1187, %v1639, %v1622
        %v1641 = vrot.slane %v1622, 4
        %v1642 = vsel %vm1187, %v1634, %v1641
        %v1643 = vrot.slane %v1638, 4
        %v1644 = vsel %vm1187, %v1643, %v1626
        %v1645 = vrot.slane %v1626, 4
        %v1646 = vsel %vm1187, %v1638, %v1645
        %1649 = vrot.lane.b32.xlu0 %v1161, 96
        %v1650 = vpop.permute.xlu0 %1649
        %1651 = vrot.lane.b32.xlu0 %v1164, 96
        %v1652 = vpop.permute.xlu0 %1651
        %1655 = vrot.lane.b32.xlu0 %v1161, 64
        %v1656 = vpop.permute.xlu0 %1655
        %1657 = vrot.lane.b32.xlu0 %v1164, 64
        %v1658 = vpop.permute.xlu0 %1657
        %1661 = vrot.lane.b32.xlu0 %v1161, 32
        %v1662 = vpop.permute.xlu0 %1661
        %1663 = vrot.lane.b32.xlu0 %v1164, 32
        %v1664 = vpop.permute.xlu0 %1663
        %v1667 = vrot.slane %v1656, 4
        %v1668 = vsel %vm1187, %v1667, %v1161
        %v1669 = vrot.slane %v1161, 4
        %v1670 = vsel %vm1187, %v1656, %v1669
        %v1672 = vunpack.c.l.s4 1983009808
        %v1673 = vunpack.c.0.s8 %v1672
        %v1674 = vperm.slane %v1668, %v1673
        %v1676 = vunpack.c.l.s4 1983009808
        %v1677 = vunpack.c.0.s8 %v1676
        %v1678 = vperm.slane %v1670, %v1677
        %v1679 = vrot.slane %v1662, 4
        %v1680 = vsel %vm1187, %v1679, %v1650
        %v1681 = vrot.slane %v1650, 4
        %v1682 = vsel %vm1187, %v1662, %v1681
        %v1684 = vunpack.c.l.s4 1983009808
        %v1685 = vunpack.c.0.s8 %v1684
        %v1686 = vperm.slane %v1680, %v1685
        %v1688 = vunpack.c.l.s4 1983009808
        %v1689 = vunpack.c.0.s8 %v1688
        %v1690 = vperm.slane %v1682, %v1689
        %v1691 = vrot.slane %v1686, 4
        %v1692 = vsel %vm1187, %v1691, %v1674
        %v1693 = vrot.slane %v1674, 4
        %v1694 = vsel %vm1187, %v1686, %v1693
        %v1696 = vunpack.c.l.s4 1934713408
        %v1697 = vunpack.c.0.s8 %v1696
        %v1698 = vperm.slane %v1692, %v1697
        %v1700 = vunpack.c.l.s4 1934713408
        %v1701 = vunpack.c.0.s8 %v1700
        %v1702 = vperm.slane %v1694, %v1701
        %v1703 = vrot.slane %v1690, 4
        %v1704 = vsel %vm1187, %v1703, %v1678
        %v1705 = vrot.slane %v1678, 4
        %v1706 = vsel %vm1187, %v1690, %v1705
        %v1708 = vunpack.c.l.s4 1934713408
        %v1709 = vunpack.c.0.s8 %v1708
        %v1710 = vperm.slane %v1704, %v1709
        %v1712 = vunpack.c.l.s4 1934713408
        %v1713 = vunpack.c.0.s8 %v1712
        %v1714 = vperm.slane %v1706, %v1713
        %v1715 = vrot.slane %v1698, 4
        %v1716 = vsel %vm1187, 0.0, %v1715
        %v1717 = vrot.slane %v1702, 4
        %v1718 = vsel %vm1187, 0.0, %v1717
        %v1719 = vrot.slane %v1710, 4
        %v1720 = vsel %vm1187, 0.0, %v1719
        %v1721 = vrot.slane %v1714, 4
        %v1722 = vsel %vm1187, 0.0, %v1721
        %v1723 = vrot.slane %v1658, 4
        %v1724 = vsel %vm1187, %v1723, %v1164
        %v1725 = vrot.slane %v1164, 4
        %v1726 = vsel %vm1187, %v1658, %v1725
        %v1728 = vunpack.c.l.s4 1983009808
        %v1729 = vunpack.c.0.s8 %v1728
        %v1730 = vperm.slane %v1724, %v1729
        %v1732 = vunpack.c.l.s4 1983009808
        %v1733 = vunpack.c.0.s8 %v1732
        %v1734 = vperm.slane %v1726, %v1733
        %v1735 = vrot.slane %v1664, 4
        %v1736 = vsel %vm1187, %v1735, %v1652
        %v1737 = vrot.slane %v1652, 4
        %v1738 = vsel %vm1187, %v1664, %v1737
        %v1740 = vunpack.c.l.s4 1983009808
        %v1741 = vunpack.c.0.s8 %v1740
        %v1742 = vperm.slane %v1736, %v1741
        %v1744 = vunpack.c.l.s4 1983009808
        %v1745 = vunpack.c.0.s8 %v1744
        %v1746 = vperm.slane %v1738, %v1745
        %v1747 = vrot.slane %v1742, 4
        %v1748 = vsel %vm1187, %v1747, %v1730
        %v1749 = vrot.slane %v1730, 4
        %v1750 = vsel %vm1187, %v1742, %v1749
        %v1752 = vunpack.c.l.s4 1934713408
        %v1753 = vunpack.c.0.s8 %v1752
        %v1754 = vperm.slane %v1748, %v1753
        %v1756 = vunpack.c.l.s4 1934713408
        %v1757 = vunpack.c.0.s8 %v1756
        %v1758 = vperm.slane %v1750, %v1757
        %v1759 = vrot.slane %v1746, 4
        %v1760 = vsel %vm1187, %v1759, %v1734
        %v1761 = vrot.slane %v1734, 4
        %v1762 = vsel %vm1187, %v1746, %v1761
        %v1764 = vunpack.c.l.s4 1934713408
        %v1765 = vunpack.c.0.s8 %v1764
        %v1766 = vperm.slane %v1760, %v1765
        %v1768 = vunpack.c.l.s4 1934713408
        %v1769 = vunpack.c.0.s8 %v1768
        %v1770 = vperm.slane %v1762, %v1769
        %v1771 = vrot.slane %v1754, 4
        %v1772 = vsel %vm1187, 0.0, %v1771
        %v1773 = vrot.slane %v1758, 4
        %v1774 = vsel %vm1187, 0.0, %v1773
        %v1775 = vrot.slane %v1766, 4
        %v1776 = vsel %vm1187, 0.0, %v1775
        %v1777 = vrot.slane %v1770, 4
        %v1778 = vsel %vm1187, 0.0, %v1777
        %v1779 = vsel %vm1187, %v1717, %v1698
        %v1781 = vunpack.c.l.s4 1983009808
        %v1782 = vunpack.c.0.s8 %v1781
        %v1783 = vperm.slane %v1779, %v1782
        %v1784 = vrot.slane %v1718, 4
        %v1785 = vsel %vm1187, %v1784, %v1716
        %v1787 = vunpack.c.l.s4 1983009808
        %v1788 = vunpack.c.0.s8 %v1787
        %v1789 = vperm.slane %v1785, %v1788
        %v1790 = vsel %vm1187, %v1721, %v1710
        %v1792 = vunpack.c.l.s4 1983009808
        %v1793 = vunpack.c.0.s8 %v1792
        %v1794 = vperm.slane %v1790, %v1793
        %v1795 = vrot.slane %v1722, 4
        %v1796 = vsel %vm1187, %v1795, %v1720
        %v1798 = vunpack.c.l.s4 1983009808
        %v1799 = vunpack.c.0.s8 %v1798
        %v1800 = vperm.slane %v1796, %v1799
        %v1801 = vrot.slane %v1789, 4
        %v1802 = vsel %vm1187, %v1801, %v1783
        %v1803 = vrot.slane %v1783, 4
        %v1804 = vsel %vm1187, %v1789, %v1803
        %v1806 = vunpack.c.l.s4 1934713408
        %v1807 = vunpack.c.0.s8 %v1806
        %v1808 = vperm.slane %v1802, %v1807
        %v1810 = vunpack.c.l.s4 1934713408
        %v1811 = vunpack.c.0.s8 %v1810
        %v1812 = vperm.slane %v1804, %v1811
        %v1813 = vrot.slane %v1800, 4
        %v1814 = vsel %vm1187, %v1813, %v1794
        %v1815 = vrot.slane %v1794, 4
        %v1816 = vsel %vm1187, %v1800, %v1815
        %v1818 = vunpack.c.l.s4 1934713408
        %v1819 = vunpack.c.0.s8 %v1818
        %v1820 = vperm.slane %v1814, %v1819
        %v1822 = vunpack.c.l.s4 1934713408
        %v1823 = vunpack.c.0.s8 %v1822
        %v1824 = vperm.slane %v1816, %v1823
        %v1825 = vrot.slane %v1820, 4
        %v1826 = vsel %vm1187, %v1825, %v1808
        %v1827 = vrot.slane %v1808, 4
        %v1828 = vsel %vm1187, %v1820, %v1827
        %v1829 = vrot.slane %v1824, 4
        %v1830 = vsel %vm1187, %v1829, %v1812
        %v1831 = vrot.slane %v1812, 4
        %v1832 = vsel %vm1187, %v1824, %v1831
        %v1833 = vsel %vm1187, %v1773, %v1754
        %v1835 = vunpack.c.l.s4 1983009808
        %v1836 = vunpack.c.0.s8 %v1835
        %v1837 = vperm.slane %v1833, %v1836
        %v1838 = vrot.slane %v1774, 4
        %v1839 = vsel %vm1187, %v1838, %v1772
        %v1841 = vunpack.c.l.s4 1983009808
        %v1842 = vunpack.c.0.s8 %v1841
        %v1843 = vperm.slane %v1839, %v1842
        %v1844 = vsel %vm1187, %v1777, %v1766
        %v1846 = vunpack.c.l.s4 1983009808
        %v1847 = vunpack.c.0.s8 %v1846
        %v1848 = vperm.slane %v1844, %v1847
        %v1849 = vrot.slane %v1778, 4
        %v1850 = vsel %vm1187, %v1849, %v1776
        %v1852 = vunpack.c.l.s4 1983009808
        %v1853 = vunpack.c.0.s8 %v1852
        %v1854 = vperm.slane %v1850, %v1853
        %v1855 = vrot.slane %v1843, 4
        %v1856 = vsel %vm1187, %v1855, %v1837
        %v1857 = vrot.slane %v1837, 4
        %v1858 = vsel %vm1187, %v1843, %v1857
        %v1860 = vunpack.c.l.s4 1934713408
        %v1861 = vunpack.c.0.s8 %v1860
        %v1862 = vperm.slane %v1856, %v1861
        %v1864 = vunpack.c.l.s4 1934713408
        %v1865 = vunpack.c.0.s8 %v1864
        %v1866 = vperm.slane %v1858, %v1865
        %v1867 = vrot.slane %v1854, 4
        %v1868 = vsel %vm1187, %v1867, %v1848
        %v1869 = vrot.slane %v1848, 4
        %v1870 = vsel %vm1187, %v1854, %v1869
        %v1872 = vunpack.c.l.s4 1934713408
        %v1873 = vunpack.c.0.s8 %v1872
        %v1874 = vperm.slane %v1868, %v1873
        %v1876 = vunpack.c.l.s4 1934713408
        %v1877 = vunpack.c.0.s8 %v1876
        %v1878 = vperm.slane %v1870, %v1877
        %v1879 = vrot.slane %v1874, 4
        %v1880 = vsel %vm1187, %v1879, %v1862
        %v1881 = vrot.slane %v1862, 4
        %v1882 = vsel %vm1187, %v1874, %v1881
        %v1883 = vrot.slane %v1878, 4
        %v1884 = vsel %vm1187, %v1883, %v1866
        %v1885 = vrot.slane %v1866, 4
        %v1886 = vsel %vm1187, %v1878, %v1885
        %vm1887 = vcmask 261120
        %v1889 = vsel %vm1887, %v1346, 0
        %v1892 = vsel %vm1887, %v1400, 0
        %v1895 = vsel %vm1887, %v1586, 0
        %v1898 = vsel %vm1887, %v1640, 0
        %1900 = vmatpush.xpose.msra.mxu0 0.0
        %1901 = vmatpush.xpose.msra.mxu0 0.0
        %1902 = vmatpush.xpose.msra.mxu0 0.0
        %1903 = vmatpush.xpose.msra.mxu0 0.0
        %1904 = vmatpush.xpose.msra.mxu0 0.0
        %1905 = vmatpush.xpose.msra.mxu0 0.0
        %1906 = vmatpush.xpose.msra.mxu0 0.0
        %1907 = vmatpush.xpose.msra.mxu0 0.0
        %1908 = vmatpush.xpose.msra.mxu0 0.0
        %1909 = vmatpush.xpose.msra.mxu0 0.0
        %1910 = vmatpush.xpose.msra.mxu0 0.0
        %1911 = vmatpush.xpose.msra.mxu0 0.0
        %1912 = vmatpush.xpose.msra.mxu0 0.0
        %1913 = vmatpush.xpose.msra.mxu0 0.0
        %1914 = vmatpush.xpose.msra.mxu0 %v1898
        %1915 = vmatpush.xpose.msra.mxu0 %v1895
        %1916 = vmatmul.f32.gmra.mxu0 %v1889
        %v1917 = vpop.f32.mrf.mxu0
        %v1918 = vadd.f32 0.0, %v1917
        %1919 = vmatmul.f32.gmra.mxu0 %v1892
        %v1920 = vpop.f32.mrf.mxu0
        %v1921 = vadd.f32 0.0, %v1920
        %1922 = vdwg.mxu0
        %v1924 = vsel %vm1887, %v1348, 0
        %v1927 = vsel %vm1887, %v1402, 0
        %v1930 = vsel %vm1887, %v1588, 0
        %v1933 = vsel %vm1887, %v1642, 0
        %1935 = vmatpush.xpose.msra.mxu0 0.0
        %1936 = vmatpush.xpose.msra.mxu0 0.0
        %1937 = vmatpush.xpose.msra.mxu0 0.0
        %1938 = vmatpush.xpose.msra.mxu0 0.0
        %1939 = vmatpush.xpose.msra.mxu0 0.0
        %1940 = vmatpush.xpose.msra.mxu0 0.0
        %1941 = vmatpush.xpose.msra.mxu0 0.0
        %1942 = vmatpush.xpose.msra.mxu0 0.0
        %1943 = vmatpush.xpose.msra.mxu0 0.0
        %1944 = vmatpush.xpose.msra.mxu0 0.0
        %1945 = vmatpush.xpose.msra.mxu0 0.0
        %1946 = vmatpush.xpose.msra.mxu0 0.0
        %1947 = vmatpush.xpose.msra.mxu0 0.0
        %1948 = vmatpush.xpose.msra.mxu0 0.0
        %1949 = vmatpush.xpose.msra.mxu0 %v1933
        %1950 = vmatpush.xpose.msra.mxu0 %v1930
        %1951 = vmatmul.f32.gmra.mxu0 %v1924
        %v1952 = vpop.f32.mrf.mxu0
        %v1953 = vadd.f32 0.0, %v1952
        %1954 = vmatmul.f32.gmra.mxu0 %v1927
        %v1955 = vpop.f32.mrf.mxu0
        %v1956 = vadd.f32 0.0, %v1955
        %1957 = vdwg.mxu0
        %v1959 = vsel %vm1887, %v1350, 0
        %v1962 = vsel %vm1887, %v1404, 0
        %v1965 = vsel %vm1887, %v1590, 0
        %v1968 = vsel %vm1887, %v1644, 0
        %1970 = vmatpush.xpose.msra.mxu0 0.0
        %1971 = vmatpush.xpose.msra.mxu0 0.0
        %1972 = vmatpush.xpose.msra.mxu0 0.0
        %1973 = vmatpush.xpose.msra.mxu0 0.0
        %1974 = vmatpush.xpose.msra.mxu0 0.0
        %1975 = vmatpush.xpose.msra.mxu0 0.0
        %1976 = vmatpush.xpose.msra.mxu0 0.0
        %1977 = vmatpush.xpose.msra.mxu0 0.0
        %1978 = vmatpush.xpose.msra.mxu0 0.0
        %1979 = vmatpush.xpose.msra.mxu0 0.0
        %1980 = vmatpush.xpose.msra.mxu0 0.0
        %1981 = vmatpush.xpose.msra.mxu0 0.0
        %1982 = vmatpush.xpose.msra.mxu0 0.0
        %1983 = vmatpush.xpose.msra.mxu0 0.0
        %1984 = vmatpush.xpose.msra.mxu0 %v1968
        %1985 = vmatpush.xpose.msra.mxu0 %v1965
        %1986 = vmatmul.f32.gmra.mxu0 %v1959
        %v1987 = vpop.f32.mrf.mxu0
        %v1988 = vadd.f32 0.0, %v1987
        %1989 = vmatmul.f32.gmra.mxu0 %v1962
        %v1990 = vpop.f32.mrf.mxu0
        %v1991 = vadd.f32 0.0, %v1990
        %1992 = vdwg.mxu0
        %v1994 = vsel %vm1887, %v1352, 0
        %v1997 = vsel %vm1887, %v1406, 0
        %v2000 = vsel %vm1887, %v1592, 0
        %v2003 = vsel %vm1887, %v1646, 0
        %2005 = vmatpush.xpose.msra.mxu0 0.0
        %2006 = vmatpush.xpose.msra.mxu0 0.0
        %2007 = vmatpush.xpose.msra.mxu0 0.0
        %2008 = vmatpush.xpose.msra.mxu0 0.0
        %2009 = vmatpush.xpose.msra.mxu0 0.0
        %2010 = vmatpush.xpose.msra.mxu0 0.0
        %2011 = vmatpush.xpose.msra.mxu0 0.0
        %2012 = vmatpush.xpose.msra.mxu0 0.0
        %2013 = vmatpush.xpose.msra.mxu0 0.0
        %2014 = vmatpush.xpose.msra.mxu0 0.0
        %2015 = vmatpush.xpose.msra.mxu0 0.0
        %2016 = vmatpush.xpose.msra.mxu0 0.0
        %2017 = vmatpush.xpose.msra.mxu0 0.0
        %2018 = vmatpush.xpose.msra.mxu0 0.0
        %2019 = vmatpush.xpose.msra.mxu0 %v2003
        %2020 = vmatpush.xpose.msra.mxu0 %v2000
        %2021 = vmatmul.f32.gmra.mxu0 %v1994
        %v2022 = vpop.f32.mrf.mxu0
        %v2023 = vadd.f32 0.0, %v2022
        %2024 = vmatmul.f32.gmra.mxu0 %v1997
        %v2025 = vpop.f32.mrf.mxu0
        %v2026 = vadd.f32 0.0, %v2025
        %2027 = vdwg.mxu0
        %vm2028 = vcmask 130048
        %v2029 = vsel %vm2028, %v1918, -inf
        %2030 = vmax.xlane.f32.xlu0 %v2029
        %v2031 = vpop.xlane.xlu0 %2030
        %v2032 = vsel %vm2028, %v1921, -inf
        %2033 = vmax.xlane.f32.xlu0 %v2032
        %v2034 = vpop.xlane.xlu0 %2033
        %v2035 = vsel %vm2028, %v1953, -inf
        %2036 = vmax.xlane.f32.xlu0 %v2035
        %v2037 = vpop.xlane.xlu0 %2036
        %v2038 = vsel %vm2028, %v1956, -inf
        %2039 = vmax.xlane.f32.xlu0 %v2038
        %v2040 = vpop.xlane.xlu0 %2039
        %v2041 = vsel %vm2028, %v1988, -inf
        %2042 = vmax.xlane.f32.xlu0 %v2041
        %v2043 = vpop.xlane.xlu0 %2042
        %v2044 = vsel %vm2028, %v1991, -inf
        %2045 = vmax.xlane.f32.xlu0 %v2044
        %v2046 = vpop.xlane.xlu0 %2045
        %v2047 = vsel %vm2028, %v2023, -inf
        %2048 = vmax.xlane.f32.xlu0 %v2047
        %v2049 = vpop.xlane.xlu0 %2048
        %v2050 = vsel %vm2028, %v2026, -inf
        %2051 = vmax.xlane.f32.xlu0 %v2050
        %v2052 = vpop.xlane.xlu0 %2051
        %v2053 = vsub.f32 %v1918, %v2031
        %v2054 = vsub.f32 %v1921, %v2034
        %v2055 = vsub.f32 %v1953, %v2037
        %v2056 = vsub.f32 %v1956, %v2040
        %v2057 = vsub.f32 %v1988, %v2043
        %v2058 = vsub.f32 %v1991, %v2046
        %v2059 = vsub.f32 %v2023, %v2049
        %v2060 = vsub.f32 %v2026, %v2052
        %v2061 = vmul.f32 %v2053, 1.442695
        %v2062 = vpow.pop %v2061
        %v2063 = vmul.f32 %v2054, 1.442695
        %v2064 = vpow.pop %v2063
        %v2065 = vmul.f32 %v2055, 1.442695
        %v2066 = vpow.pop %v2065
        %v2067 = vmul.f32 %v2056, 1.442695
        %v2068 = vpow.pop %v2067
        %v2069 = vmul.f32 %v2057, 1.442695
        %v2070 = vpow.pop %v2069
        %v2071 = vmul.f32 %v2058, 1.442695
        %v2072 = vpow.pop %v2071
        %v2073 = vmul.f32 %v2059, 1.442695
        %v2074 = vpow.pop %v2073
        %v2075 = vmul.f32 %v2060, 1.442695
        %v2076 = vpow.pop %v2075
        %v2077 = vsel %vm2028, %v2062, 0.0
        %2078 = vadd.xlane.f32.xlu0 %v2077
        %v2079 = vpop.xlane.xlu0 %2078
        %v2080 = vsel %vm2028, %v2064, 0.0
        %2081 = vadd.xlane.f32.xlu0 %v2080
        %v2082 = vpop.xlane.xlu0 %2081
        %v2083 = vsel %vm2028, %v2066, 0.0
        %2084 = vadd.xlane.f32.xlu0 %v2083
        %v2085 = vpop.xlane.xlu0 %2084
        %v2086 = vsel %vm2028, %v2068, 0.0
        %2087 = vadd.xlane.f32.xlu0 %v2086
        %v2088 = vpop.xlane.xlu0 %2087
        %v2089 = vsel %vm2028, %v2070, 0.0
        %2090 = vadd.xlane.f32.xlu0 %v2089
        %v2091 = vpop.xlane.xlu0 %2090
        %v2092 = vsel %vm2028, %v2072, 0.0
        %2093 = vadd.xlane.f32.xlu0 %v2092
        %v2094 = vpop.xlane.xlu0 %2093
        %v2095 = vsel %vm2028, %v2074, 0.0
        %2096 = vadd.xlane.f32.xlu0 %v2095
        %v2097 = vpop.xlane.xlu0 %2096
        %v2098 = vsel %vm2028, %v2076, 0.0
        %2099 = vadd.xlane.f32.xlu0 %v2098
        %v2100 = vpop.xlane.xlu0 %2099
        %v2101 = vrcp.pop %v2079
        %v2102 = vrcp.pop %v2082
        %v2103 = vrcp.pop %v2085
        %v2104 = vrcp.pop %v2088
        %v2105 = vrcp.pop %v2091
        %v2106 = vrcp.pop %v2094
        %v2107 = vrcp.pop %v2097
        %v2108 = vrcp.pop %v2100
        %v2109 = vmul.f32 %v2062, %v2101
        %v2110 = vmul.f32 %v2064, %v2102
        %v2111 = vmul.f32 %v2066, %v2103
        %v2112 = vmul.f32 %v2068, %v2104
        %v2113 = vmul.f32 %v2070, %v2105
        %v2114 = vmul.f32 %v2072, %v2106
        %v2115 = vmul.f32 %v2074, %v2107
        %v2116 = vmul.f32 %v2076, %v2108
        %v2118 = vsel %vm2028, %v2109, 0
        %v2121 = vsel %vm2028, %v2110, 0
        %2123 = vmatpush.msra.mxu0 0.0
        %2124 = vmatpush.msra.mxu0 0.0
        %2125 = vmatpush.msra.mxu0 0.0
        %2126 = vmatpush.msra.mxu0 0.0
        %2127 = vmatpush.msra.mxu0 0.0
        %2128 = vmatpush.msra.mxu0 0.0
        %2129 = vmatpush.msra.mxu0 0.0
        %2130 = vmatpush.msra.mxu0 0.0
        %2131 = vmatpush.msra.mxu0 0.0
        %2132 = vmatpush.msra.mxu0 0.0
        %2133 = vmatpush.msra.mxu0 0.0
        %2134 = vmatpush.msra.mxu0 0.0
        %2135 = vmatpush.msra.mxu0 0.0
        %2136 = vmatpush.msra.mxu0 0.0
        %2137 = vmatpush.msra.mxu0 %v1880
        %2138 = vmatpush.msra.mxu0 %v1826
        %2139 = vmatmul.f32.gmra.mxu0 %v2118
        %v2140 = vpop.f32.mrf.mxu0
        %v2141 = vadd.f32 0.0, %v2140
        %2142 = vmatmul.f32.gmra.mxu0 %v2121
        %v2143 = vpop.f32.mrf.mxu0
        %v2144 = vadd.f32 0.0, %v2143
        %2145 = vdwg.mxu0
        %v2147 = vsel %vm2028, %v2111, 0
        %v2150 = vsel %vm2028, %v2112, 0
        %2152 = vmatpush.msra.mxu0 0.0
        %2153 = vmatpush.msra.mxu0 0.0
        %2154 = vmatpush.msra.mxu0 0.0
        %2155 = vmatpush.msra.mxu0 0.0
        %2156 = vmatpush.msra.mxu0 0.0
        %2157 = vmatpush.msra.mxu0 0.0
        %2158 = vmatpush.msra.mxu0 0.0
        %2159 = vmatpush.msra.mxu0 0.0
        %2160 = vmatpush.msra.mxu0 0.0
        %2161 = vmatpush.msra.mxu0 0.0
        %2162 = vmatpush.msra.mxu0 0.0
        %2163 = vmatpush.msra.mxu0 0.0
        %2164 = vmatpush.msra.mxu0 0.0
        %2165 = vmatpush.msra.mxu0 0.0
        %2166 = vmatpush.msra.mxu0 %v1882
        %2167 = vmatpush.msra.mxu0 %v1828
        %2168 = vmatmul.f32.gmra.mxu0 %v2147
        %v2169 = vpop.f32.mrf.mxu0
        %v2170 = vadd.f32 0.0, %v2169
        %2171 = vmatmul.f32.gmra.mxu0 %v2150
        %v2172 = vpop.f32.mrf.mxu0
        %v2173 = vadd.f32 0.0, %v2172
        %2174 = vdwg.mxu0
        %v2176 = vsel %vm2028, %v2113, 0
        %v2179 = vsel %vm2028, %v2114, 0
        %2181 = vmatpush.msra.mxu0 0.0
        %2182 = vmatpush.msra.mxu0 0.0
        %2183 = vmatpush.msra.mxu0 0.0
        %2184 = vmatpush.msra.mxu0 0.0
        %2185 = vmatpush.msra.mxu0 0.0
        %2186 = vmatpush.msra.mxu0 0.0
        %2187 = vmatpush.msra.mxu0 0.0
        %2188 = vmatpush.msra.mxu0 0.0
        %2189 = vmatpush.msra.mxu0 0.0
        %2190 = vmatpush.msra.mxu0 0.0
        %2191 = vmatpush.msra.mxu0 0.0
        %2192 = vmatpush.msra.mxu0 0.0
        %2193 = vmatpush.msra.mxu0 0.0
        %2194 = vmatpush.msra.mxu0 0.0
        %2195 = vmatpush.msra.mxu0 %v1884
        %2196 = vmatpush.msra.mxu0 %v1830
        %2197 = vmatmul.f32.gmra.mxu0 %v2176
        %v2198 = vpop.f32.mrf.mxu0
        %v2199 = vadd.f32 0.0, %v2198
        %2200 = vmatmul.f32.gmra.mxu0 %v2179
        %v2201 = vpop.f32.mrf.mxu0
        %v2202 = vadd.f32 0.0, %v2201
        %2203 = vdwg.mxu0
        %v2205 = vsel %vm2028, %v2115, 0
        %v2208 = vsel %vm2028, %v2116, 0
        %2210 = vmatpush.msra.mxu0 0.0
        %2211 = vmatpush.msra.mxu0 0.0
        %2212 = vmatpush.msra.mxu0 0.0
        %2213 = vmatpush.msra.mxu0 0.0
        %2214 = vmatpush.msra.mxu0 0.0
        %2215 = vmatpush.msra.mxu0 0.0
        %2216 = vmatpush.msra.mxu0 0.0
        %2217 = vmatpush.msra.mxu0 0.0
        %2218 = vmatpush.msra.mxu0 0.0
        %2219 = vmatpush.msra.mxu0 0.0
        %2220 = vmatpush.msra.mxu0 0.0
        %2221 = vmatpush.msra.mxu0 0.0
        %2222 = vmatpush.msra.mxu0 0.0
        %2223 = vmatpush.msra.mxu0 0.0
        %2224 = vmatpush.msra.mxu0 %v1886
        %2225 = vmatpush.msra.mxu0 %v1832
        %2226 = vmatmul.f32.gmra.mxu0 %v2205
        %v2227 = vpop.f32.mrf.mxu0
        %v2228 = vadd.f32 0.0, %v2227
        %2229 = vmatmul.f32.gmra.mxu0 %v2208
        %v2230 = vpop.f32.mrf.mxu0
        %v2231 = vadd.f32 0.0, %v2230
        %2232 = vdwg.mxu0
        %v2233 = vrot.slane %v2199, 4
        %v2234 = vsel %vm1187, %v2233, %v2141
        %v2235 = vrot.slane %v2141, 4
        %v2236 = vsel %vm1187, %v2199, %v2235
        %v2238 = vunpack.c.l.s4 1983009808
        %v2239 = vunpack.c.0.s8 %v2238
        %v2240 = vperm.slane %v2234, %v2239
        %v2242 = vunpack.c.l.s4 1983009808
        %v2243 = vunpack.c.0.s8 %v2242
        %v2244 = vperm.slane %v2236, %v2243
        %v2245 = vrot.slane %v2228, 4
        %v2246 = vsel %vm1187, %v2245, %v2170
        %v2247 = vrot.slane %v2170, 4
        %v2248 = vsel %vm1187, %v2228, %v2247
        %v2250 = vunpack.c.l.s4 1983009808
        %v2251 = vunpack.c.0.s8 %v2250
        %v2252 = vperm.slane %v2246, %v2251
        %v2254 = vunpack.c.l.s4 1983009808
        %v2255 = vunpack.c.0.s8 %v2254
        %v2256 = vperm.slane %v2248, %v2255
        %v2257 = vrot.slane %v2252, 4
        %v2258 = vsel %vm1187, %v2257, %v2240
        %v2259 = vrot.slane %v2240, 4
        %v2260 = vsel %vm1187, %v2252, %v2259
        %v2262 = vunpack.c.l.s4 1934713408
        %v2263 = vunpack.c.0.s8 %v2262
        %v2264 = vperm.slane %v2258, %v2263
        %v2266 = vunpack.c.l.s4 1934713408
        %v2267 = vunpack.c.0.s8 %v2266
        %v2268 = vperm.slane %v2260, %v2267
        %v2269 = vrot.slane %v2256, 4
        %v2270 = vsel %vm1187, %v2269, %v2244
        %v2271 = vrot.slane %v2244, 4
        %v2272 = vsel %vm1187, %v2256, %v2271
        %v2274 = vunpack.c.l.s4 1934713408
        %v2275 = vunpack.c.0.s8 %v2274
        %v2276 = vperm.slane %v2270, %v2275
        %v2278 = vunpack.c.l.s4 1934713408
        %v2279 = vunpack.c.0.s8 %v2278
        %v2280 = vperm.slane %v2272, %v2279
        %v2281 = vrot.slane %v2264, 4
        %v2282 = vsel %vm1187, 0.0, %v2281
        %v2283 = vrot.slane %v2268, 4
        %v2284 = vsel %vm1187, 0.0, %v2283
        %v2285 = vrot.slane %v2276, 4
        %v2286 = vsel %vm1187, 0.0, %v2285
        %v2287 = vrot.slane %v2280, 4
        %v2288 = vsel %vm1187, 0.0, %v2287
        %v2289 = vrot.slane %v2202, 4
        %v2290 = vsel %vm1187, %v2289, %v2144
        %v2291 = vrot.slane %v2144, 4
        %v2292 = vsel %vm1187, %v2202, %v2291
        %v2294 = vunpack.c.l.s4 1983009808
        %v2295 = vunpack.c.0.s8 %v2294
        %v2296 = vperm.slane %v2290, %v2295
        %v2298 = vunpack.c.l.s4 1983009808
        %v2299 = vunpack.c.0.s8 %v2298
        %v2300 = vperm.slane %v2292, %v2299
        %v2301 = vrot.slane %v2231, 4
        %v2302 = vsel %vm1187, %v2301, %v2173
        %v2303 = vrot.slane %v2173, 4
        %v2304 = vsel %vm1187, %v2231, %v2303
        %v2306 = vunpack.c.l.s4 1983009808
        %v2307 = vunpack.c.0.s8 %v2306
        %v2308 = vperm.slane %v2302, %v2307
        %v2310 = vunpack.c.l.s4 1983009808
        %v2311 = vunpack.c.0.s8 %v2310
        %v2312 = vperm.slane %v2304, %v2311
        %v2313 = vrot.slane %v2308, 4
        %v2314 = vsel %vm1187, %v2313, %v2296
        %v2315 = vrot.slane %v2296, 4
        %v2316 = vsel %vm1187, %v2308, %v2315
        %v2318 = vunpack.c.l.s4 1934713408
        %v2319 = vunpack.c.0.s8 %v2318
        %v2320 = vperm.slane %v2314, %v2319
        %v2322 = vunpack.c.l.s4 1934713408
        %v2323 = vunpack.c.0.s8 %v2322
        %v2324 = vperm.slane %v2316, %v2323
        %v2325 = vrot.slane %v2312, 4
        %v2326 = vsel %vm1187, %v2325, %v2300
        %v2327 = vrot.slane %v2300, 4
        %v2328 = vsel %vm1187, %v2312, %v2327
        %v2330 = vunpack.c.l.s4 1934713408
        %v2331 = vunpack.c.0.s8 %v2330
        %v2332 = vperm.slane %v2326, %v2331
        %v2334 = vunpack.c.l.s4 1934713408
        %v2335 = vunpack.c.0.s8 %v2334
        %v2336 = vperm.slane %v2328, %v2335
        %v2337 = vrot.slane %v2320, 4
        %v2338 = vsel %vm1187, 0.0, %v2337
        %v2339 = vrot.slane %v2324, 4
        %v2340 = vsel %vm1187, 0.0, %v2339
        %v2341 = vrot.slane %v2332, 4
        %v2342 = vsel %vm1187, 0.0, %v2341
        %v2343 = vrot.slane %v2336, 4
        %v2344 = vsel %vm1187, 0.0, %v2343
        %v2345 = vsel %vm1187, %v2283, %v2264
        %v2347 = vunpack.c.l.s4 1983009808
        %v2348 = vunpack.c.0.s8 %v2347
        %v2349 = vperm.slane %v2345, %v2348
        %v2350 = vrot.slane %v2284, 4
        %v2351 = vsel %vm1187, %v2350, %v2282
        %v2353 = vunpack.c.l.s4 1983009808
        %v2354 = vunpack.c.0.s8 %v2353
        %v2355 = vperm.slane %v2351, %v2354
        %v2356 = vsel %vm1187, %v2287, %v2276
        %v2358 = vunpack.c.l.s4 1983009808
        %v2359 = vunpack.c.0.s8 %v2358
        %v2360 = vperm.slane %v2356, %v2359
        %v2361 = vrot.slane %v2288, 4
        %v2362 = vsel %vm1187, %v2361, %v2286
        %v2364 = vunpack.c.l.s4 1983009808
        %v2365 = vunpack.c.0.s8 %v2364
        %v2366 = vperm.slane %v2362, %v2365
        %v2367 = vrot.slane %v2355, 4
        %v2368 = vsel %vm1187, %v2367, %v2349
        %v2369 = vrot.slane %v2349, 4
        %v2370 = vsel %vm1187, %v2355, %v2369
        %v2372 = vunpack.c.l.s4 1934713408
        %v2373 = vunpack.c.0.s8 %v2372
        %v2374 = vperm.slane %v2368, %v2373
        %v2376 = vunpack.c.l.s4 1934713408
        %v2377 = vunpack.c.0.s8 %v2376
        %v2378 = vperm.slane %v2370, %v2377
        %v2379 = vrot.slane %v2366, 4
        %v2380 = vsel %vm1187, %v2379, %v2360
        %v2381 = vrot.slane %v2360, 4
        %v2382 = vsel %vm1187, %v2366, %v2381
        %v2384 = vunpack.c.l.s4 1934713408
        %v2385 = vunpack.c.0.s8 %v2384
        %v2386 = vperm.slane %v2380, %v2385
        %v2388 = vunpack.c.l.s4 1934713408
        %v2389 = vunpack.c.0.s8 %v2388
        %v2390 = vperm.slane %v2382, %v2389
        %v2391 = vrot.slane %v2386, 4
        %v2392 = vsel %vm1187, %v2391, %v2374
        %v2393 = vrot.slane %v2374, 4
        %v2394 = vsel %vm1187, %v2386, %v2393
        %v2395 = vrot.slane %v2390, 4
        %v2396 = vsel %vm1187, %v2395, %v2378
        %v2397 = vrot.slane %v2378, 4
        %v2398 = vsel %vm1187, %v2390, %v2397
        %v2399 = vsel %vm1187, %v2339, %v2320
        %v2401 = vunpack.c.l.s4 1983009808
        %v2402 = vunpack.c.0.s8 %v2401
        %v2403 = vperm.slane %v2399, %v2402
        %v2404 = vrot.slane %v2340, 4
        %v2405 = vsel %vm1187, %v2404, %v2338
        %v2407 = vunpack.c.l.s4 1983009808
        %v2408 = vunpack.c.0.s8 %v2407
        %v2409 = vperm.slane %v2405, %v2408
        %v2410 = vsel %vm1187, %v2343, %v2332
        %v2412 = vunpack.c.l.s4 1983009808
        %v2413 = vunpack.c.0.s8 %v2412
        %v2414 = vperm.slane %v2410, %v2413
        %v2415 = vrot.slane %v2344, 4
        %v2416 = vsel %vm1187, %v2415, %v2342
        %v2418 = vunpack.c.l.s4 1983009808
        %v2419 = vunpack.c.0.s8 %v2418
        %v2420 = vperm.slane %v2416, %v2419
        %v2421 = vrot.slane %v2409, 4
        %v2422 = vsel %vm1187, %v2421, %v2403
        %v2423 = vrot.slane %v2403, 4
        %v2424 = vsel %vm1187, %v2409, %v2423
        %v2426 = vunpack.c.l.s4 1934713408
        %v2427 = vunpack.c.0.s8 %v2426
        %v2428 = vperm.slane %v2422, %v2427
        %v2430 = vunpack.c.l.s4 1934713408
        %v2431 = vunpack.c.0.s8 %v2430
        %v2432 = vperm.slane %v2424, %v2431
        %v2433 = vrot.slane %v2420, 4
        %v2434 = vsel %vm1187, %v2433, %v2414
        %v2435 = vrot.slane %v2414, 4
        %v2436 = vsel %vm1187, %v2420, %v2435
        %v2438 = vunpack.c.l.s4 1934713408
        %v2439 = vunpack.c.0.s8 %v2438
        %v2440 = vperm.slane %v2434, %v2439
        %v2442 = vunpack.c.l.s4 1934713408
        %v2443 = vunpack.c.0.s8 %v2442
        %v2444 = vperm.slane %v2436, %v2443
        %v2445 = vrot.slane %v2440, 4
        %v2446 = vsel %vm1187, %v2445, %v2428
        %v2447 = vrot.slane %v2428, 4
        %v2448 = vsel %vm1187, %v2440, %v2447
        %v2449 = vrot.slane %v2444, 4
        %v2450 = vsel %vm1187, %v2449, %v2432
        %v2451 = vrot.slane %v2432, 4
        %v2452 = vsel %vm1187, %v2444, %v2451
        %2455 = vrot.lane.b32.xlu0 %v2394, 32
        %v2456 = vpop.permute.xlu0 %2455
        %2457 = vrot.lane.b32.xlu0 %v2448, 32
        %v2458 = vpop.permute.xlu0 %2457
        %2463 = vrot.lane.b32.xlu0 %v2396, 64
        %v2464 = vpop.permute.xlu0 %2463
        %2465 = vrot.lane.b32.xlu0 %v2450, 64
        %v2466 = vpop.permute.xlu0 %2465
        %2471 = vrot.lane.b32.xlu0 %v2398, 96
        %v2472 = vpop.permute.xlu0 %2471
        %2473 = vrot.lane.b32.xlu0 %v2452, 96
        %v2474 = vpop.permute.xlu0 %2473
        %v2477 = vsel %vm1887, %v2392, %v2456
        %v2478 = vsel %vm1887, %v2446, %v2458
        %vm2479 = vcmask 523264
        %v2480 = vsel %vm2479, %v2477, %v2464
        %v2481 = vsel %vm2479, %v2478, %v2466
        %vm2482 = vcmask 785408
        %v2483 = vsel %vm2482, %v2480, %v2472
        %v2484 = vsel %vm2482, %v2481, %v2474
        %v2485 = vld [vmem:[#allocation13] sm:$0xff]
        %v2486 = vld [vmem:[#allocation13 + $0x8] sm:$0xff]
        %v2487 = vld [vmem:[#allocation13 + $0x10] sm:$0xff]
        %v2488 = vld [vmem:[#allocation13 + $0x18] sm:$0xff]
        %v2489 = vld [vmem:[#allocation13 + $0x20] sm:$0xff]
        %v2490 = vld [vmem:[#allocation13 + $0x28] sm:$0xff]
        %v2491 = vld [vmem:[#allocation13 + $0x30] sm:$0xff]
        %v2492 = vld [vmem:[#allocation13 + $0x38] sm:$0xff]
        %v2493 = vld [vmem:[#allocation13 + $0x40] sm:$0xff]
        %v2494 = vld [vmem:[#allocation13 + $0x48] sm:$0xff]
        %v2495 = vld [vmem:[#allocation13 + $0x50] sm:$0xff]
        %v2496 = vld [vmem:[#allocation13 + $0x58] sm:$0xff]
        %v2497 = vld [vmem:[#allocation13 + $0x60] sm:$0xff]
        %v2498 = vld [vmem:[#allocation13 + $0x68] sm:$0xff]
        %v2499 = vld [vmem:[#allocation13 + $0x70] sm:$0xff]
        %v2500 = vld [vmem:[#allocation13 + $0x78] sm:$0xff]
        %v2501 = vld [vmem:[%s8] sm:$0x1]
        %v2503 = vperm.slane %v2501, 0
        %2505 = vmatpush.msra.mxu0 %v2500
        %2506 = vmatpush.msra.mxu0 %v2499
        %2507 = vmatpush.msra.mxu0 %v2498
        %2508 = vmatpush.msra.mxu0 %v2497
        %2509 = vmatpush.msra.mxu0 %v2496
        %2510 = vmatpush.msra.mxu0 %v2495
        %2511 = vmatpush.msra.mxu0 %v2494
        %2512 = vmatpush.msra.mxu0 %v2493
        %2513 = vmatpush.msra.mxu0 %v2492
        %2514 = vmatpush.msra.mxu0 %v2491
        %2515 = vmatpush.msra.mxu0 %v2490
        %2516 = vmatpush.msra.mxu0 %v2489
        %2517 = vmatpush.msra.mxu0 %v2488
        %2518 = vmatpush.msra.mxu0 %v2487
        %2519 = vmatpush.msra.mxu0 %v2486
        %2520 = vmatpush.msra.mxu0 %v2485
        %2521 = vmatmul.f32.gmra.mxu0 %v2483
        %v2522 = vpop.f32.mrf.mxu0
        %v2523 = vadd.f32 %v2503, %v2522
        %2524 = vmatmul.f32.gmra.mxu0 %v2484
        %v2525 = vpop.f32.mrf.mxu0
        %v2526 = vadd.f32 %v2503, %v2525
        %2527 = vdwg.mxu0
        %v2528 = vadd.f32 %v1033, %v2523
        %v2529 = vadd.f32 %v1034, %v2526
        %2530 = vadd.xlane.f32.xlu0 %v2528
        %v2531 = vpop.xlane.xlu0 %2530
        %2532 = vadd.xlane.f32.xlu0 %v2529
        %v2533 = vpop.xlane.xlu0 %2532
        %v2534 = vrcp.pop 128.0
        %v2535 = vmul.f32 128.0, %v2534
        %v2536 = vsub.f32 1.0, %v2535
        %v2537 = vmul.f32 %v2534, %v2536
        %v2538 = vadd.f32 %v2534, %v2537
        %vm2539 = vweird.f32 %v2534
        %v2540 = vsel %vm2539, %v2534, %v2538
        %v2541 = vmul.f32 %v2531, %v2540
        %v2542 = vmul.f32 %v2533, %v2540
        %v2543 = vsub.f32 %v2528, %v2541
        %v2544 = vsub.f32 %v2529, %v2542
        %v2545 = vmul.f32 %v2543, %v2543
        %v2546 = vmul.f32 %v2544, %v2544
        %2547 = vadd.xlane.f32.xlu0 %v2545
        %v2548 = vpop.xlane.xlu0 %2547
        %2549 = vadd.xlane.f32.xlu0 %v2546
        %v2550 = vpop.xlane.xlu0 %2549
        %v2551 = vmul.f32 %v2548, %v2540
        %v2552 = vmul.f32 %v2550, %v2540
        %v2553 = vadd.f32 %v2551, 1e-05
        %v2554 = vadd.f32 %v2552, 1e-05
        %v2555 = vrsqrt.pop %v2553
        %v2556 = vmul.f32 %v2555, %v2553
        %v2557 = vmul.f32 %v2556, %v2555
        %v2558 = vmul.f32 0.5, %v2557
        %v2559 = vsub.f32 1.5, %v2558
        %v2560 = vmul.f32 %v2555, %v2559
        %vm2561 = vweird.f32 %v2553
        %vm2562 = vweird.f32 %v2555
        %vm2563 = vmor %vm2561, %vm2562
        %v2564 = vsel %vm2563, %v2555, %v2560
        %v2565 = vrsqrt.pop %v2554
        %v2566 = vmul.f32 %v2565, %v2554
        %v2567 = vmul.f32 %v2566, %v2565
        %v2568 = vmul.f32 0.5, %v2567
        %v2569 = vsub.f32 1.5, %v2568
        %v2570 = vmul.f32 %v2565, %v2569
        %vm2571 = vweird.f32 %v2554
        %vm2572 = vweird.f32 %v2565
        %vm2573 = vmor %vm2571, %vm2572
        %v2574 = vsel %vm2573, %v2565, %v2570
        %v2575 = vmul.f32 %v2543, %v2564
        %v2576 = vmul.f32 %v2544, %v2574
        %v2577 = vld [vmem:[%s19] sm:$0x1]
        %v2579 = vperm.slane %v2577, 0
        %v2581 = vmul.f32 %v2575, %v2579
        %v2582 = vmul.f32 %v2576, %v2579
        %v2583 = vld [vmem:[%s20] sm:$0x1]
        %v2585 = vperm.slane %v2583, 0
        %v2587 = vadd.f32 %v2581, %v2585
        %v2588 = vadd.f32 %v2582, %v2585
        %v2589 = vld [vmem:[#allocation14] sm:$0xff]
        %v2590 = vld [vmem:[#allocation14 + $0x8] sm:$0xff]
        %v2591 = vld [vmem:[#allocation14 + $0x10] sm:$0xff]
        %v2592 = vld [vmem:[#allocation14 + $0x18] sm:$0xff]
        %v2593 = vld [vmem:[#allocation14 + $0x20] sm:$0xff]
        %v2594 = vld [vmem:[#allocation14 + $0x28] sm:$0xff]
        %v2595 = vld [vmem:[#allocation14 + $0x30] sm:$0xff]
        %v2596 = vld [vmem:[#allocation14 + $0x38] sm:$0xff]
        %v2597 = vld [vmem:[#allocation14 + $0x40] sm:$0xff]
        %v2598 = vld [vmem:[#allocation14 + $0x48] sm:$0xff]
        %v2599 = vld [vmem:[#allocation14 + $0x50] sm:$0xff]
        %v2600 = vld [vmem:[#allocation14 + $0x58] sm:$0xff]
        %v2601 = vld [vmem:[#allocation14 + $0x60] sm:$0xff]
        %v2602 = vld [vmem:[#allocation14 + $0x68] sm:$0xff]
        %v2603 = vld [vmem:[#allocation14 + $0x70] sm:$0xff]
        %v2604 = vld [vmem:[#allocation14 + $0x78] sm:$0xff]
        %v2605 = vld [vmem:[%s10] sm:$0x1]
        %v2607 = vperm.slane %v2605, 0
        %2609 = vmatpush.msra.mxu0 %v2604
        %2610 = vmatpush.msra.mxu0 %v2603
        %2611 = vmatpush.msra.mxu0 %v2602
        %2612 = vmatpush.msra.mxu0 %v2601
        %2613 = vmatpush.msra.mxu0 %v2600
        %2614 = vmatpush.msra.mxu0 %v2599
        %2615 = vmatpush.msra.mxu0 %v2598
        %2616 = vmatpush.msra.mxu0 %v2597
        %2617 = vmatpush.msra.mxu0 %v2596
        %2618 = vmatpush.msra.mxu0 %v2595
        %2619 = vmatpush.msra.mxu0 %v2594
        %2620 = vmatpush.msra.mxu0 %v2593
        %2621 = vmatpush.msra.mxu0 %v2592
        %2622 = vmatpush.msra.mxu0 %v2591
        %2623 = vmatpush.msra.mxu0 %v2590
        %2624 = vmatpush.msra.mxu0 %v2589
        %2625 = vmatmul.f32.gmra.mxu0 %v2587
        %v2626 = vpop.f32.mrf.mxu0
        %v2627 = vadd.f32 %v2607, %v2626
        %2628 = vmatmul.f32.gmra.mxu0 %v2588
        %v2629 = vpop.f32.mrf.mxu0
        %v2630 = vadd.f32 %v2607, %v2629
        %2631 = vdwg.mxu0
        %v2632 = vld [vmem:[#allocation16] sm:$0xff]
        %v2633 = vld [vmem:[#allocation16 + $0x8] sm:$0xff]
        %v2634 = vld [vmem:[#allocation16 + $0x10] sm:$0xff]
        %v2635 = vld [vmem:[#allocation16 + $0x18] sm:$0xff]
        %v2636 = vld [vmem:[#allocation16 + $0x20] sm:$0xff]
        %v2637 = vld [vmem:[#allocation16 + $0x28] sm:$0xff]
        %v2638 = vld [vmem:[#allocation16 + $0x30] sm:$0xff]
        %v2639 = vld [vmem:[#allocation16 + $0x38] sm:$0xff]
        %v2640 = vld [vmem:[#allocation16 + $0x40] sm:$0xff]
        %v2641 = vld [vmem:[#allocation16 + $0x48] sm:$0xff]
        %v2642 = vld [vmem:[#allocation16 + $0x50] sm:$0xff]
        %v2643 = vld [vmem:[#allocation16 + $0x58] sm:$0xff]
        %v2644 = vld [vmem:[#allocation16 + $0x60] sm:$0xff]
        %v2645 = vld [vmem:[#allocation16 + $0x68] sm:$0xff]
        %v2646 = vld [vmem:[#allocation16 + $0x70] sm:$0xff]
        %v2647 = vld [vmem:[#allocation16 + $0x78] sm:$0xff]
        %v2648 = vld [vmem:[#allocation16 + $0x80] sm:$0xff]
        %v2649 = vld [vmem:[#allocation16 + $0x88] sm:$0xff]
        %v2650 = vld [vmem:[#allocation16 + $0x90] sm:$0xff]
        %v2651 = vld [vmem:[#allocation16 + $0x98] sm:$0xff]
        %v2652 = vld [vmem:[#allocation16 + $0xa0] sm:$0xff]
        %v2653 = vld [vmem:[#allocation16 + $0xa8] sm:$0xff]
        %v2654 = vld [vmem:[#allocation16 + $0xb0] sm:$0xff]
        %v2655 = vld [vmem:[#allocation16 + $0xb8] sm:$0xff]
        %v2656 = vld [vmem:[#allocation16 + $0xc0] sm:$0xff]
        %v2657 = vld [vmem:[#allocation16 + $0xc8] sm:$0xff]
        %v2658 = vld [vmem:[#allocation16 + $0xd0] sm:$0xff]
        %v2659 = vld [vmem:[#allocation16 + $0xd8] sm:$0xff]
        %v2660 = vld [vmem:[#allocation16 + $0xe0] sm:$0xff]
        %v2661 = vld [vmem:[#allocation16 + $0xe8] sm:$0xff]
        %v2662 = vld [vmem:[#allocation16 + $0xf0] sm:$0xff]
        %v2663 = vld [vmem:[#allocation16 + $0xf8] sm:$0xff]
        %v2664 = vld [vmem:[%s12] sm:$0x3]
        %v2666 = vperm.slane %v2664, 0
        %v2667 = vperm.slane %v2664, 1
        %2670 = vmatpush.msra.mxu0 %v2662
        %2671 = vmatpush.msra.mxu0 %v2660
        %2672 = vmatpush.msra.mxu0 %v2658
        %2673 = vmatpush.msra.mxu0 %v2656
        %2674 = vmatpush.msra.mxu0 %v2654
        %2675 = vmatpush.msra.mxu0 %v2652
        %2676 = vmatpush.msra.mxu0 %v2650
        %2677 = vmatpush.msra.mxu0 %v2648
        %2678 = vmatpush.msra.mxu0 %v2646
        %2679 = vmatpush.msra.mxu0 %v2644
        %2680 = vmatpush.msra.mxu0 %v2642
        %2681 = vmatpush.msra.mxu0 %v2640
        %2682 = vmatpush.msra.mxu0 %v2638
        %2683 = vmatpush.msra.mxu0 %v2636
        %2684 = vmatpush.msra.mxu0 %v2634
        %2685 = vmatpush.msra.mxu0 %v2632
        %2686 = vmatmul.f32.gmra.mxu0 %v1037
        %v2687 = vpop.f32.mrf.mxu0
        %v2688 = vadd.f32 %v2666, %v2687
        %2689 = vmatmul.f32.gmra.mxu0 %v1038
        %v2690 = vpop.f32.mrf.mxu0
        %v2691 = vadd.f32 %v2666, %v2690
        %2692 = vdwg.mxu0
        %2693 = vmatpush.msra.mxu0 %v2663
        %2694 = vmatpush.msra.mxu0 %v2661
        %2695 = vmatpush.msra.mxu0 %v2659
        %2696 = vmatpush.msra.mxu0 %v2657
        %2697 = vmatpush.msra.mxu0 %v2655
        %2698 = vmatpush.msra.mxu0 %v2653
        %2699 = vmatpush.msra.mxu0 %v2651
        %2700 = vmatpush.msra.mxu0 %v2649
        %2701 = vmatpush.msra.mxu0 %v2647
        %2702 = vmatpush.msra.mxu0 %v2645
        %2703 = vmatpush.msra.mxu0 %v2643
        %2704 = vmatpush.msra.mxu0 %v2641
        %2705 = vmatpush.msra.mxu0 %v2639
        %2706 = vmatpush.msra.mxu0 %v2637
        %2707 = vmatpush.msra.mxu0 %v2635
        %2708 = vmatpush.msra.mxu0 %v2633
        %2709 = vmatmul.f32.gmra.mxu0 %v1037
        %v2710 = vpop.f32.mrf.mxu0
        %v2711 = vadd.f32 %v2667, %v2710
        %2712 = vmatmul.f32.gmra.mxu0 %v1038
        %v2713 = vpop.f32.mrf.mxu0
        %v2714 = vadd.f32 %v2667, %v2713
        %2715 = vdwg.mxu0
        %2718 = vrot.lane.b32.xlu0 %v2627, 96
        %v2719 = vpop.permute.xlu0 %2718
        %2720 = vrot.lane.b32.xlu0 %v2630, 96
        %v2721 = vpop.permute.xlu0 %2720
        %2724 = vrot.lane.b32.xlu0 %v2627, 64
        %v2725 = vpop.permute.xlu0 %2724
        %2726 = vrot.lane.b32.xlu0 %v2630, 64
        %v2727 = vpop.permute.xlu0 %2726
        %2730 = vrot.lane.b32.xlu0 %v2627, 32
        %v2731 = vpop.permute.xlu0 %2730
        %2732 = vrot.lane.b32.xlu0 %v2630, 32
        %v2733 = vpop.permute.xlu0 %2732
        %v2736 = vrot.slane %v2725, 4
        %v2737 = vsel %vm1187, %v2736, %v2627
        %v2738 = vrot.slane %v2627, 4
        %v2739 = vsel %vm1187, %v2725, %v2738
        %v2741 = vunpack.c.l.s4 1983009808
        %v2742 = vunpack.c.0.s8 %v2741
        %v2743 = vperm.slane %v2737, %v2742
        %v2745 = vunpack.c.l.s4 1983009808
        %v2746 = vunpack.c.0.s8 %v2745
        %v2747 = vperm.slane %v2739, %v2746
        %v2748 = vrot.slane %v2731, 4
        %v2749 = vsel %vm1187, %v2748, %v2719
        %v2750 = vrot.slane %v2719, 4
        %v2751 = vsel %vm1187, %v2731, %v2750
        %v2753 = vunpack.c.l.s4 1983009808
        %v2754 = vunpack.c.0.s8 %v2753
        %v2755 = vperm.slane %v2749, %v2754
        %v2757 = vunpack.c.l.s4 1983009808
        %v2758 = vunpack.c.0.s8 %v2757
        %v2759 = vperm.slane %v2751, %v2758
        %v2760 = vrot.slane %v2755, 4
        %v2761 = vsel %vm1187, %v2760, %v2743
        %v2762 = vrot.slane %v2743, 4
        %v2763 = vsel %vm1187, %v2755, %v2762
        %v2765 = vunpack.c.l.s4 1934713408
        %v2766 = vunpack.c.0.s8 %v2765
        %v2767 = vperm.slane %v2761, %v2766
        %v2769 = vunpack.c.l.s4 1934713408
        %v2770 = vunpack.c.0.s8 %v2769
        %v2771 = vperm.slane %v2763, %v2770
        %v2772 = vrot.slane %v2759, 4
        %v2773 = vsel %vm1187, %v2772, %v2747
        %v2774 = vrot.slane %v2747, 4
        %v2775 = vsel %vm1187, %v2759, %v2774
        %v2777 = vunpack.c.l.s4 1934713408
        %v2778 = vunpack.c.0.s8 %v2777
        %v2779 = vperm.slane %v2773, %v2778
        %v2781 = vunpack.c.l.s4 1934713408
        %v2782 = vunpack.c.0.s8 %v2781
        %v2783 = vperm.slane %v2775, %v2782
        %v2784 = vrot.slane %v2767, 4
        %v2785 = vsel %vm1187, 0.0, %v2784
        %v2786 = vrot.slane %v2771, 4
        %v2787 = vsel %vm1187, 0.0, %v2786
        %v2788 = vrot.slane %v2779, 4
        %v2789 = vsel %vm1187, 0.0, %v2788
        %v2790 = vrot.slane %v2783, 4
        %v2791 = vsel %vm1187, 0.0, %v2790
        %v2792 = vrot.slane %v2727, 4
        %v2793 = vsel %vm1187, %v2792, %v2630
        %v2794 = vrot.slane %v2630, 4
        %v2795 = vsel %vm1187, %v2727, %v2794
        %v2797 = vunpack.c.l.s4 1983009808
        %v2798 = vunpack.c.0.s8 %v2797
        %v2799 = vperm.slane %v2793, %v2798
        %v2801 = vunpack.c.l.s4 1983009808
        %v2802 = vunpack.c.0.s8 %v2801
        %v2803 = vperm.slane %v2795, %v2802
        %v2804 = vrot.slane %v2733, 4
        %v2805 = vsel %vm1187, %v2804, %v2721
        %v2806 = vrot.slane %v2721, 4
        %v2807 = vsel %vm1187, %v2733, %v2806
        %v2809 = vunpack.c.l.s4 1983009808
        %v2810 = vunpack.c.0.s8 %v2809
        %v2811 = vperm.slane %v2805, %v2810
        %v2813 = vunpack.c.l.s4 1983009808
        %v2814 = vunpack.c.0.s8 %v2813
        %v2815 = vperm.slane %v2807, %v2814
        %v2816 = vrot.slane %v2811, 4
        %v2817 = vsel %vm1187, %v2816, %v2799
        %v2818 = vrot.slane %v2799, 4
        %v2819 = vsel %vm1187, %v2811, %v2818
        %v2821 = vunpack.c.l.s4 1934713408
        %v2822 = vunpack.c.0.s8 %v2821
        %v2823 = vperm.slane %v2817, %v2822
        %v2825 = vunpack.c.l.s4 1934713408
        %v2826 = vunpack.c.0.s8 %v2825
        %v2827 = vperm.slane %v2819, %v2826
        %v2828 = vrot.slane %v2815, 4
        %v2829 = vsel %vm1187, %v2828, %v2803
        %v2830 = vrot.slane %v2803, 4
        %v2831 = vsel %vm1187, %v2815, %v2830
        %v2833 = vunpack.c.l.s4 1934713408
        %v2834 = vunpack.c.0.s8 %v2833
        %v2835 = vperm.slane %v2829, %v2834
        %v2837 = vunpack.c.l.s4 1934713408
        %v2838 = vunpack.c.0.s8 %v2837
        %v2839 = vperm.slane %v2831, %v2838
        %v2840 = vrot.slane %v2823, 4
        %v2841 = vsel %vm1187, 0.0, %v2840
        %v2842 = vrot.slane %v2827, 4
        %v2843 = vsel %vm1187, 0.0, %v2842
        %v2844 = vrot.slane %v2835, 4
        %v2845 = vsel %vm1187, 0.0, %v2844
        %v2846 = vrot.slane %v2839, 4
        %v2847 = vsel %vm1187, 0.0, %v2846
        %v2848 = vsel %vm1187, %v2786, %v2767
        %v2850 = vunpack.c.l.s4 1983009808
        %v2851 = vunpack.c.0.s8 %v2850
        %v2852 = vperm.slane %v2848, %v2851
        %v2853 = vrot.slane %v2787, 4
        %v2854 = vsel %vm1187, %v2853, %v2785
        %v2856 = vunpack.c.l.s4 1983009808
        %v2857 = vunpack.c.0.s8 %v2856
        %v2858 = vperm.slane %v2854, %v2857
        %v2859 = vsel %vm1187, %v2790, %v2779
        %v2861 = vunpack.c.l.s4 1983009808
        %v2862 = vunpack.c.0.s8 %v2861
        %v2863 = vperm.slane %v2859, %v2862
        %v2864 = vrot.slane %v2791, 4
        %v2865 = vsel %vm1187, %v2864, %v2789
        %v2867 = vunpack.c.l.s4 1983009808
        %v2868 = vunpack.c.0.s8 %v2867
        %v2869 = vperm.slane %v2865, %v2868
        %v2870 = vrot.slane %v2858, 4
        %v2871 = vsel %vm1187, %v2870, %v2852
        %v2872 = vrot.slane %v2852, 4
        %v2873 = vsel %vm1187, %v2858, %v2872
        %v2875 = vunpack.c.l.s4 1934713408
        %v2876 = vunpack.c.0.s8 %v2875
        %v2877 = vperm.slane %v2871, %v2876
        %v2879 = vunpack.c.l.s4 1934713408
        %v2880 = vunpack.c.0.s8 %v2879
        %v2881 = vperm.slane %v2873, %v2880
        %v2882 = vrot.slane %v2869, 4
        %v2883 = vsel %vm1187, %v2882, %v2863
        %v2884 = vrot.slane %v2863, 4
        %v2885 = vsel %vm1187, %v2869, %v2884
        %v2887 = vunpack.c.l.s4 1934713408
        %v2888 = vunpack.c.0.s8 %v2887
        %v2889 = vperm.slane %v2883, %v2888
        %v2891 = vunpack.c.l.s4 1934713408
        %v2892 = vunpack.c.0.s8 %v2891
        %v2893 = vperm.slane %v2885, %v2892
        %v2894 = vrot.slane %v2889, 4
        %v2895 = vsel %vm1187, %v2894, %v2877
        %v2896 = vrot.slane %v2877, 4
        %v2897 = vsel %vm1187, %v2889, %v2896
        %v2898 = vrot.slane %v2893, 4
        %v2899 = vsel %vm1187, %v2898, %v2881
        %v2900 = vrot.slane %v2881, 4
        %v2901 = vsel %vm1187, %v2893, %v2900
        %v2902 = vsel %vm1187, %v2842, %v2823
        %v2904 = vunpack.c.l.s4 1983009808
        %v2905 = vunpack.c.0.s8 %v2904
        %v2906 = vperm.slane %v2902, %v2905
        %v2907 = vrot.slane %v2843, 4
        %v2908 = vsel %vm1187, %v2907, %v2841
        %v2910 = vunpack.c.l.s4 1983009808
        %v2911 = vunpack.c.0.s8 %v2910
        %v2912 = vperm.slane %v2908, %v2911
        %v2913 = vsel %vm1187, %v2846, %v2835
        %v2915 = vunpack.c.l.s4 1983009808
        %v2916 = vunpack.c.0.s8 %v2915
        %v2917 = vperm.slane %v2913, %v2916
        %v2918 = vrot.slane %v2847, 4
        %v2919 = vsel %vm1187, %v2918, %v2845
        %v2921 = vunpack.c.l.s4 1983009808
        %v2922 = vunpack.c.0.s8 %v2921
        %v2923 = vperm.slane %v2919, %v2922
        %v2924 = vrot.slane %v2912, 4
        %v2925 = vsel %vm1187, %v2924, %v2906
        %v2926 = vrot.slane %v2906, 4
        %v2927 = vsel %vm1187, %v2912, %v2926
        %v2929 = vunpack.c.l.s4 1934713408
        %v2930 = vunpack.c.0.s8 %v2929
        %v2931 = vperm.slane %v2925, %v2930
        %v2933 = vunpack.c.l.s4 1934713408
        %v2934 = vunpack.c.0.s8 %v2933
        %v2935 = vperm.slane %v2927, %v2934
        %v2936 = vrot.slane %v2923, 4
        %v2937 = vsel %vm1187, %v2936, %v2917
        %v2938 = vrot.slane %v2917, 4
        %v2939 = vsel %vm1187, %v2923, %v2938
        %v2941 = vunpack.c.l.s4 1934713408
        %v2942 = vunpack.c.0.s8 %v2941
        %v2943 = vperm.slane %v2937, %v2942
        %v2945 = vunpack.c.l.s4 1934713408
        %v2946 = vunpack.c.0.s8 %v2945
        %v2947 = vperm.slane %v2939, %v2946
        %v2948 = vrot.slane %v2943, 4
        %v2949 = vsel %vm1187, %v2948, %v2931
        %v2950 = vrot.slane %v2931, 4
        %v2951 = vsel %vm1187, %v2943, %v2950
        %v2952 = vrot.slane %v2947, 4
        %v2953 = vsel %vm1187, %v2952, %v2935
        %v2954 = vrot.slane %v2935, 4
        %v2955 = vsel %vm1187, %v2947, %v2954
        %2958 = vrot.lane.b32.xlu0 %v2688, 96
        %v2959 = vpop.permute.xlu0 %2958
        %2960 = vrot.lane.b32.xlu0 %v2691, 96
        %v2961 = vpop.permute.xlu0 %2960
        %2964 = vrot.lane.b32.xlu0 %v2688, 64
        %v2965 = vpop.permute.xlu0 %2964
        %2966 = vrot.lane.b32.xlu0 %v2691, 64
        %v2967 = vpop.permute.xlu0 %2966
        %2970 = vrot.lane.b32.xlu0 %v2688, 32
        %v2971 = vpop.permute.xlu0 %2970
        %2972 = vrot.lane.b32.xlu0 %v2691, 32
        %v2973 = vpop.permute.xlu0 %2972
        %v2976 = vrot.slane %v2965, 4
        %v2977 = vsel %vm1187, %v2976, %v2688
        %v2978 = vrot.slane %v2688, 4
        %v2979 = vsel %vm1187, %v2965, %v2978
        %v2981 = vunpack.c.l.s4 1983009808
        %v2982 = vunpack.c.0.s8 %v2981
        %v2983 = vperm.slane %v2977, %v2982
        %v2985 = vunpack.c.l.s4 1983009808
        %v2986 = vunpack.c.0.s8 %v2985
        %v2987 = vperm.slane %v2979, %v2986
        %v2988 = vrot.slane %v2971, 4
        %v2989 = vsel %vm1187, %v2988, %v2959
        %v2990 = vrot.slane %v2959, 4
        %v2991 = vsel %vm1187, %v2971, %v2990
        %v2993 = vunpack.c.l.s4 1983009808
        %v2994 = vunpack.c.0.s8 %v2993
        %v2995 = vperm.slane %v2989, %v2994
        %v2997 = vunpack.c.l.s4 1983009808
        %v2998 = vunpack.c.0.s8 %v2997
        %v2999 = vperm.slane %v2991, %v2998
        %v3000 = vrot.slane %v2995, 4
        %v3001 = vsel %vm1187, %v3000, %v2983
        %v3002 = vrot.slane %v2983, 4
        %v3003 = vsel %vm1187, %v2995, %v3002
        %v3005 = vunpack.c.l.s4 1934713408
        %v3006 = vunpack.c.0.s8 %v3005
        %v3007 = vperm.slane %v3001, %v3006
        %v3009 = vunpack.c.l.s4 1934713408
        %v3010 = vunpack.c.0.s8 %v3009
        %v3011 = vperm.slane %v3003, %v3010
        %v3012 = vrot.slane %v2999, 4
        %v3013 = vsel %vm1187, %v3012, %v2987
        %v3014 = vrot.slane %v2987, 4
        %v3015 = vsel %vm1187, %v2999, %v3014
        %v3017 = vunpack.c.l.s4 1934713408
        %v3018 = vunpack.c.0.s8 %v3017
        %v3019 = vperm.slane %v3013, %v3018
        %v3021 = vunpack.c.l.s4 1934713408
        %v3022 = vunpack.c.0.s8 %v3021
        %v3023 = vperm.slane %v3015, %v3022
        %v3024 = vrot.slane %v3007, 4
        %v3025 = vsel %vm1187, 0.0, %v3024
        %v3026 = vrot.slane %v3011, 4
        %v3027 = vsel %vm1187, 0.0, %v3026
        %v3028 = vrot.slane %v3019, 4
        %v3029 = vsel %vm1187, 0.0, %v3028
        %v3030 = vrot.slane %v3023, 4
        %v3031 = vsel %vm1187, 0.0, %v3030
        %v3032 = vrot.slane %v2967, 4
        %v3033 = vsel %vm1187, %v3032, %v2691
        %v3034 = vrot.slane %v2691, 4
        %v3035 = vsel %vm1187, %v2967, %v3034
        %v3037 = vunpack.c.l.s4 1983009808
        %v3038 = vunpack.c.0.s8 %v3037
        %v3039 = vperm.slane %v3033, %v3038
        %v3041 = vunpack.c.l.s4 1983009808
        %v3042 = vunpack.c.0.s8 %v3041
        %v3043 = vperm.slane %v3035, %v3042
        %v3044 = vrot.slane %v2973, 4
        %v3045 = vsel %vm1187, %v3044, %v2961
        %v3046 = vrot.slane %v2961, 4
        %v3047 = vsel %vm1187, %v2973, %v3046
        %v3049 = vunpack.c.l.s4 1983009808
        %v3050 = vunpack.c.0.s8 %v3049
        %v3051 = vperm.slane %v3045, %v3050
        %v3053 = vunpack.c.l.s4 1983009808
        %v3054 = vunpack.c.0.s8 %v3053
        %v3055 = vperm.slane %v3047, %v3054
        %v3056 = vrot.slane %v3051, 4
        %v3057 = vsel %vm1187, %v3056, %v3039
        %v3058 = vrot.slane %v3039, 4
        %v3059 = vsel %vm1187, %v3051, %v3058
        %v3061 = vunpack.c.l.s4 1934713408
        %v3062 = vunpack.c.0.s8 %v3061
        %v3063 = vperm.slane %v3057, %v3062
        %v3065 = vunpack.c.l.s4 1934713408
        %v3066 = vunpack.c.0.s8 %v3065
        %v3067 = vperm.slane %v3059, %v3066
        %v3068 = vrot.slane %v3055, 4
        %v3069 = vsel %vm1187, %v3068, %v3043
        %v3070 = vrot.slane %v3043, 4
        %v3071 = vsel %vm1187, %v3055, %v3070
        %v3073 = vunpack.c.l.s4 1934713408
        %v3074 = vunpack.c.0.s8 %v3073
        %v3075 = vperm.slane %v3069, %v3074
        %v3077 = vunpack.c.l.s4 1934713408
        %v3078 = vunpack.c.0.s8 %v3077
        %v3079 = vperm.slane %v3071, %v3078
        %v3080 = vrot.slane %v3063, 4
        %v3081 = vsel %vm1187, 0.0, %v3080
        %v3082 = vrot.slane %v3067, 4
        %v3083 = vsel %vm1187, 0.0, %v3082
        %v3084 = vrot.slane %v3075, 4
        %v3085 = vsel %vm1187, 0.0, %v3084
        %v3086 = vrot.slane %v3079, 4
        %v3087 = vsel %vm1187, 0.0, %v3086
        %v3088 = vsel %vm1187, %v3026, %v3007
        %v3090 = vunpack.c.l.s4 1983009808
        %v3091 = vunpack.c.0.s8 %v3090
        %v3092 = vperm.slane %v3088, %v3091
        %v3093 = vrot.slane %v3027, 4
        %v3094 = vsel %vm1187, %v3093, %v3025
        %v3096 = vunpack.c.l.s4 1983009808
        %v3097 = vunpack.c.0.s8 %v3096
        %v3098 = vperm.slane %v3094, %v3097
        %v3099 = vsel %vm1187, %v3030, %v3019
        %v3101 = vunpack.c.l.s4 1983009808
        %v3102 = vunpack.c.0.s8 %v3101
        %v3103 = vperm.slane %v3099, %v3102
        %v3104 = vrot.slane %v3031, 4
        %v3105 = vsel %vm1187, %v3104, %v3029
        %v3107 = vunpack.c.l.s4 1983009808
        %v3108 = vunpack.c.0.s8 %v3107
        %v3109 = vperm.slane %v3105, %v3108
        %v3110 = vrot.slane %v3098, 4
        %v3111 = vsel %vm1187, %v3110, %v3092
        %v3112 = vrot.slane %v3092, 4
        %v3113 = vsel %vm1187, %v3098, %v3112
        %v3115 = vunpack.c.l.s4 1934713408
        %v3116 = vunpack.c.0.s8 %v3115
        %v3117 = vperm.slane %v3111, %v3116
        %v3119 = vunpack.c.l.s4 1934713408
        %v3120 = vunpack.c.0.s8 %v3119
        %v3121 = vperm.slane %v3113, %v3120
        %v3122 = vrot.slane %v3109, 4
        %v3123 = vsel %vm1187, %v3122, %v3103
        %v3124 = vrot.slane %v3103, 4
        %v3125 = vsel %vm1187, %v3109, %v3124
        %v3127 = vunpack.c.l.s4 1934713408
        %v3128 = vunpack.c.0.s8 %v3127
        %v3129 = vperm.slane %v3123, %v3128
        %v3131 = vunpack.c.l.s4 1934713408
        %v3132 = vunpack.c.0.s8 %v3131
        %v3133 = vperm.slane %v3125, %v3132
        %v3134 = vrot.slane %v3129, 4
        %v3135 = vsel %vm1187, %v3134, %v3117
        %v3136 = vrot.slane %v3117, 4
        %v3137 = vsel %vm1187, %v3129, %v3136
        %v3138 = vrot.slane %v3133, 4
        %v3139 = vsel %vm1187, %v3138, %v3121
        %v3140 = vrot.slane %v3121, 4
        %v3141 = vsel %vm1187, %v3133, %v3140
        %v3142 = vsel %vm1187, %v3082, %v3063
        %v3144 = vunpack.c.l.s4 1983009808
        %v3145 = vunpack.c.0.s8 %v3144
        %v3146 = vperm.slane %v3142, %v3145
        %v3147 = vrot.slane %v3083, 4
        %v3148 = vsel %vm1187, %v3147, %v3081
        %v3150 = vunpack.c.l.s4 1983009808
        %v3151 = vunpack.c.0.s8 %v3150
        %v3152 = vperm.slane %v3148, %v3151
        %v3153 = vsel %vm1187, %v3086, %v3075
        %v3155 = vunpack.c.l.s4 1983009808
        %v3156 = vunpack.c.0.s8 %v3155
        %v3157 = vperm.slane %v3153, %v3156
        %v3158 = vrot.slane %v3087, 4
        %v3159 = vsel %vm1187, %v3158, %v3085
        %v3161 = vunpack.c.l.s4 1983009808
        %v3162 = vunpack.c.0.s8 %v3161
        %v3163 = vperm.slane %v3159, %v3162
        %v3164 = vrot.slane %v3152, 4
        %v3165 = vsel %vm1187, %v3164, %v3146
        %v3166 = vrot.slane %v3146, 4
        %v3167 = vsel %vm1187, %v3152, %v3166
        %v3169 = vunpack.c.l.s4 1934713408
        %v3170 = vunpack.c.0.s8 %v3169
        %v3171 = vperm.slane %v3165, %v3170
        %v3173 = vunpack.c.l.s4 1934713408
        %v3174 = vunpack.c.0.s8 %v3173
        %v3175 = vperm.slane %v3167, %v3174
        %v3176 = vrot.slane %v3163, 4
        %v3177 = vsel %vm1187, %v3176, %v3157
        %v3178 = vrot.slane %v3157, 4
        %v3179 = vsel %vm1187, %v3163, %v3178
        %v3181 = vunpack.c.l.s4 1934713408
        %v3182 = vunpack.c.0.s8 %v3181
        %v3183 = vperm.slane %v3177, %v3182
        %v3185 = vunpack.c.l.s4 1934713408
        %v3186 = vunpack.c.0.s8 %v3185
        %v3187 = vperm.slane %v3179, %v3186
        %v3188 = vrot.slane %v3183, 4
        %v3189 = vsel %vm1187, %v3188, %v3171
        %v3190 = vrot.slane %v3171, 4
        %v3191 = vsel %vm1187, %v3183, %v3190
        %v3192 = vrot.slane %v3187, 4
        %v3193 = vsel %vm1187, %v3192, %v3175
        %v3194 = vrot.slane %v3175, 4
        %v3195 = vsel %vm1187, %v3187, %v3194
        %3198 = vrot.lane.b32.xlu0 %v2711, 96
        %v3199 = vpop.permute.xlu0 %3198
        %3200 = vrot.lane.b32.xlu0 %v2714, 96
        %v3201 = vpop.permute.xlu0 %3200
        %3204 = vrot.lane.b32.xlu0 %v2711, 64
        %v3205 = vpop.permute.xlu0 %3204
        %3206 = vrot.lane.b32.xlu0 %v2714, 64
        %v3207 = vpop.permute.xlu0 %3206
        %3210 = vrot.lane.b32.xlu0 %v2711, 32
        %v3211 = vpop.permute.xlu0 %3210
        %3212 = vrot.lane.b32.xlu0 %v2714, 32
        %v3213 = vpop.permute.xlu0 %3212
        %v3216 = vrot.slane %v3205, 4
        %v3217 = vsel %vm1187, %v3216, %v2711
        %v3218 = vrot.slane %v2711, 4
        %v3219 = vsel %vm1187, %v3205, %v3218
        %v3221 = vunpack.c.l.s4 1983009808
        %v3222 = vunpack.c.0.s8 %v3221
        %v3223 = vperm.slane %v3217, %v3222
        %v3225 = vunpack.c.l.s4 1983009808
        %v3226 = vunpack.c.0.s8 %v3225
        %v3227 = vperm.slane %v3219, %v3226
        %v3228 = vrot.slane %v3211, 4
        %v3229 = vsel %vm1187, %v3228, %v3199
        %v3230 = vrot.slane %v3199, 4
        %v3231 = vsel %vm1187, %v3211, %v3230
        %v3233 = vunpack.c.l.s4 1983009808
        %v3234 = vunpack.c.0.s8 %v3233
        %v3235 = vperm.slane %v3229, %v3234
        %v3237 = vunpack.c.l.s4 1983009808
        %v3238 = vunpack.c.0.s8 %v3237
        %v3239 = vperm.slane %v3231, %v3238
        %v3240 = vrot.slane %v3235, 4
        %v3241 = vsel %vm1187, %v3240, %v3223
        %v3242 = vrot.slane %v3223, 4
        %v3243 = vsel %vm1187, %v3235, %v3242
        %v3245 = vunpack.c.l.s4 1934713408
        %v3246 = vunpack.c.0.s8 %v3245
        %v3247 = vperm.slane %v3241, %v3246
        %v3249 = vunpack.c.l.s4 1934713408
        %v3250 = vunpack.c.0.s8 %v3249
        %v3251 = vperm.slane %v3243, %v3250
        %v3252 = vrot.slane %v3239, 4
        %v3253 = vsel %vm1187, %v3252, %v3227
        %v3254 = vrot.slane %v3227, 4
        %v3255 = vsel %vm1187, %v3239, %v3254
        %v3257 = vunpack.c.l.s4 1934713408
        %v3258 = vunpack.c.0.s8 %v3257
        %v3259 = vperm.slane %v3253, %v3258
        %v3261 = vunpack.c.l.s4 1934713408
        %v3262 = vunpack.c.0.s8 %v3261
        %v3263 = vperm.slane %v3255, %v3262
        %v3264 = vrot.slane %v3247, 4
        %v3265 = vsel %vm1187, 0.0, %v3264
        %v3266 = vrot.slane %v3251, 4
        %v3267 = vsel %vm1187, 0.0, %v3266
        %v3268 = vrot.slane %v3259, 4
        %v3269 = vsel %vm1187, 0.0, %v3268
        %v3270 = vrot.slane %v3263, 4
        %v3271 = vsel %vm1187, 0.0, %v3270
        %v3272 = vrot.slane %v3207, 4
        %v3273 = vsel %vm1187, %v3272, %v2714
        %v3274 = vrot.slane %v2714, 4
        %v3275 = vsel %vm1187, %v3207, %v3274
        %v3277 = vunpack.c.l.s4 1983009808
        %v3278 = vunpack.c.0.s8 %v3277
        %v3279 = vperm.slane %v3273, %v3278
        %v3281 = vunpack.c.l.s4 1983009808
        %v3282 = vunpack.c.0.s8 %v3281
        %v3283 = vperm.slane %v3275, %v3282
        %v3284 = vrot.slane %v3213, 4
        %v3285 = vsel %vm1187, %v3284, %v3201
        %v3286 = vrot.slane %v3201, 4
        %v3287 = vsel %vm1187, %v3213, %v3286
        %v3289 = vunpack.c.l.s4 1983009808
        %v3290 = vunpack.c.0.s8 %v3289
        %v3291 = vperm.slane %v3285, %v3290
        %v3293 = vunpack.c.l.s4 1983009808
        %v3294 = vunpack.c.0.s8 %v3293
        %v3295 = vperm.slane %v3287, %v3294
        %v3296 = vrot.slane %v3291, 4
        %v3297 = vsel %vm1187, %v3296, %v3279
        %v3298 = vrot.slane %v3279, 4
        %v3299 = vsel %vm1187, %v3291, %v3298
        %v3301 = vunpack.c.l.s4 1934713408
        %v3302 = vunpack.c.0.s8 %v3301
        %v3303 = vperm.slane %v3297, %v3302
        %v3305 = vunpack.c.l.s4 1934713408
        %v3306 = vunpack.c.0.s8 %v3305
        %v3307 = vperm.slane %v3299, %v3306
        %v3308 = vrot.slane %v3295, 4
        %v3309 = vsel %vm1187, %v3308, %v3283
        %v3310 = vrot.slane %v3283, 4
        %v3311 = vsel %vm1187, %v3295, %v3310
        %v3313 = vunpack.c.l.s4 1934713408
        %v3314 = vunpack.c.0.s8 %v3313
        %v3315 = vperm.slane %v3309, %v3314
        %v3317 = vunpack.c.l.s4 1934713408
        %v3318 = vunpack.c.0.s8 %v3317
        %v3319 = vperm.slane %v3311, %v3318
        %v3320 = vrot.slane %v3303, 4
        %v3321 = vsel %vm1187, 0.0, %v3320
        %v3322 = vrot.slane %v3307, 4
        %v3323 = vsel %vm1187, 0.0, %v3322
        %v3324 = vrot.slane %v3315, 4
        %v3325 = vsel %vm1187, 0.0, %v3324
        %v3326 = vrot.slane %v3319, 4
        %v3327 = vsel %vm1187, 0.0, %v3326
        %v3328 = vsel %vm1187, %v3266, %v3247
        %v3330 = vunpack.c.l.s4 1983009808
        %v3331 = vunpack.c.0.s8 %v3330
        %v3332 = vperm.slane %v3328, %v3331
        %v3333 = vrot.slane %v3267, 4
        %v3334 = vsel %vm1187, %v3333, %v3265
        %v3336 = vunpack.c.l.s4 1983009808
        %v3337 = vunpack.c.0.s8 %v3336
        %v3338 = vperm.slane %v3334, %v3337
        %v3339 = vsel %vm1187, %v3270, %v3259
        %v3341 = vunpack.c.l.s4 1983009808
        %v3342 = vunpack.c.0.s8 %v3341
        %v3343 = vperm.slane %v3339, %v3342
        %v3344 = vrot.slane %v3271, 4
        %v3345 = vsel %vm1187, %v3344, %v3269
        %v3347 = vunpack.c.l.s4 1983009808
        %v3348 = vunpack.c.0.s8 %v3347
        %v3349 = vperm.slane %v3345, %v3348
        %v3350 = vrot.slane %v3338, 4
        %v3351 = vsel %vm1187, %v3350, %v3332
        %v3352 = vrot.slane %v3332, 4
        %v3353 = vsel %vm1187, %v3338, %v3352
        %v3355 = vunpack.c.l.s4 1934713408
        %v3356 = vunpack.c.0.s8 %v3355
        %v3357 = vperm.slane %v3351, %v3356
        %v3359 = vunpack.c.l.s4 1934713408
        %v3360 = vunpack.c.0.s8 %v3359
        %v3361 = vperm.slane %v3353, %v3360
        %v3362 = vrot.slane %v3349, 4
        %v3363 = vsel %vm1187, %v3362, %v3343
        %v3364 = vrot.slane %v3343, 4
        %v3365 = vsel %vm1187, %v3349, %v3364
        %v3367 = vunpack.c.l.s4 1934713408
        %v3368 = vunpack.c.0.s8 %v3367
        %v3369 = vperm.slane %v3363, %v3368
        %v3371 = vunpack.c.l.s4 1934713408
        %v3372 = vunpack.c.0.s8 %v3371
        %v3373 = vperm.slane %v3365, %v3372
        %v3374 = vrot.slane %v3369, 4
        %v3375 = vsel %vm1187, %v3374, %v3357
        %v3376 = vrot.slane %v3357, 4
        %v3377 = vsel %vm1187, %v3369, %v3376
        %v3378 = vrot.slane %v3373, 4
        %v3379 = vsel %vm1187, %v3378, %v3361
        %v3380 = vrot.slane %v3361, 4
        %v3381 = vsel %vm1187, %v3373, %v3380
        %v3382 = vsel %vm1187, %v3322, %v3303
        %v3384 = vunpack.c.l.s4 1983009808
        %v3385 = vunpack.c.0.s8 %v3384
        %v3386 = vperm.slane %v3382, %v3385
        %v3387 = vrot.slane %v3323, 4
        %v3388 = vsel %vm1187, %v3387, %v3321
        %v3390 = vunpack.c.l.s4 1983009808
        %v3391 = vunpack.c.0.s8 %v3390
        %v3392 = vperm.slane %v3388, %v3391
        %v3393 = vsel %vm1187, %v3326, %v3315
        %v3395 = vunpack.c.l.s4 1983009808
        %v3396 = vunpack.c.0.s8 %v3395
        %v3397 = vperm.slane %v3393, %v3396
        %v3398 = vrot.slane %v3327, 4
        %v3399 = vsel %vm1187, %v3398, %v3325
        %v3401 = vunpack.c.l.s4 1983009808
        %v3402 = vunpack.c.0.s8 %v3401
        %v3403 = vperm.slane %v3399, %v3402
        %v3404 = vrot.slane %v3392, 4
        %v3405 = vsel %vm1187, %v3404, %v3386
        %v3406 = vrot.slane %v3386, 4
        %v3407 = vsel %vm1187, %v3392, %v3406
        %v3409 = vunpack.c.l.s4 1934713408
        %v3410 = vunpack.c.0.s8 %v3409
        %v3411 = vperm.slane %v3405, %v3410
        %v3413 = vunpack.c.l.s4 1934713408
        %v3414 = vunpack.c.0.s8 %v3413
        %v3415 = vperm.slane %v3407, %v3414
        %v3416 = vrot.slane %v3403, 4
        %v3417 = vsel %vm1187, %v3416, %v3397
        %v3418 = vrot.slane %v3397, 4
        %v3419 = vsel %vm1187, %v3403, %v3418
        %v3421 = vunpack.c.l.s4 1934713408
        %v3422 = vunpack.c.0.s8 %v3421
        %v3423 = vperm.slane %v3417, %v3422
        %v3425 = vunpack.c.l.s4 1934713408
        %v3426 = vunpack.c.0.s8 %v3425
        %v3427 = vperm.slane %v3419, %v3426
        %v3428 = vrot.slane %v3423, 4
        %v3429 = vsel %vm1187, %v3428, %v3411
        %v3430 = vrot.slane %v3411, 4
        %v3431 = vsel %vm1187, %v3423, %v3430
        %v3432 = vrot.slane %v3427, 4
        %v3433 = vsel %vm1187, %v3432, %v3415
        %v3434 = vrot.slane %v3415, 4
        %v3435 = vsel %vm1187, %v3427, %v3434
        %v3437 = vsel %vm1887, %v2895, 0
        %v3440 = vsel %vm1887, %v2949, 0
        %v3443 = vsel %vm1887, %v3135, 0
        %v3446 = vsel %vm1887, %v3189, 0
        %3448 = vmatpush.xpose.msra.mxu0 0.0
        %3449 = vmatpush.xpose.msra.mxu0 0.0
        %3450 = vmatpush.xpose.msra.mxu0 0.0
        %3451 = vmatpush.xpose.msra.mxu0 0.0
        %3452 = vmatpush.xpose.msra.mxu0 0.0
        %3453 = vmatpush.xpose.msra.mxu0 0.0
        %3454 = vmatpush.xpose.msra.mxu0 0.0
        %3455 = vmatpush.xpose.msra.mxu0 0.0
        %3456 = vmatpush.xpose.msra.mxu0 0.0
        %3457 = vmatpush.xpose.msra.mxu0 0.0
        %3458 = vmatpush.xpose.msra.mxu0 0.0
        %3459 = vmatpush.xpose.msra.mxu0 0.0
        %3460 = vmatpush.xpose.msra.mxu0 0.0
        %3461 = vmatpush.xpose.msra.mxu0 0.0
        %3462 = vmatpush.xpose.msra.mxu0 %v3446
        %3463 = vmatpush.xpose.msra.mxu0 %v3443
        %3464 = vmatmul.f32.gmra.mxu0 %v3437
        %v3465 = vpop.f32.mrf.mxu0
        %v3466 = vadd.f32 0.0, %v3465
        %3467 = vmatmul.f32.gmra.mxu0 %v3440
        %v3468 = vpop.f32.mrf.mxu0
        %v3469 = vadd.f32 0.0, %v3468
        %3470 = vdwg.mxu0
        %v3472 = vsel %vm1887, %v2897, 0
        %v3475 = vsel %vm1887, %v2951, 0
        %v3478 = vsel %vm1887, %v3137, 0
        %v3481 = vsel %vm1887, %v3191, 0
        %3483 = vmatpush.xpose.msra.mxu0 0.0
        %3484 = vmatpush.xpose.msra.mxu0 0.0
        %3485 = vmatpush.xpose.msra.mxu0 0.0
        %3486 = vmatpush.xpose.msra.mxu0 0.0
        %3487 = vmatpush.xpose.msra.mxu0 0.0
        %3488 = vmatpush.xpose.msra.mxu0 0.0
        %3489 = vmatpush.xpose.msra.mxu0 0.0
        %3490 = vmatpush.xpose.msra.mxu0 0.0
        %3491 = vmatpush.xpose.msra.mxu0 0.0
        %3492 = vmatpush.xpose.msra.mxu0 0.0
        %3493 = vmatpush.xpose.msra.mxu0 0.0
        %3494 = vmatpush.xpose.msra.mxu0 0.0
        %3495 = vmatpush.xpose.msra.mxu0 0.0
        %3496 = vmatpush.xpose.msra.mxu0 0.0
        %3497 = vmatpush.xpose.msra.mxu0 %v3481
        %3498 = vmatpush.xpose.msra.mxu0 %v3478
        %3499 = vmatmul.f32.gmra.mxu0 %v3472
        %v3500 = vpop.f32.mrf.mxu0
        %v3501 = vadd.f32 0.0, %v3500
        %3502 = vmatmul.f32.gmra.mxu0 %v3475
        %v3503 = vpop.f32.mrf.mxu0
        %v3504 = vadd.f32 0.0, %v3503
        %3505 = vdwg.mxu0
        %v3507 = vsel %vm1887, %v2899, 0
        %v3510 = vsel %vm1887, %v2953, 0
        %v3513 = vsel %vm1887, %v3139, 0
        %v3516 = vsel %vm1887, %v3193, 0
        %3518 = vmatpush.xpose.msra.mxu0 0.0
        %3519 = vmatpush.xpose.msra.mxu0 0.0
        %3520 = vmatpush.xpose.msra.mxu0 0.0
        %3521 = vmatpush.xpose.msra.mxu0 0.0
        %3522 = vmatpush.xpose.msra.mxu0 0.0
        %3523 = vmatpush.xpose.msra.mxu0 0.0
        %3524 = vmatpush.xpose.msra.mxu0 0.0
        %3525 = vmatpush.xpose.msra.mxu0 0.0
        %3526 = vmatpush.xpose.msra.mxu0 0.0
        %3527 = vmatpush.xpose.msra.mxu0 0.0
        %3528 = vmatpush.xpose.msra.mxu0 0.0
        %3529 = vmatpush.xpose.msra.mxu0 0.0
        %3530 = vmatpush.xpose.msra.mxu0 0.0
        %3531 = vmatpush.xpose.msra.mxu0 0.0
        %3532 = vmatpush.xpose.msra.mxu0 %v3516
        %3533 = vmatpush.xpose.msra.mxu0 %v3513
        %3534 = vmatmul.f32.gmra.mxu0 %v3507
        %v3535 = vpop.f32.mrf.mxu0
        %v3536 = vadd.f32 0.0, %v3535
        %3537 = vmatmul.f32.gmra.mxu0 %v3510
        %v3538 = vpop.f32.mrf.mxu0
        %v3539 = vadd.f32 0.0, %v3538
        %3540 = vdwg.mxu0
        %v3542 = vsel %vm1887, %v2901, 0
        %v3545 = vsel %vm1887, %v2955, 0
        %v3548 = vsel %vm1887, %v3141, 0
        %v3551 = vsel %vm1887, %v3195, 0
        %3553 = vmatpush.xpose.msra.mxu0 0.0
        %3554 = vmatpush.xpose.msra.mxu0 0.0
        %3555 = vmatpush.xpose.msra.mxu0 0.0
        %3556 = vmatpush.xpose.msra.mxu0 0.0
        %3557 = vmatpush.xpose.msra.mxu0 0.0
        %3558 = vmatpush.xpose.msra.mxu0 0.0
        %3559 = vmatpush.xpose.msra.mxu0 0.0
        %3560 = vmatpush.xpose.msra.mxu0 0.0
        %3561 = vmatpush.xpose.msra.mxu0 0.0
        %3562 = vmatpush.xpose.msra.mxu0 0.0
        %3563 = vmatpush.xpose.msra.mxu0 0.0
        %3564 = vmatpush.xpose.msra.mxu0 0.0
        %3565 = vmatpush.xpose.msra.mxu0 0.0
        %3566 = vmatpush.xpose.msra.mxu0 0.0
        %3567 = vmatpush.xpose.msra.mxu0 %v3551
        %3568 = vmatpush.xpose.msra.mxu0 %v3548
        %3569 = vmatmul.f32.gmra.mxu0 %v3542
        %v3570 = vpop.f32.mrf.mxu0
        %v3571 = vadd.f32 0.0, %v3570
        %3572 = vmatmul.f32.gmra.mxu0 %v3545
        %v3573 = vpop.f32.mrf.mxu0
        %v3574 = vadd.f32 0.0, %v3573
        %3575 = vdwg.mxu0
        %v3576 = vsel %vm2028, %v3466, -inf
        %3577 = vmax.xlane.f32.xlu0 %v3576
        %v3578 = vpop.xlane.xlu0 %3577
        %v3579 = vsel %vm2028, %v3469, -inf
        %3580 = vmax.xlane.f32.xlu0 %v3579
        %v3581 = vpop.xlane.xlu0 %3580
        %v3582 = vsel %vm2028, %v3501, -inf
        %3583 = vmax.xlane.f32.xlu0 %v3582
        %v3584 = vpop.xlane.xlu0 %3583
        %v3585 = vsel %vm2028, %v3504, -inf
        %3586 = vmax.xlane.f32.xlu0 %v3585
        %v3587 = vpop.xlane.xlu0 %3586
        %v3588 = vsel %vm2028, %v3536, -inf
        %3589 = vmax.xlane.f32.xlu0 %v3588
        %v3590 = vpop.xlane.xlu0 %3589
        %v3591 = vsel %vm2028, %v3539, -inf
        %3592 = vmax.xlane.f32.xlu0 %v3591
        %v3593 = vpop.xlane.xlu0 %3592
        %v3594 = vsel %vm2028, %v3571, -inf
        %3595 = vmax.xlane.f32.xlu0 %v3594
        %v3596 = vpop.xlane.xlu0 %3595
        %v3597 = vsel %vm2028, %v3574, -inf
        %3598 = vmax.xlane.f32.xlu0 %v3597
        %v3599 = vpop.xlane.xlu0 %3598
        %v3600 = vsub.f32 %v3466, %v3578
        %v3601 = vsub.f32 %v3469, %v3581
        %v3602 = vsub.f32 %v3501, %v3584
        %v3603 = vsub.f32 %v3504, %v3587
        %v3604 = vsub.f32 %v3536, %v3590
        %v3605 = vsub.f32 %v3539, %v3593
        %v3606 = vsub.f32 %v3571, %v3596
        %v3607 = vsub.f32 %v3574, %v3599
        %v3608 = vmul.f32 %v3600, 1.442695
        %v3609 = vpow.pop %v3608
        %v3610 = vmul.f32 %v3601, 1.442695
        %v3611 = vpow.pop %v3610
        %v3612 = vmul.f32 %v3602, 1.442695
        %v3613 = vpow.pop %v3612
        %v3614 = vmul.f32 %v3603, 1.442695
        %v3615 = vpow.pop %v3614
        %v3616 = vmul.f32 %v3604, 1.442695
        %v3617 = vpow.pop %v3616
        %v3618 = vmul.f32 %v3605, 1.442695
        %v3619 = vpow.pop %v3618
        %v3620 = vmul.f32 %v3606, 1.442695
        %v3621 = vpow.pop %v3620
        %v3622 = vmul.f32 %v3607, 1.442695
        %v3623 = vpow.pop %v3622
        %v3624 = vsel %vm2028, %v3609, 0.0
        %3625 = vadd.xlane.f32.xlu0 %v3624
        %v3626 = vpop.xlane.xlu0 %3625
        %v3627 = vsel %vm2028, %v3611, 0.0
        %3628 = vadd.xlane.f32.xlu0 %v3627
        %v3629 = vpop.xlane.xlu0 %3628
        %v3630 = vsel %vm2028, %v3613, 0.0
        %3631 = vadd.xlane.f32.xlu0 %v3630
        %v3632 = vpop.xlane.xlu0 %3631
        %v3633 = vsel %vm2028, %v3615, 0.0
        %3634 = vadd.xlane.f32.xlu0 %v3633
        %v3635 = vpop.xlane.xlu0 %3634
        %v3636 = vsel %vm2028, %v3617, 0.0
        %3637 = vadd.xlane.f32.xlu0 %v3636
        %v3638 = vpop.xlane.xlu0 %3637
        %v3639 = vsel %vm2028, %v3619, 0.0
        %3640 = vadd.xlane.f32.xlu0 %v3639
        %v3641 = vpop.xlane.xlu0 %3640
        %v3642 = vsel %vm2028, %v3621, 0.0
        %3643 = vadd.xlane.f32.xlu0 %v3642
        %v3644 = vpop.xlane.xlu0 %3643
        %v3645 = vsel %vm2028, %v3623, 0.0
        %3646 = vadd.xlane.f32.xlu0 %v3645
        %v3647 = vpop.xlane.xlu0 %3646
        %v3648 = vrcp.pop %v3626
        %v3649 = vrcp.pop %v3629
        %v3650 = vrcp.pop %v3632
        %v3651 = vrcp.pop %v3635
        %v3652 = vrcp.pop %v3638
        %v3653 = vrcp.pop %v3641
        %v3654 = vrcp.pop %v3644
        %v3655 = vrcp.pop %v3647
        %v3656 = vmul.f32 %v3609, %v3648
        %v3657 = vmul.f32 %v3611, %v3649
        %v3658 = vmul.f32 %v3613, %v3650
        %v3659 = vmul.f32 %v3615, %v3651
        %v3660 = vmul.f32 %v3617, %v3652
        %v3661 = vmul.f32 %v3619, %v3653
        %v3662 = vmul.f32 %v3621, %v3654
        %v3663 = vmul.f32 %v3623, %v3655
        %v3665 = vsel %vm2028, %v3656, 0
        %v3668 = vsel %vm2028, %v3657, 0
        %3670 = vmatpush.msra.mxu0 0.0
        %3671 = vmatpush.msra.mxu0 0.0
        %3672 = vmatpush.msra.mxu0 0.0
        %3673 = vmatpush.msra.mxu0 0.0
        %3674 = vmatpush.msra.mxu0 0.0
        %3675 = vmatpush.msra.mxu0 0.0
        %3676 = vmatpush.msra.mxu0 0.0
        %3677 = vmatpush.msra.mxu0 0.0
        %3678 = vmatpush.msra.mxu0 0.0
        %3679 = vmatpush.msra.mxu0 0.0
        %3680 = vmatpush.msra.mxu0 0.0
        %3681 = vmatpush.msra.mxu0 0.0
        %3682 = vmatpush.msra.mxu0 0.0
        %3683 = vmatpush.msra.mxu0 0.0
        %3684 = vmatpush.msra.mxu0 %v3429
        %3685 = vmatpush.msra.mxu0 %v3375
        %3686 = vmatmul.f32.gmra.mxu0 %v3665
        %v3687 = vpop.f32.mrf.mxu0
        %v3688 = vadd.f32 0.0, %v3687
        %3689 = vmatmul.f32.gmra.mxu0 %v3668
        %v3690 = vpop.f32.mrf.mxu0
        %v3691 = vadd.f32 0.0, %v3690
        %3692 = vdwg.mxu0
        %v3694 = vsel %vm2028, %v3658, 0
        %v3697 = vsel %vm2028, %v3659, 0
        %3699 = vmatpush.msra.mxu0 0.0
        %3700 = vmatpush.msra.mxu0 0.0
        %3701 = vmatpush.msra.mxu0 0.0
        %3702 = vmatpush.msra.mxu0 0.0
        %3703 = vmatpush.msra.mxu0 0.0
        %3704 = vmatpush.msra.mxu0 0.0
        %3705 = vmatpush.msra.mxu0 0.0
        %3706 = vmatpush.msra.mxu0 0.0
        %3707 = vmatpush.msra.mxu0 0.0
        %3708 = vmatpush.msra.mxu0 0.0
        %3709 = vmatpush.msra.mxu0 0.0
        %3710 = vmatpush.msra.mxu0 0.0
        %3711 = vmatpush.msra.mxu0 0.0
        %3712 = vmatpush.msra.mxu0 0.0
        %3713 = vmatpush.msra.mxu0 %v3431
        %3714 = vmatpush.msra.mxu0 %v3377
        %3715 = vmatmul.f32.gmra.mxu0 %v3694
        %v3716 = vpop.f32.mrf.mxu0
        %v3717 = vadd.f32 0.0, %v3716
        %3718 = vmatmul.f32.gmra.mxu0 %v3697
        %v3719 = vpop.f32.mrf.mxu0
        %v3720 = vadd.f32 0.0, %v3719
        %3721 = vdwg.mxu0
        %v3723 = vsel %vm2028, %v3660, 0
        %v3726 = vsel %vm2028, %v3661, 0
        %3728 = vmatpush.msra.mxu0 0.0
        %3729 = vmatpush.msra.mxu0 0.0
        %3730 = vmatpush.msra.mxu0 0.0
        %3731 = vmatpush.msra.mxu0 0.0
        %3732 = vmatpush.msra.mxu0 0.0
        %3733 = vmatpush.msra.mxu0 0.0
        %3734 = vmatpush.msra.mxu0 0.0
        %3735 = vmatpush.msra.mxu0 0.0
        %3736 = vmatpush.msra.mxu0 0.0
        %3737 = vmatpush.msra.mxu0 0.0
        %3738 = vmatpush.msra.mxu0 0.0
        %3739 = vmatpush.msra.mxu0 0.0
        %3740 = vmatpush.msra.mxu0 0.0
        %3741 = vmatpush.msra.mxu0 0.0
        %3742 = vmatpush.msra.mxu0 %v3433
        %3743 = vmatpush.msra.mxu0 %v3379
        %3744 = vmatmul.f32.gmra.mxu0 %v3723
        %v3745 = vpop.f32.mrf.mxu0
        %v3746 = vadd.f32 0.0, %v3745
        %3747 = vmatmul.f32.gmra.mxu0 %v3726
        %v3748 = vpop.f32.mrf.mxu0
        %v3749 = vadd.f32 0.0, %v3748
        %3750 = vdwg.mxu0
        %v3752 = vsel %vm2028, %v3662, 0
        %v3755 = vsel %vm2028, %v3663, 0
        %3757 = vmatpush.msra.mxu0 0.0
        %3758 = vmatpush.msra.mxu0 0.0
        %3759 = vmatpush.msra.mxu0 0.0
        %3760 = vmatpush.msra.mxu0 0.0
        %3761 = vmatpush.msra.mxu0 0.0
        %3762 = vmatpush.msra.mxu0 0.0
        %3763 = vmatpush.msra.mxu0 0.0
        %3764 = vmatpush.msra.mxu0 0.0
        %3765 = vmatpush.msra.mxu0 0.0
        %3766 = vmatpush.msra.mxu0 0.0
        %3767 = vmatpush.msra.mxu0 0.0
        %3768 = vmatpush.msra.mxu0 0.0
        %3769 = vmatpush.msra.mxu0 0.0
        %3770 = vmatpush.msra.mxu0 0.0
        %3771 = vmatpush.msra.mxu0 %v3435
        %3772 = vmatpush.msra.mxu0 %v3381
        %3773 = vmatmul.f32.gmra.mxu0 %v3752
        %v3774 = vpop.f32.mrf.mxu0
        %v3775 = vadd.f32 0.0, %v3774
        %3776 = vmatmul.f32.gmra.mxu0 %v3755
        %v3777 = vpop.f32.mrf.mxu0
        %v3778 = vadd.f32 0.0, %v3777
        %3779 = vdwg.mxu0
        %v3780 = vrot.slane %v3746, 4
        %v3781 = vsel %vm1187, %v3780, %v3688
        %v3782 = vrot.slane %v3688, 4
        %v3783 = vsel %vm1187, %v3746, %v3782
        %v3785 = vunpack.c.l.s4 1983009808
        %v3786 = vunpack.c.0.s8 %v3785
        %v3787 = vperm.slane %v3781, %v3786
        %v3789 = vunpack.c.l.s4 1983009808
        %v3790 = vunpack.c.0.s8 %v3789
        %v3791 = vperm.slane %v3783, %v3790
        %v3792 = vrot.slane %v3775, 4
        %v3793 = vsel %vm1187, %v3792, %v3717
        %v3794 = vrot.slane %v3717, 4
        %v3795 = vsel %vm1187, %v3775, %v3794
        %v3797 = vunpack.c.l.s4 1983009808
        %v3798 = vunpack.c.0.s8 %v3797
        %v3799 = vperm.slane %v3793, %v3798
        %v3801 = vunpack.c.l.s4 1983009808
        %v3802 = vunpack.c.0.s8 %v3801
        %v3803 = vperm.slane %v3795, %v3802
        %v3804 = vrot.slane %v3799, 4
        %v3805 = vsel %vm1187, %v3804, %v3787
        %v3806 = vrot.slane %v3787, 4
        %v3807 = vsel %vm1187, %v3799, %v3806
        %v3809 = vunpack.c.l.s4 1934713408
        %v3810 = vunpack.c.0.s8 %v3809
        %v3811 = vperm.slane %v3805, %v3810
        %v3813 = vunpack.c.l.s4 1934713408
        %v3814 = vunpack.c.0.s8 %v3813
        %v3815 = vperm.slane %v3807, %v3814
        %v3816 = vrot.slane %v3803, 4
        %v3817 = vsel %vm1187, %v3816, %v3791
        %v3818 = vrot.slane %v3791, 4
        %v3819 = vsel %vm1187, %v3803, %v3818
        %v3821 = vunpack.c.l.s4 1934713408
        %v3822 = vunpack.c.0.s8 %v3821
        %v3823 = vperm.slane %v3817, %v3822
        %v3825 = vunpack.c.l.s4 1934713408
        %v3826 = vunpack.c.0.s8 %v3825
        %v3827 = vperm.slane %v3819, %v3826
        %v3828 = vrot.slane %v3811, 4
        %v3829 = vsel %vm1187, 0.0, %v3828
        %v3830 = vrot.slane %v3815, 4
        %v3831 = vsel %vm1187, 0.0, %v3830
        %v3832 = vrot.slane %v3823, 4
        %v3833 = vsel %vm1187, 0.0, %v3832
        %v3834 = vrot.slane %v3827, 4
        %v3835 = vsel %vm1187, 0.0, %v3834
        %v3836 = vrot.slane %v3749, 4
        %v3837 = vsel %vm1187, %v3836, %v3691
        %v3838 = vrot.slane %v3691, 4
        %v3839 = vsel %vm1187, %v3749, %v3838
        %v3841 = vunpack.c.l.s4 1983009808
        %v3842 = vunpack.c.0.s8 %v3841
        %v3843 = vperm.slane %v3837, %v3842
        %v3845 = vunpack.c.l.s4 1983009808
        %v3846 = vunpack.c.0.s8 %v3845
        %v3847 = vperm.slane %v3839, %v3846
        %v3848 = vrot.slane %v3778, 4
        %v3849 = vsel %vm1187, %v3848, %v3720
        %v3850 = vrot.slane %v3720, 4
        %v3851 = vsel %vm1187, %v3778, %v3850
        %v3853 = vunpack.c.l.s4 1983009808
        %v3854 = vunpack.c.0.s8 %v3853
        %v3855 = vperm.slane %v3849, %v3854
        %v3857 = vunpack.c.l.s4 1983009808
        %v3858 = vunpack.c.0.s8 %v3857
        %v3859 = vperm.slane %v3851, %v3858
        %v3860 = vrot.slane %v3855, 4
        %v3861 = vsel %vm1187, %v3860, %v3843
        %v3862 = vrot.slane %v3843, 4
        %v3863 = vsel %vm1187, %v3855, %v3862
        %v3865 = vunpack.c.l.s4 1934713408
        %v3866 = vunpack.c.0.s8 %v3865
        %v3867 = vperm.slane %v3861, %v3866
        %v3869 = vunpack.c.l.s4 1934713408
        %v3870 = vunpack.c.0.s8 %v3869
        %v3871 = vperm.slane %v3863, %v3870
        %v3872 = vrot.slane %v3859, 4
        %v3873 = vsel %vm1187, %v3872, %v3847
        %v3874 = vrot.slane %v3847, 4
        %v3875 = vsel %vm1187, %v3859, %v3874
        %v3877 = vunpack.c.l.s4 1934713408
        %v3878 = vunpack.c.0.s8 %v3877
        %v3879 = vperm.slane %v3873, %v3878
        %v3881 = vunpack.c.l.s4 1934713408
        %v3882 = vunpack.c.0.s8 %v3881
        %v3883 = vperm.slane %v3875, %v3882
        %v3884 = vrot.slane %v3867, 4
        %v3885 = vsel %vm1187, 0.0, %v3884
        %v3886 = vrot.slane %v3871, 4
        %v3887 = vsel %vm1187, 0.0, %v3886
        %v3888 = vrot.slane %v3879, 4
        %v3889 = vsel %vm1187, 0.0, %v3888
        %v3890 = vrot.slane %v3883, 4
        %v3891 = vsel %vm1187, 0.0, %v3890
        %v3892 = vsel %vm1187, %v3830, %v3811
        %v3894 = vunpack.c.l.s4 1983009808
        %v3895 = vunpack.c.0.s8 %v3894
        %v3896 = vperm.slane %v3892, %v3895
        %v3897 = vrot.slane %v3831, 4
        %v3898 = vsel %vm1187, %v3897, %v3829
        %v3900 = vunpack.c.l.s4 1983009808
        %v3901 = vunpack.c.0.s8 %v3900
        %v3902 = vperm.slane %v3898, %v3901
        %v3903 = vsel %vm1187, %v3834, %v3823
        %v3905 = vunpack.c.l.s4 1983009808
        %v3906 = vunpack.c.0.s8 %v3905
        %v3907 = vperm.slane %v3903, %v3906
        %v3908 = vrot.slane %v3835, 4
        %v3909 = vsel %vm1187, %v3908, %v3833
        %v3911 = vunpack.c.l.s4 1983009808
        %v3912 = vunpack.c.0.s8 %v3911
        %v3913 = vperm.slane %v3909, %v3912
        %v3914 = vrot.slane %v3902, 4
        %v3915 = vsel %vm1187, %v3914, %v3896
        %v3916 = vrot.slane %v3896, 4
        %v3917 = vsel %vm1187, %v3902, %v3916
        %v3919 = vunpack.c.l.s4 1934713408
        %v3920 = vunpack.c.0.s8 %v3919
        %v3921 = vperm.slane %v3915, %v3920
        %v3923 = vunpack.c.l.s4 1934713408
        %v3924 = vunpack.c.0.s8 %v3923
        %v3925 = vperm.slane %v3917, %v3924
        %v3926 = vrot.slane %v3913, 4
        %v3927 = vsel %vm1187, %v3926, %v3907
        %v3928 = vrot.slane %v3907, 4
        %v3929 = vsel %vm1187, %v3913, %v3928
        %v3931 = vunpack.c.l.s4 1934713408
        %v3932 = vunpack.c.0.s8 %v3931
        %v3933 = vperm.slane %v3927, %v3932
        %v3935 = vunpack.c.l.s4 1934713408
        %v3936 = vunpack.c.0.s8 %v3935
        %v3937 = vperm.slane %v3929, %v3936
        %v3938 = vrot.slane %v3933, 4
        %v3939 = vsel %vm1187, %v3938, %v3921
        %v3940 = vrot.slane %v3921, 4
        %v3941 = vsel %vm1187, %v3933, %v3940
        %v3942 = vrot.slane %v3937, 4
        %v3943 = vsel %vm1187, %v3942, %v3925
        %v3944 = vrot.slane %v3925, 4
        %v3945 = vsel %vm1187, %v3937, %v3944
        %v3946 = vsel %vm1187, %v3886, %v3867
        %v3948 = vunpack.c.l.s4 1983009808
        %v3949 = vunpack.c.0.s8 %v3948
        %v3950 = vperm.slane %v3946, %v3949
        %v3951 = vrot.slane %v3887, 4
        %v3952 = vsel %vm1187, %v3951, %v3885
        %v3954 = vunpack.c.l.s4 1983009808
        %v3955 = vunpack.c.0.s8 %v3954
        %v3956 = vperm.slane %v3952, %v3955
        %v3957 = vsel %vm1187, %v3890, %v3879
        %v3959 = vunpack.c.l.s4 1983009808
        %v3960 = vunpack.c.0.s8 %v3959
        %v3961 = vperm.slane %v3957, %v3960
        %v3962 = vrot.slane %v3891, 4
        %v3963 = vsel %vm1187, %v3962, %v3889
        %v3965 = vunpack.c.l.s4 1983009808
        %v3966 = vunpack.c.0.s8 %v3965
        %v3967 = vperm.slane %v3963, %v3966
        %v3968 = vrot.slane %v3956, 4
        %v3969 = vsel %vm1187, %v3968, %v3950
        %v3970 = vrot.slane %v3950, 4
        %v3971 = vsel %vm1187, %v3956, %v3970
        %v3973 = vunpack.c.l.s4 1934713408
        %v3974 = vunpack.c.0.s8 %v3973
        %v3975 = vperm.slane %v3969, %v3974
        %v3977 = vunpack.c.l.s4 1934713408
        %v3978 = vunpack.c.0.s8 %v3977
        %v3979 = vperm.slane %v3971, %v3978
        %v3980 = vrot.slane %v3967, 4
        %v3981 = vsel %vm1187, %v3980, %v3961
        %v3982 = vrot.slane %v3961, 4
        %v3983 = vsel %vm1187, %v3967, %v3982
        %v3985 = vunpack.c.l.s4 1934713408
        %v3986 = vunpack.c.0.s8 %v3985
        %v3987 = vperm.slane %v3981, %v3986
        %v3989 = vunpack.c.l.s4 1934713408
        %v3990 = vunpack.c.0.s8 %v3989
        %v3991 = vperm.slane %v3983, %v3990
        %v3992 = vrot.slane %v3987, 4
        %v3993 = vsel %vm1187, %v3992, %v3975
        %v3994 = vrot.slane %v3975, 4
        %v3995 = vsel %vm1187, %v3987, %v3994
        %v3996 = vrot.slane %v3991, 4
        %v3997 = vsel %vm1187, %v3996, %v3979
        %v3998 = vrot.slane %v3979, 4
        %v3999 = vsel %vm1187, %v3991, %v3998
        %4002 = vrot.lane.b32.xlu0 %v3941, 32
        %v4003 = vpop.permute.xlu0 %4002
        %4004 = vrot.lane.b32.xlu0 %v3995, 32
        %v4005 = vpop.permute.xlu0 %4004
        %4010 = vrot.lane.b32.xlu0 %v3943, 64
        %v4011 = vpop.permute.xlu0 %4010
        %4012 = vrot.lane.b32.xlu0 %v3997, 64
        %v4013 = vpop.permute.xlu0 %4012
        %4018 = vrot.lane.b32.xlu0 %v3945, 96
        %v4019 = vpop.permute.xlu0 %4018
        %4020 = vrot.lane.b32.xlu0 %v3999, 96
        %v4021 = vpop.permute.xlu0 %4020
        %v4024 = vsel %vm1887, %v3939, %v4003
        %v4025 = vsel %vm1887, %v3993, %v4005
        %v4026 = vsel %vm2479, %v4024, %v4011
        %v4027 = vsel %vm2479, %v4025, %v4013
        %v4028 = vsel %vm2482, %v4026, %v4019
        %v4029 = vsel %vm2482, %v4027, %v4021
        %v4030 = vld [vmem:[#allocation17] sm:$0xff]
        %v4031 = vld [vmem:[#allocation17 + $0x8] sm:$0xff]
        %v4032 = vld [vmem:[#allocation17 + $0x10] sm:$0xff]
        %v4033 = vld [vmem:[#allocation17 + $0x18] sm:$0xff]
        %v4034 = vld [vmem:[#allocation17 + $0x20] sm:$0xff]
        %v4035 = vld [vmem:[#allocation17 + $0x28] sm:$0xff]
        %v4036 = vld [vmem:[#allocation17 + $0x30] sm:$0xff]
        %v4037 = vld [vmem:[#allocation17 + $0x38] sm:$0xff]
        %v4038 = vld [vmem:[#allocation17 + $0x40] sm:$0xff]
        %v4039 = vld [vmem:[#allocation17 + $0x48] sm:$0xff]
        %v4040 = vld [vmem:[#allocation17 + $0x50] sm:$0xff]
        %v4041 = vld [vmem:[#allocation17 + $0x58] sm:$0xff]
        %v4042 = vld [vmem:[#allocation17 + $0x60] sm:$0xff]
        %v4043 = vld [vmem:[#allocation17 + $0x68] sm:$0xff]
        %v4044 = vld [vmem:[#allocation17 + $0x70] sm:$0xff]
        %v4045 = vld [vmem:[#allocation17 + $0x78] sm:$0xff]
        %v4046 = vld [vmem:[%s14] sm:$0x1]
        %v4048 = vperm.slane %v4046, 0
        %4050 = vmatpush.msra.mxu0 %v4045
        %4051 = vmatpush.msra.mxu0 %v4044
        %4052 = vmatpush.msra.mxu0 %v4043
        %4053 = vmatpush.msra.mxu0 %v4042
        %4054 = vmatpush.msra.mxu0 %v4041
        %4055 = vmatpush.msra.mxu0 %v4040
        %4056 = vmatpush.msra.mxu0 %v4039
        %4057 = vmatpush.msra.mxu0 %v4038
        %4058 = vmatpush.msra.mxu0 %v4037
        %4059 = vmatpush.msra.mxu0 %v4036
        %4060 = vmatpush.msra.mxu0 %v4035
        %4061 = vmatpush.msra.mxu0 %v4034
        %4062 = vmatpush.msra.mxu0 %v4033
        %4063 = vmatpush.msra.mxu0 %v4032
        %4064 = vmatpush.msra.mxu0 %v4031
        %4065 = vmatpush.msra.mxu0 %v4030
        %4066 = vmatmul.f32.gmra.mxu0 %v4028
        %v4067 = vpop.f32.mrf.mxu0
        %v4068 = vadd.f32 %v4048, %v4067
        %4069 = vmatmul.f32.gmra.mxu0 %v4029
        %v4070 = vpop.f32.mrf.mxu0
        %v4071 = vadd.f32 %v4048, %v4070
        %4072 = vdwg.mxu0
        %v4073 = vadd.f32 %v2587, %v4068
        %v4074 = vadd.f32 %v2588, %v4071
        %4075 = vadd.xlane.f32.xlu0 %v4073
        %v4076 = vpop.xlane.xlu0 %4075
        %4077 = vadd.xlane.f32.xlu0 %v4074
        %v4078 = vpop.xlane.xlu0 %4077
        %v4079 = vmul.f32 %v4076, %v2540
        %v4080 = vmul.f32 %v4078, %v2540
        %v4081 = vsub.f32 %v4073, %v4079
        %v4082 = vsub.f32 %v4074, %v4080
        %v4083 = vmul.f32 %v4081, %v4081
        %v4084 = vmul.f32 %v4082, %v4082
        %4085 = vadd.xlane.f32.xlu0 %v4083
        %v4086 = vpop.xlane.xlu0 %4085
        %4087 = vadd.xlane.f32.xlu0 %v4084
        %v4088 = vpop.xlane.xlu0 %4087
        %v4089 = vmul.f32 %v4086, %v2540
        %v4090 = vmul.f32 %v4088, %v2540
        %v4091 = vadd.f32 %v4089, 1e-05
        %v4092 = vadd.f32 %v4090, 1e-05
        %v4093 = vrsqrt.pop %v4091
        %v4094 = vmul.f32 %v4093, %v4091
        %v4095 = vmul.f32 %v4094, %v4093
        %v4096 = vmul.f32 0.5, %v4095
        %v4097 = vsub.f32 1.5, %v4096
        %v4098 = vmul.f32 %v4093, %v4097
        %vm4099 = vweird.f32 %v4091
        %vm4100 = vweird.f32 %v4093
        %vm4101 = vmor %vm4099, %vm4100
        %v4102 = vsel %vm4101, %v4093, %v4098
        %v4103 = vrsqrt.pop %v4092
        %v4104 = vmul.f32 %v4103, %v4092
        %v4105 = vmul.f32 %v4104, %v4103
        %v4106 = vmul.f32 0.5, %v4105
        %v4107 = vsub.f32 1.5, %v4106
        %v4108 = vmul.f32 %v4103, %v4107
        %vm4109 = vweird.f32 %v4092
        %vm4110 = vweird.f32 %v4103
        %vm4111 = vmor %vm4109, %vm4110
        %v4112 = vsel %vm4111, %v4103, %v4108
        %v4113 = vmul.f32 %v4081, %v4102
        %v4114 = vmul.f32 %v4082, %v4112
        %v4115 = vld [vmem:[%s21] sm:$0x1]
        %v4117 = vperm.slane %v4115, 0
        %v4119 = vmul.f32 %v4113, %v4117
        %v4120 = vmul.f32 %v4114, %v4117
        %v4121 = vld [vmem:[%s22] sm:$0x1]
        %v4123 = vperm.slane %v4121, 0
        %v4125 = vadd.f32 %v4119, %v4123
        %v4126 = vadd.f32 %v4120, %v4123
        %v4127 = vld [vmem:[#allocation19] sm:$0xff]
        %v4128 = vld [vmem:[#allocation19 + $0x8] sm:$0xff]
        %v4129 = vld [vmem:[#allocation19 + $0x10] sm:$0xff]
        %v4130 = vld [vmem:[#allocation19 + $0x18] sm:$0xff]
        %v4131 = vld [vmem:[#allocation19 + $0x20] sm:$0xff]
        %v4132 = vld [vmem:[#allocation19 + $0x28] sm:$0xff]
        %v4133 = vld [vmem:[#allocation19 + $0x30] sm:$0xff]
        %v4134 = vld [vmem:[#allocation19 + $0x38] sm:$0xff]
        %v4135 = vld [vmem:[#allocation19 + $0x40] sm:$0xff]
        %v4136 = vld [vmem:[#allocation19 + $0x48] sm:$0xff]
        %v4137 = vld [vmem:[#allocation19 + $0x50] sm:$0xff]
        %v4138 = vld [vmem:[#allocation19 + $0x58] sm:$0xff]
        %v4139 = vld [vmem:[#allocation19 + $0x60] sm:$0xff]
        %v4140 = vld [vmem:[#allocation19 + $0x68] sm:$0xff]
        %v4141 = vld [vmem:[#allocation19 + $0x70] sm:$0xff]
        %v4142 = vld [vmem:[#allocation19 + $0x78] sm:$0xff]
        %v4143 = vld [vmem:[#allocation19 + $0x80] sm:$0xff]
        %v4144 = vld [vmem:[#allocation19 + $0x88] sm:$0xff]
        %v4145 = vld [vmem:[#allocation19 + $0x90] sm:$0xff]
        %v4146 = vld [vmem:[#allocation19 + $0x98] sm:$0xff]
        %v4147 = vld [vmem:[#allocation19 + $0xa0] sm:$0xff]
        %v4148 = vld [vmem:[#allocation19 + $0xa8] sm:$0xff]
        %v4149 = vld [vmem:[#allocation19 + $0xb0] sm:$0xff]
        %v4150 = vld [vmem:[#allocation19 + $0xb8] sm:$0xff]
        %v4151 = vld [vmem:[#allocation19 + $0xc0] sm:$0xff]
        %v4152 = vld [vmem:[#allocation19 + $0xc8] sm:$0xff]
        %v4153 = vld [vmem:[#allocation19 + $0xd0] sm:$0xff]
        %v4154 = vld [vmem:[#allocation19 + $0xd8] sm:$0xff]
        %v4155 = vld [vmem:[#allocation19 + $0xe0] sm:$0xff]
        %v4156 = vld [vmem:[#allocation19 + $0xe8] sm:$0xff]
        %v4157 = vld [vmem:[#allocation19 + $0xf0] sm:$0xff]
        %v4158 = vld [vmem:[#allocation19 + $0xf8] sm:$0xff]
        %v4159 = vld [vmem:[%s16] sm:$0x3]
        %v4161 = vperm.slane %v4159, 0
        %v4162 = vperm.slane %v4159, 1
        %4165 = vmatpush.msra.mxu0 %v4157
        %4166 = vmatpush.msra.mxu0 %v4155
        %4167 = vmatpush.msra.mxu0 %v4153
        %4168 = vmatpush.msra.mxu0 %v4151
        %4169 = vmatpush.msra.mxu0 %v4149
        %4170 = vmatpush.msra.mxu0 %v4147
        %4171 = vmatpush.msra.mxu0 %v4145
        %4172 = vmatpush.msra.mxu0 %v4143
        %4173 = vmatpush.msra.mxu0 %v4141
        %4174 = vmatpush.msra.mxu0 %v4139
        %4175 = vmatpush.msra.mxu0 %v4137
        %4176 = vmatpush.msra.mxu0 %v4135
        %4177 = vmatpush.msra.mxu0 %v4133
        %4178 = vmatpush.msra.mxu0 %v4131
        %4179 = vmatpush.msra.mxu0 %v4129
        %4180 = vmatpush.msra.mxu0 %v4127
        %4181 = vmatmul.f32.gmra.mxu0 %v4125
        %v4182 = vpop.f32.mrf.mxu0
        %v4183 = vadd.f32 %v4161, %v4182
        %4184 = vmatmul.f32.gmra.mxu0 %v4126
        %v4185 = vpop.f32.mrf.mxu0
        %v4186 = vadd.f32 %v4161, %v4185
        %4187 = vdwg.mxu0
        %4188 = vmatpush.msra.mxu0 %v4158
        %4189 = vmatpush.msra.mxu0 %v4156
        %4190 = vmatpush.msra.mxu0 %v4154
        %4191 = vmatpush.msra.mxu0 %v4152
        %4192 = vmatpush.msra.mxu0 %v4150
        %4193 = vmatpush.msra.mxu0 %v4148
        %4194 = vmatpush.msra.mxu0 %v4146
        %4195 = vmatpush.msra.mxu0 %v4144
        %4196 = vmatpush.msra.mxu0 %v4142
        %4197 = vmatpush.msra.mxu0 %v4140
        %4198 = vmatpush.msra.mxu0 %v4138
        %4199 = vmatpush.msra.mxu0 %v4136
        %4200 = vmatpush.msra.mxu0 %v4134
        %4201 = vmatpush.msra.mxu0 %v4132
        %4202 = vmatpush.msra.mxu0 %v4130
        %4203 = vmatpush.msra.mxu0 %v4128
        %4204 = vmatmul.f32.gmra.mxu0 %v4125
        %v4205 = vpop.f32.mrf.mxu0
        %v4206 = vadd.f32 %v4162, %v4205
        %4207 = vmatmul.f32.gmra.mxu0 %v4126
        %v4208 = vpop.f32.mrf.mxu0
        %v4209 = vadd.f32 %v4162, %v4208
        %4210 = vdwg.mxu0
        %v4211 = vmax.f32 %v4183, 0.0
        %v4212 = vmax.f32 %v4206, 0.0
        %v4213 = vmax.f32 %v4186, 0.0
        %v4214 = vmax.f32 %v4209, 0.0
        %v4215 = vld [vmem:[#allocation20] sm:$0xff]
        %v4216 = vld [vmem:[#allocation20 + $0x8] sm:$0xff]
        %v4217 = vld [vmem:[#allocation20 + $0x10] sm:$0xff]
        %v4218 = vld [vmem:[#allocation20 + $0x18] sm:$0xff]
        %v4219 = vld [vmem:[#allocation20 + $0x20] sm:$0xff]
        %v4220 = vld [vmem:[#allocation20 + $0x28] sm:$0xff]
        %v4221 = vld [vmem:[#allocation20 + $0x30] sm:$0xff]
        %v4222 = vld [vmem:[#allocation20 + $0x38] sm:$0xff]
        %v4223 = vld [vmem:[#allocation20 + $0x40] sm:$0xff]
        %v4224 = vld [vmem:[#allocation20 + $0x48] sm:$0xff]
        %v4225 = vld [vmem:[#allocation20 + $0x50] sm:$0xff]
        %v4226 = vld [vmem:[#allocation20 + $0x58] sm:$0xff]
        %v4227 = vld [vmem:[#allocation20 + $0x60] sm:$0xff]
        %v4228 = vld [vmem:[#allocation20 + $0x68] sm:$0xff]
        %v4229 = vld [vmem:[#allocation20 + $0x70] sm:$0xff]
        %v4230 = vld [vmem:[#allocation20 + $0x78] sm:$0xff]
        %v4231 = vld [vmem:[#allocation20 + $0x80] sm:$0xff]
        %v4232 = vld [vmem:[#allocation20 + $0x88] sm:$0xff]
        %v4233 = vld [vmem:[#allocation20 + $0x90] sm:$0xff]
        %v4234 = vld [vmem:[#allocation20 + $0x98] sm:$0xff]
        %v4235 = vld [vmem:[#allocation20 + $0xa0] sm:$0xff]
        %v4236 = vld [vmem:[#allocation20 + $0xa8] sm:$0xff]
        %v4237 = vld [vmem:[#allocation20 + $0xb0] sm:$0xff]
        %v4238 = vld [vmem:[#allocation20 + $0xb8] sm:$0xff]
        %v4239 = vld [vmem:[#allocation20 + $0xc0] sm:$0xff]
        %v4240 = vld [vmem:[#allocation20 + $0xc8] sm:$0xff]
        %v4241 = vld [vmem:[#allocation20 + $0xd0] sm:$0xff]
        %v4242 = vld [vmem:[#allocation20 + $0xd8] sm:$0xff]
        %v4243 = vld [vmem:[#allocation20 + $0xe0] sm:$0xff]
        %v4244 = vld [vmem:[#allocation20 + $0xe8] sm:$0xff]
        %v4245 = vld [vmem:[#allocation20 + $0xf0] sm:$0xff]
        %v4246 = vld [vmem:[#allocation20 + $0xf8] sm:$0xff]
        %v4247 = vld [vmem:[%s18] sm:$0x1]
        %v4249 = vperm.slane %v4247, 0
        %4251 = vmatpush.msra.mxu0 %v4230
        %4252 = vmatpush.msra.mxu0 %v4229
        %4253 = vmatpush.msra.mxu0 %v4228
        %4254 = vmatpush.msra.mxu0 %v4227
        %4255 = vmatpush.msra.mxu0 %v4226
        %4256 = vmatpush.msra.mxu0 %v4225
        %4257 = vmatpush.msra.mxu0 %v4224
        %4258 = vmatpush.msra.mxu0 %v4223
        %4259 = vmatpush.msra.mxu0 %v4222
        %4260 = vmatpush.msra.mxu0 %v4221
        %4261 = vmatpush.msra.mxu0 %v4220
        %4262 = vmatpush.msra.mxu0 %v4219
        %4263 = vmatpush.msra.mxu0 %v4218
        %4264 = vmatpush.msra.mxu0 %v4217
        %4265 = vmatpush.msra.mxu0 %v4216
        %4266 = vmatpush.msra.mxu0 %v4215
        %4267 = vmatmul.f32.gmra.mxu0 %v4211
        %v4268 = vpop.f32.mrf.mxu0
        %v4269 = vadd.f32 %v4249, %v4268
        %4270 = vmatmul.f32.gmra.mxu0 %v4213
        %v4271 = vpop.f32.mrf.mxu0
        %v4272 = vadd.f32 %v4249, %v4271
        %4273 = vdwg.mxu0
        %4274 = vmatpush.msra.mxu0 %v4246
        %4275 = vmatpush.msra.mxu0 %v4245
        %4276 = vmatpush.msra.mxu0 %v4244
        %4277 = vmatpush.msra.mxu0 %v4243
        %4278 = vmatpush.msra.mxu0 %v4242
        %4279 = vmatpush.msra.mxu0 %v4241
        %4280 = vmatpush.msra.mxu0 %v4240
        %4281 = vmatpush.msra.mxu0 %v4239
        %4282 = vmatpush.msra.mxu0 %v4238
        %4283 = vmatpush.msra.mxu0 %v4237
        %4284 = vmatpush.msra.mxu0 %v4236
        %4285 = vmatpush.msra.mxu0 %v4235
        %4286 = vmatpush.msra.mxu0 %v4234
        %4287 = vmatpush.msra.mxu0 %v4233
        %4288 = vmatpush.msra.mxu0 %v4232
        %4289 = vmatpush.msra.mxu0 %v4231
        %4290 = vmatmul.f32.gmra.mxu0 %v4212
        %v4291 = vpop.f32.mrf.mxu0
        %v4292 = vadd.f32 %v4269, %v4291
        %4293 = vmatmul.f32.gmra.mxu0 %v4214
        %v4294 = vpop.f32.mrf.mxu0
        %v4295 = vadd.f32 %v4272, %v4294
        %4296 = vdwg.mxu0
        %v4297 = vadd.f32 %v4125, %v4292
        %v4298 = vadd.f32 %v4126, %v4295
        %4299 = vadd.xlane.f32.xlu0 %v4297
        %v4300 = vpop.xlane.xlu0 %4299
        %4301 = vadd.xlane.f32.xlu0 %v4298
        %v4302 = vpop.xlane.xlu0 %4301
        %v4303 = vmul.f32 %v4300, %v2540
        %v4304 = vmul.f32 %v4302, %v2540
        %v4305 = vsub.f32 %v4297, %v4303
        %v4306 = vsub.f32 %v4298, %v4304
        %v4307 = vmul.f32 %v4305, %v4305
        %v4308 = vmul.f32 %v4306, %v4306
        %4309 = vadd.xlane.f32.xlu0 %v4307
        %v4310 = vpop.xlane.xlu0 %4309
        %4311 = vadd.xlane.f32.xlu0 %v4308
        %v4312 = vpop.xlane.xlu0 %4311
        %v4313 = vmul.f32 %v4310, %v2540
        %v4314 = vmul.f32 %v4312, %v2540
        %v4315 = vadd.f32 %v4313, 1e-05
        %v4316 = vadd.f32 %v4314, 1e-05
        %v4317 = vrsqrt.pop %v4315
        %v4318 = vmul.f32 %v4317, %v4315
        %v4319 = vmul.f32 %v4318, %v4317
        %v4320 = vmul.f32 0.5, %v4319
        %v4321 = vsub.f32 1.5, %v4320
        %v4322 = vmul.f32 %v4317, %v4321
        %vm4323 = vweird.f32 %v4315
        %vm4324 = vweird.f32 %v4317
        %vm4325 = vmor %vm4323, %vm4324
        %v4326 = vsel %vm4325, %v4317, %v4322
        %v4327 = vrsqrt.pop %v4316
        %v4328 = vmul.f32 %v4327, %v4316
        %v4329 = vmul.f32 %v4328, %v4327
        %v4330 = vmul.f32 0.5, %v4329
        %v4331 = vsub.f32 1.5, %v4330
        %v4332 = vmul.f32 %v4327, %v4331
        %vm4333 = vweird.f32 %v4316
        %vm4334 = vweird.f32 %v4327
        %vm4335 = vmor %vm4333, %vm4334
        %v4336 = vsel %vm4335, %v4327, %v4332
        %v4337 = vmul.f32 %v4305, %v4326
        %v4338 = vmul.f32 %v4306, %v4336
        %v4339 = vld [vmem:[%s23] sm:$0x1]
        %v4341 = vperm.slane %v4339, 0
        %v4343 = vmul.f32 %v4337, %v4341
        %v4344 = vmul.f32 %v4338, %v4341
        %v4345 = vld [vmem:[%s24] sm:$0x1]
        %v4347 = vperm.slane %v4345, 0
        %v4349 = vadd.f32 %v4343, %v4347
        %v4350 = vadd.f32 %v4344, %v4347
        %4351 = vst [vmem:[%s1030] sm:$0xff] %v4349
        %4352 = vst [vmem:[%s1030 + $0x8] sm:$0xff] %v4350
        %s4353 = sand.u32 %s614, 1
        %s4354 = scalar_lea.sflag [#allocation4], %s4353
        %s4355 = sand.u32 %s614, 1
        %s4356 = smul.addr %s4355, 16
        %s4357 = scalar_lea.vmem [#allocation22], %s4356
        // Predicated region
        $region169: #{tpu_custom_call.1} parent=119 // pred_check
          %p4358 = pneg %p624
        $region170: #{tpu_custom_call.1} parent=119 // pred_check_branch
          %4360 = sbr.rel (%p4358) target = $region172
        $region171: #{tpu_custom_call.1} parent=119 // pred_region
          %s4361 = smul.u32 2, %s55
          %4363 = vsyncadd %s4354, 0
          %s4364 = smul.addr %s54, 2
          %s4365 = sadd.s32 %s4361, %s4364
          %s4366 = smul.addr %s4365, 8
          %s4367 = scalar_lea.hbm %s25, %s4366
          %s4368 = sshll.u32 %s4357, 4
          %s4369 = int_to_ptr.vmem [resolvable:$true] %s4368
          %s4370 = sshll.u32 %s4367, 4
          %s4371 = int_to_ptr.hbm [resolvable:$true] %s4370
          %4376 = dma.vmem_to_hbm [thread:$0]  %s4369, 256, %s4371, %s4354, 128, 128, 8
        $region172: #{tpu_custom_call.1} parent=119 // pred_fallthru
          _
      $region120: #{tpu_custom_call.1} parent=5 // pred_fallthru
        _
      %p4377 = scmp.le.s32.totalorder 2, %s45
      // Predicated region
      $region173: #{tpu_custom_call.1} parent=5 // pred_check
        %p4378 = pneg %p4377
      $region174: #{tpu_custom_call.1} parent=5 // pred_check_branch
        %4380 = sbr.rel (%p4378) target = $region176
      $region175: #{tpu_custom_call.1} parent=5 // pred_region
        %s4381 = ssub.s32 %s45, 2
        // Predicated region
        $region177: #{tpu_custom_call.1} parent=175 // pred_check
          %p4382 = pneg %p630
        $region178: #{tpu_custom_call.1} parent=175 // pred_check_branch
          %4384 = sbr.rel (%p4382) target = $region180
        $region179: #{tpu_custom_call.1} parent=175 // pred_region
          %s4385 = sand.u32 %s615, 1
          %s4386 = scalar_lea.sflag [#allocation4], %s4385
          %s4387 = sand.u32 %s615, 1
          %s4388 = smul.addr %s4387, 16
          %s4389 = scalar_lea.vmem [#allocation22], %s4388
          %4391 = dma.done %s4386, 256
        $region180: #{tpu_custom_call.1} parent=175 // pred_fallthru
          _
      $region176: #{tpu_custom_call.1} parent=5 // pred_fallthru
        _
    $region6: #{tpu_custom_call.1} parent=1 // loop_footer
      %s49 = sadd.s32 1, %s45
    $region7: #{tpu_custom_call.1} parent=1 // loop_footer_branch
      %44 = sbr.rel target = $region3
    $region8: #{tpu_custom_call.1} parent=1 // loop_exit
      _
    %4392 = vsyncpa [#allocation3], 1
    %s4393 = scalar_lea.sflag [#allocation3], 1
    %4394 = vsyncpa %s4393, 1
    %4395 = vsyncpa [#allocation6], 1
    %s4396 = scalar_lea.sflag [#allocation6], 1
    %4397 = vsyncpa %s4396, 1
    %4398 = vsyncpa [#allocation9], 1
    %4399 = vsyncpa [#allocation12], 1
    %4400 = vsyncpa [#allocation15], 1
    %4401 = vsyncpa [#allocation18], 1
    %4402 = vsyncpa [#allocation21], 1
    %4403 = vsyncpa [#allocation4], 1
    %s4404 = scalar_lea.sflag [#allocation4], 1
    %4405 = vsyncpa %s4404, 1

</llo_original>
